<compile_context>
chip_gen: v7x
topology: tpu7x:2x2x1
jax: 0.10.0
libtpu: 0.0.40
codegen_flags: <defaults>
</compile_context>

<pallas_src>
import functools

import jax
import jax.numpy as jnp
from jax import lax
from jax.experimental import pallas as pl
from jax.experimental.pallas import tpu as pltpu


# ----------------------------- in-kernel helpers ---------------------------- #

def _group_norm_silu(x2, gamma, beta, mask, mask_t, eps=1e-5):
    """x2: (HW, C) f32.  GroupNorm over (HW, C/G) per group, then SiLU.

    mask: (C, G) 0/1 group membership; mask_t: (G, C) = mask.T (host-provided,
    loop-invariant, so no per-step iota/compare construction).
    """
    HW, C = x2.shape
    G = mask.shape[1]
    inv_cnt = 1.0 / float(HW * (C // G))
    s = jnp.dot(jnp.sum(x2, axis=0, keepdims=True), mask,
                preferred_element_type=jnp.float32)               # (1, G)
    ss = jnp.dot(jnp.sum(x2 * x2, axis=0, keepdims=True), mask,
                 preferred_element_type=jnp.float32)              # (1, G)
    mean_g = s * inv_cnt
    # TODO(synk): E[x^2]-E[x]^2 in f32 can lose precision for huge activations.
    var_g = ss * inv_cnt - mean_g * mean_g
    inv_g = lax.rsqrt(var_g + eps)
    mean_c = jnp.dot(mean_g, mask_t, preferred_element_type=jnp.float32)  # (1, C)
    inv_c = jnp.dot(inv_g, mask_t, preferred_element_type=jnp.float32)    # (1, C)
    xn = (x2 - mean_c) * (inv_c * gamma) + beta                   # fused norm+affine
    return xn * jax.nn.sigmoid(xn)                                # SiLU


def _conv3x3(h32, w_ref, bias, cmask_ref, H, W):
    """3x3 same-padding conv as 9 shifted bf16 matmuls on the MXU.

    h32: (HW, Cin) f32; w_ref: (9, Cin, Cout) bf16 (tap index t = ky*3 + kx);
    bias: (1, Cout) f32; cmask_ref: (HW, 9) f32 per-tap validity masks that
    implement the zero padding (and kill the row-wrap picked up by the roll).
    """
    HW, _ = h32.shape
    Cout = w_ref.shape[2]
    acc = jnp.zeros((HW, Cout), jnp.float32)
    t = 0
    for dy in (-1, 0, 1):
        for dx in (-1, 0, 1):
            off = dy * W + dx                       # flat spatial offset of tap
            shift = (-off) % HW                     # patch[i] = h32[i + off]
            patch = h32 if shift == 0 else pltpu.roll(h32, shift=shift, axis=0)
            patch = patch * cmask_ref[:, t:t + 1]   # zero out-of-image taps
            acc = acc + jnp.dot(patch.astype(jnp.bfloat16), w_ref[t],
                                preferred_element_type=jnp.float32)
            t += 1
    return acc + bias


# ------------------------------- fused kernel ------------------------------- #

def _up_block_kernel(x_ref, t_ref,
                     g1_ref, be1_ref, m1_ref, m1t_ref, w1_ref, b1_ref,
                     wt_ref, bt_ref,
                     g2_ref, be2_ref, m2_ref, m2t_ref, w2_ref, b2_ref,
                     wsc_ref, bsc_ref, wqkv_ref, bqkv_ref, cmask_ref,
                     o_ref, *, H, W, n_heads, do_attn):
    """Fused ResidualBlock (+ Attention) for one batch element (grid = batch)."""
    HW = H * W
    x2 = x_ref[0]                                                 # (HW, Cin) f32

    # resnet_block1: GroupNorm -> SiLU -> Conv3x3
    h = _group_norm_silu(x2, g1_ref[...], be1_ref[...], m1_ref[...], m1t_ref[...])
    h = _conv3x3(h, w1_ref, b1_ref[...], cmask_ref, H, W)

    # time embedding: SiLU -> Linear, broadcast over spatial positions
    tt = t_ref[0]                                                 # (1, Tdim) f32
    tt = tt * jax.nn.sigmoid(tt)
    temb = jnp.dot(tt.astype(jnp.bfloat16), wt_ref[...],
                   preferred_element_type=jnp.float32) + bt_ref[...]
    h = h + temb                                                  # (HW,Cout)+(1,Cout)

    # resnet_block2: GroupNorm -> SiLU -> Dropout -> Conv3x3
    # TODO(synk): nn.Dropout(0.6) treated as eval-mode identity (no PRNG masking).
    h2 = _group_norm_silu(h, g2_ref[...], be2_ref[...], m2_ref[...], m2t_ref[...])
    h2 = _conv3x3(h2, w2_ref, b2_ref[...], cmask_ref, H, W)

    # shortcut: 1x1 conv (UpBlock's ResidualBlock always has in != out channels)
    sc = jnp.dot(x2.astype(jnp.bfloat16), wsc_ref[...],
                 preferred_element_type=jnp.float32) + bsc_ref[...]
    res = h2 + sc                                                 # (HW, Cout) f32

    if not do_attn:
        o_ref[0] = res.astype(o_ref.dtype)
        return

    # Attention.  Reference semantics reproduced exactly: scale = sqrt(embed_dim)
    # (not head_dim), and qkv sliced as interleaved [q_h|k_h|v_h] per head,
    # matching the reference's view(..., n_heads, 3C/n_heads) + chunk layout.
    C = res.shape[1]
    dh = C // n_heads
    sub = 3 * C // n_heads
    qkv = jnp.dot(res.astype(jnp.bfloat16), wqkv_ref[...],
                  preferred_element_type=jnp.float32) + bqkv_ref[...]
    inv_scale = 1.0 / float(C) ** 0.5
    # Query-block tiling keeps the score matrix at (TQ, HW) instead of (HW, HW).
    if HW % 256 == 0:
        TQ = 256
    elif HW % 128 == 0:
        TQ = 128
    else:
        TQ = HW
    for hh in range(n_heads):
        base = hh * sub
        q = (qkv[:, base:base + dh] * inv_scale).astype(jnp.bfloat16)
        k = qkv[:, base + dh:base + 2 * dh].astype(jnp.bfloat16)
        v = qkv[:, base + 2 * dh:base + 3 * dh].astype(jnp.bfloat16)
        for q0 in range(0, HW, TQ):
            qb = q[q0:q0 + TQ]
            s = lax.dot_general(qb, k, (((1,), (1,)), ((), ())),
                                preferred_element_type=jnp.float32)   # (TQ, HW)
            s = s - jnp.max(s, axis=-1, keepdims=True)
            p = jnp.exp(s)
            p = p * pl.reciprocal(jnp.sum(p, axis=-1, keepdims=True), approx=True)
            ob = jnp.dot(p.astype(jnp.bfloat16), v,
                         preferred_element_type=jnp.float32)          # (TQ, dh)
            o_ref[0, q0:q0 + TQ, hh * dh:(hh + 1) * dh] = (
                ob + res[q0:q0 + TQ, hh * dh:(hh + 1) * dh]).astype(o_ref.dtype)


# ------------------------------ host-side setup ----------------------------- #

def _group_masks(C, G):
    cg = C // G
    m = (jnp.arange(C)[:, None] // cg == jnp.arange(G)[None, :]).astype(jnp.float32)
    return m, m.T                                                 # (C, G), (G, C)


def _conv_tap_masks(H, W):
    yy = jnp.arange(H * W) // W
    xx = jnp.arange(H * W) % W
    cols = []
    for dy in (-1, 0, 1):
        for dx in (-1, 0, 1):
            cols.append((yy + dy >= 0) & (yy + dy < H) & (xx + dx >= 0) & (xx + dx < W))
    return jnp.stack(cols, axis=1).astype(jnp.float32)            # (HW, 9)


def up_block_forward(x_nchw, t, params, *, has_attn=True, n_heads=2, n_groups=2):
    """UpBlock.forward: x is NCHW with C = in_channels + out_channels, t is (B, t_embed_dim)."""
    B, Cin, H, W = x_nchw.shape
    Cout = params["b1"].shape[-1]
    Tdim = t.shape[-1]
    HW = H * W

    x_flat = jnp.transpose(x_nchw, (0, 2, 3, 1)).reshape(B, HW, Cin).astype(jnp.float32)
    t3 = t.reshape(B, 1, Tdim).astype(jnp.float32)

    # Loop-invariant masks, hoisted out of the kernel.
    m1, m1t = _group_masks(Cin, n_groups)
    m2, m2t = _group_masks(Cout, n_groups)
    cmask = _conv_tap_masks(H, W)

    # bf16 weights for the MXU (f32 biases / norm params stay f32).
    w1 = params["w1"].reshape(9, Cin, Cout).astype(jnp.bfloat16)
    w2 = params["w2"].reshape(9, Cout, Cout).astype(jnp.bfloat16)
    wt = params["wt"].astype(jnp.bfloat16)
    wsc = params["wsc"].astype(jnp.bfloat16)
    wqkv = params["wqkv"].astype(jnp.bfloat16)

    args = (x_flat, t3,
            params["g1"], params["be1"], m1, m1t, w1, params["b1"],
            wt, params["bt"],
            params["g2"], params["be2"], m2, m2t, w2, params["b2"],
            wsc, params["bsc"], wqkv, params["bqkv"], cmask)

    def full(arr):
        return pl.BlockSpec(arr.shape, lambda b, _nd=arr.ndim: (0,) * _nd)

    in_specs = [pl.BlockSpec((1, HW, Cin), lambda b: (b, 0, 0)),
                pl.BlockSpec((1, 1, Tdim), lambda b: (b, 0, 0))]
    in_specs += [full(a) for a in args[2:]]

    kern = functools.partial(_up_block_kernel, H=H, W=W,
                             n_heads=n_heads, do_attn=has_attn)

    out = pl.pallas_call(
        kern,
        out_shape=jax.ShapeDtypeStruct((B, HW, Cout), jnp.float32),
        grid=(B,),
        in_specs=in_specs,
        out_specs=pl.BlockSpec((1, HW, Cout), lambda b: (b, 0, 0)),
        compiler_params=pltpu.CompilerParams(
            dimension_semantics=("parallel",),
            vmem_limit_bytes=48 * 1024 * 1024),
    )(*args)

    if has_attn:
        # Reference does a RAW reshape [B, HW, C] -> [B, C, H, W]; reproduce exactly.
        return out.reshape(B, Cout, H, W)
    # Residual-only output is genuinely NHWC-flat; convert back to NCHW.
    return jnp.transpose(out.reshape(B, H, W, Cout), (0, 3, 1, 2))


# --------------------------- deterministic params --------------------------- #

def init_params(key, in_channels, out_channels, t_embed_dim):
    cin_r = in_channels + out_channels   # ResidualBlock input channels in UpBlock
    c = out_channels
    keys = jax.random.split(key, 10)

    def n(k, shape, s=0.1):
        return (s * jax.random.normal(k, shape)).astype(jnp.float32)

    return {
        # GroupNorm1 (defaults: gamma=1, beta=0)
        "g1": jnp.ones((1, cin_r), jnp.float32),
        "be1": jnp.zeros((1, cin_r), jnp.float32),
        # Conv1 3x3: stored as (kh, kw, Cin, Cout)
        "w1": n(keys[0], (3, 3, cin_r, c)),
        "b1": n(keys[1], (1, c)),
        # time-embedding Linear: stored transposed (Tdim, Cout)
        "wt": n(keys[2], (t_embed_dim, c)),
        "bt": n(keys[3], (1, c)),
        # GroupNorm2
        "g2": jnp.ones((1, c), jnp.float32),
        "be2": jnp.zeros((1, c), jnp.float32),
        # Conv2 3x3
        "w2": n(keys[4], (3, 3, c, c)),
        "b2": n(keys[5], (1, c)),
        # shortcut 1x1 conv: stored as (Cin, Cout)
        "wsc": n(keys[6], (cin_r, c)),
        "bsc": n(keys[7], (1, c)),
        # Attention qkv Linear: stored transposed (C, 3C)
        "wqkv": n(keys[8], (c, 3 * c)),
        "bqkv": n(keys[9], (1, 3 * c)),
    }


if __name__ == "__main__":
    in_channels, out_channels, t_embed_dim = 4, 8, 16
    B, H, W = 2, 8, 8

    key = jax.random.PRNGKey(0)
    kx, kt, kp = jax.random.split(key, 3)
    # UpBlock input has in_channels + out_channels channels (skip concat done upstream).
    x = jax.random.normal(kx, (B, in_channels + out_channels, H, W), jnp.float32)
    t = jax.random.normal(kt, (B, t_embed_dim), jnp.float32)
    params = init_params(kp, in_channels, out_channels, t_embed_dim)

    out = up_block_forward(x, t, params, has_attn=True)
    out = jax.block_until_ready(out)
    assert out.shape == (B, out_channels, H, W), out.shape
    assert jnp.all(jnp.isfinite(out))
    print("KERNEL_OK")
</pallas_src>

<mosaic_0001>
module attributes {stable_mosaic.version = 11 : i64} {
  func.func @_up_block_kernel(%arg0: i32, %arg1: memref<1x64x12xf32, #tpu.memory_space<vmem>>, %arg2: memref<1x1x16xf32, #tpu.memory_space<vmem>>, %arg3: memref<1x12xf32, #tpu.memory_space<vmem>>, %arg4: memref<1x12xf32, #tpu.memory_space<vmem>>, %arg5: memref<12x2xf32, #tpu.memory_space<vmem>>, %arg6: memref<2x12xf32, #tpu.memory_space<vmem>>, %arg7: memref<9x12x8xbf16, #tpu.memory_space<vmem>>, %arg8: memref<1x8xf32, #tpu.memory_space<vmem>>, %arg9: memref<16x8xbf16, #tpu.memory_space<vmem>>, %arg10: memref<1x8xf32, #tpu.memory_space<vmem>>, %arg11: memref<1x8xf32, #tpu.memory_space<vmem>>, %arg12: memref<1x8xf32, #tpu.memory_space<vmem>>, %arg13: memref<8x2xf32, #tpu.memory_space<vmem>>, %arg14: memref<2x8xf32, #tpu.memory_space<vmem>>, %arg15: memref<9x8x8xbf16, #tpu.memory_space<vmem>>, %arg16: memref<1x8xf32, #tpu.memory_space<vmem>>, %arg17: memref<12x8xbf16, #tpu.memory_space<vmem>>, %arg18: memref<1x8xf32, #tpu.memory_space<vmem>>, %arg19: memref<8x24xbf16, #tpu.memory_space<vmem>>, %arg20: memref<1x24xf32, #tpu.memory_space<vmem>>, %arg21: memref<64x9xf32, #tpu.memory_space<vmem>>, %arg22: memref<1x64x8xf32, #tpu.memory_space<vmem>>) attributes {dimension_semantics = [#tpu.dimension_semantics<parallel>], iteration_bounds = array<i64: 2>, scalar_prefetch = 0 : i64, scratch_operands = 0 : i64, tpu.core_type = #tpu.core_type<tc>, window_params = [{transform_indices = @transform_0, window_bounds = array<i64: 1, 64, 12>}, {transform_indices = @transform_1, window_bounds = array<i64: 1, 1, 16>}, {pipeline_mode = #tpu.pipeline_mode<synchronous>, transform_indices = @transform_2, window_bounds = array<i64: 1, 12>}, {pipeline_mode = #tpu.pipeline_mode<synchronous>, transform_indices = @transform_3, window_bounds = array<i64: 1, 12>}, {pipeline_mode = #tpu.pipeline_mode<synchronous>, transform_indices = @transform_4, window_bounds = array<i64: 12, 2>}, {pipeline_mode = #tpu.pipeline_mode<synchronous>, transform_indices = @transform_5, window_bounds = array<i64: 2, 12>}, {pipeline_mode = #tpu.pipeline_mode<synchronous>, transform_indices = @transform_6, window_bounds = array<i64: 9, 12, 8>}, {pipeline_mode = #tpu.pipeline_mode<synchronous>, transform_indices = @transform_7, window_bounds = array<i64: 1, 8>}, {pipeline_mode = #tpu.pipeline_mode<synchronous>, transform_indices = @transform_8, window_bounds = array<i64: 16, 8>}, {pipeline_mode = #tpu.pipeline_mode<synchronous>, transform_indices = @transform_9, window_bounds = array<i64: 1, 8>}, {pipeline_mode = #tpu.pipeline_mode<synchronous>, transform_indices = @transform_10, window_bounds = array<i64: 1, 8>}, {pipeline_mode = #tpu.pipeline_mode<synchronous>, transform_indices = @transform_11, window_bounds = array<i64: 1, 8>}, {pipeline_mode = #tpu.pipeline_mode<synchronous>, transform_indices = @transform_12, window_bounds = array<i64: 8, 2>}, {pipeline_mode = #tpu.pipeline_mode<synchronous>, transform_indices = @transform_13, window_bounds = array<i64: 2, 8>}, {pipeline_mode = #tpu.pipeline_mode<synchronous>, transform_indices = @transform_14, window_bounds = array<i64: 9, 8, 8>}, {pipeline_mode = #tpu.pipeline_mode<synchronous>, transform_indices = @transform_15, window_bounds = array<i64: 1, 8>}, {pipeline_mode = #tpu.pipeline_mode<synchronous>, transform_indices = @transform_16, window_bounds = array<i64: 12, 8>}, {pipeline_mode = #tpu.pipeline_mode<synchronous>, transform_indices = @transform_17, window_bounds = array<i64: 1, 8>}, {pipeline_mode = #tpu.pipeline_mode<synchronous>, transform_indices = @transform_18, window_bounds = array<i64: 8, 24>}, {pipeline_mode = #tpu.pipeline_mode<synchronous>, transform_indices = @transform_19, window_bounds = array<i64: 1, 24>}, {pipeline_mode = #tpu.pipeline_mode<synchronous>, transform_indices = @transform_20, window_bounds = array<i64: 64, 9>}, {transform_indices = @transform_21, window_bounds = array<i64: 1, 64, 8>}]} {
    %c0 = arith.constant 0 : index
    %c0_0 = arith.constant 0 : index
    %c0_1 = arith.constant 0 : index
    %0 = vector.load %arg1[%c0, %c0_0, %c0_1] : memref<1x64x12xf32, #tpu.memory_space<vmem>>, vector<1x64x12xf32>
    %1 = vector.shape_cast %0 : vector<1x64x12xf32> to vector<64x12xf32>
    %c0_2 = arith.constant 0 : index
    %c0_3 = arith.constant 0 : index
    %2 = vector.load %arg3[%c0_2, %c0_3] : memref<1x12xf32, #tpu.memory_space<vmem>>, vector<1x12xf32>
    %c0_4 = arith.constant 0 : index
    %c0_5 = arith.constant 0 : index
    %3 = vector.load %arg4[%c0_4, %c0_5] : memref<1x12xf32, #tpu.memory_space<vmem>>, vector<1x12xf32>
    %c0_6 = arith.constant 0 : index
    %c0_7 = arith.constant 0 : index
    %4 = vector.load %arg5[%c0_6, %c0_7] : memref<12x2xf32, #tpu.memory_space<vmem>>, vector<12x2xf32>
    %c0_8 = arith.constant 0 : index
    %c0_9 = arith.constant 0 : index
    %5 = vector.load %arg6[%c0_8, %c0_9] : memref<2x12xf32, #tpu.memory_space<vmem>>, vector<2x12xf32>
    %cst = arith.constant dense<0.000000e+00> : vector<12xf32>
    %6 = vector.multi_reduction <add>, %1, %cst [0] : vector<64x12xf32> to vector<12xf32>
    %7 = vector.shape_cast %6 : vector<12xf32> to vector<1x12xf32>
    %cst_10 = arith.constant dense<0.000000e+00> : vector<1x2xf32>
    %8 = tpu.matmul %7, %4, %cst_10 {dimension_numbers = #tpu.dot_dimension_numbers<[1], [0], [0], [1], [0, 0, 1, 1], [], []>} : vector<1x12xf32>, vector<12x2xf32>, vector<1x2xf32> -> vector<1x2xf32>
    %9 = arith.mulf %1, %1 : vector<64x12xf32>
    %cst_11 = arith.constant dense<0.000000e+00> : vector<12xf32>
    %10 = vector.multi_reduction <add>, %9, %cst_11 [0] : vector<64x12xf32> to vector<12xf32>
    %11 = vector.shape_cast %10 : vector<12xf32> to vector<1x12xf32>
    %cst_12 = arith.constant dense<0.000000e+00> : vector<1x2xf32>
    %12 = tpu.matmul %11, %4, %cst_12 {dimension_numbers = #tpu.dot_dimension_numbers<[1], [0], [0], [1], [0, 0, 1, 1], [], []>} : vector<1x12xf32>, vector<12x2xf32>, vector<1x2xf32> -> vector<1x2xf32>
    %cst_13 = arith.constant 0.00260416674 : f32
    %13 = vector.broadcast %cst_13 : f32 to vector<1x2xf32>
    %14 = arith.mulf %8, %13 : vector<1x2xf32>
    %cst_14 = arith.constant 0.00260416674 : f32
    %15 = vector.broadcast %cst_14 : f32 to vector<1x2xf32>
    %16 = arith.mulf %12, %15 : vector<1x2xf32>
    %17 = arith.mulf %14, %14 : vector<1x2xf32>
    %18 = arith.subf %16, %17 : vector<1x2xf32>
    %cst_15 = arith.constant 9.99999974E-6 : f32
    %19 = vector.broadcast %cst_15 : f32 to vector<1x2xf32>
    %20 = arith.addf %18, %19 : vector<1x2xf32>
    %21 = math.rsqrt %20 : vector<1x2xf32>
    %cst_16 = arith.constant dense<0.000000e+00> : vector<1x12xf32>
    %22 = tpu.matmul %14, %5, %cst_16 {dimension_numbers = #tpu.dot_dimension_numbers<[1], [0], [0], [1], [0, 0, 1, 1], [], []>} : vector<1x2xf32>, vector<2x12xf32>, vector<1x12xf32> -> vector<1x12xf32>
    %cst_17 = arith.constant dense<0.000000e+00> : vector<1x12xf32>
    %23 = tpu.matmul %21, %5, %cst_17 {dimension_numbers = #tpu.dot_dimension_numbers<[1], [0], [0], [1], [0, 0, 1, 1], [], []>} : vector<1x2xf32>, vector<2x12xf32>, vector<1x12xf32> -> vector<1x12xf32>
    %24 = vector.broadcast %22 : vector<1x12xf32> to vector<64x12xf32>
    %25 = arith.subf %1, %24 : vector<64x12xf32>
    %26 = arith.mulf %23, %2 : vector<1x12xf32>
    %27 = vector.broadcast %26 : vector<1x12xf32> to vector<64x12xf32>
    %28 = arith.mulf %25, %27 : vector<64x12xf32>
    %29 = vector.broadcast %3 : vector<1x12xf32> to vector<64x12xf32>
    %30 = arith.addf %28, %29 : vector<64x12xf32>
    %31 = arith.negf %30 : vector<64x12xf32>
    %32 = math.exp %31 : vector<64x12xf32>
    %cst_18 = arith.constant 1.000000e+00 : f32
    %33 = vector.broadcast %cst_18 : f32 to vector<64x12xf32>
    %34 = arith.addf %33, %32 : vector<64x12xf32>
    %35 = arith.divf %33, %34 : vector<64x12xf32>
    %36 = arith.mulf %30, %35 : vector<64x12xf32>
    %c0_19 = arith.constant 0 : index
    %c0_20 = arith.constant 0 : index
    %37 = vector.load %arg8[%c0_19, %c0_20] : memref<1x8xf32, #tpu.memory_space<vmem>>, vector<1x8xf32>
    %cst_21 = arith.constant 0.000000e+00 : f32
    %38 = vector.broadcast %cst_21 : f32 to vector<64x8xf32>
    %c9_i32 = arith.constant 9 : i32
    %39 = tpu.dynamic_rotate %36 by %c9_i32 dim 0 : vector<64x12xf32>, i32 -> vector<64x12xf32>
    %c0_22 = arith.constant 0 : index
    %c0_23 = arith.constant 0 : index
    %40 = vector.load %arg21[%c0_22, %c0_23] : memref<64x9xf32, #tpu.memory_space<vmem>>, vector<64x1xf32>
    %41 = vector.broadcast %40 : vector<64x1xf32> to vector<64x12xf32>
    %42 = arith.mulf %39, %41 : vector<64x12xf32>
    %43 = arith.truncf %42 : vector<64x12xf32> to vector<64x12xbf16>
    %c0_24 = arith.constant 0 : index
    %c0_25 = arith.constant 0 : index
    %c0_26 = arith.constant 0 : index
    %44 = vector.load %arg7[%c0_24, %c0_25, %c0_26] : memref<9x12x8xbf16, #tpu.memory_space<vmem>>, vector<1x12x8xbf16>
    %45 = vector.shape_cast %44 : vector<1x12x8xbf16> to vector<12x8xbf16>
    %cst_27 = arith.constant dense<0.000000e+00> : vector<64x8xf32>
    %46 = tpu.matmul %43, %45, %cst_27 {dimension_numbers = #tpu.dot_dimension_numbers<[1], [0], [0], [1], [0, 0, 1, 1], [], []>} : vector<64x12xbf16>, vector<12x8xbf16>, vector<64x8xf32> -> vector<64x8xf32>
    %47 = arith.addf %38, %46 : vector<64x8xf32>
    %c8_i32 = arith.constant 8 : i32
    %48 = tpu.dynamic_rotate %36 by %c8_i32 dim 0 : vector<64x12xf32>, i32 -> vector<64x12xf32>
    %c0_28 = arith.constant 0 : index
    %c1 = arith.constant 1 : index
    %49 = vector.load %arg21[%c0_28, %c1] : memref<64x9xf32, #tpu.memory_space<vmem>>, vector<64x1xf32>
    %50 = vector.broadcast %49 : vector<64x1xf32> to vector<64x12xf32>
    %51 = arith.mulf %48, %50 : vector<64x12xf32>
    %52 = arith.truncf %51 : vector<64x12xf32> to vector<64x12xbf16>
    %c1_29 = arith.constant 1 : index
    %c0_30 = arith.constant 0 : index
    %c0_31 = arith.constant 0 : index
    %53 = vector.load %arg7[%c1_29, %c0_30, %c0_31] : memref<9x12x8xbf16, #tpu.memory_space<vmem>>, vector<1x12x8xbf16>
    %54 = vector.shape_cast %53 : vector<1x12x8xbf16> to vector<12x8xbf16>
    %cst_32 = arith.constant dense<0.000000e+00> : vector<64x8xf32>
    %55 = tpu.matmul %52, %54, %cst_32 {dimension_numbers = #tpu.dot_dimension_numbers<[1], [0], [0], [1], [0, 0, 1, 1], [], []>} : vector<64x12xbf16>, vector<12x8xbf16>, vector<64x8xf32> -> vector<64x8xf32>
    %56 = arith.addf %47, %55 : vector<64x8xf32>
    %c7_i32 = arith.constant 7 : i32
    %57 = tpu.dynamic_rotate %36 by %c7_i32 dim 0 : vector<64x12xf32>, i32 -> vector<64x12xf32>
    %c0_33 = arith.constant 0 : index
    %c2 = arith.constant 2 : index
    %58 = vector.load %arg21[%c0_33, %c2] : memref<64x9xf32, #tpu.memory_space<vmem>>, vector<64x1xf32>
    %59 = vector.broadcast %58 : vector<64x1xf32> to vector<64x12xf32>
    %60 = arith.mulf %57, %59 : vector<64x12xf32>
    %61 = arith.truncf %60 : vector<64x12xf32> to vector<64x12xbf16>
    %c2_34 = arith.constant 2 : index
    %c0_35 = arith.constant 0 : index
    %c0_36 = arith.constant 0 : index
    %62 = vector.load %arg7[%c2_34, %c0_35, %c0_36] : memref<9x12x8xbf16, #tpu.memory_space<vmem>>, vector<1x12x8xbf16>
    %63 = vector.shape_cast %62 : vector<1x12x8xbf16> to vector<12x8xbf16>
    %cst_37 = arith.constant dense<0.000000e+00> : vector<64x8xf32>
    %64 = tpu.matmul %61, %63, %cst_37 {dimension_numbers = #tpu.dot_dimension_numbers<[1], [0], [0], [1], [0, 0, 1, 1], [], []>} : vector<64x12xbf16>, vector<12x8xbf16>, vector<64x8xf32> -> vector<64x8xf32>
    %65 = arith.addf %56, %64 : vector<64x8xf32>
    %c1_i32 = arith.constant 1 : i32
    %66 = tpu.dynamic_rotate %36 by %c1_i32 dim 0 : vector<64x12xf32>, i32 -> vector<64x12xf32>
    %c0_38 = arith.constant 0 : index
    %c3 = arith.constant 3 : index
    %67 = vector.load %arg21[%c0_38, %c3] : memref<64x9xf32, #tpu.memory_space<vmem>>, vector<64x1xf32>
    %68 = vector.broadcast %67 : vector<64x1xf32> to vector<64x12xf32>
    %69 = arith.mulf %66, %68 : vector<64x12xf32>
    %70 = arith.truncf %69 : vector<64x12xf32> to vector<64x12xbf16>
    %c3_39 = arith.constant 3 : index
    %c0_40 = arith.constant 0 : index
    %c0_41 = arith.constant 0 : index
    %71 = vector.load %arg7[%c3_39, %c0_40, %c0_41] : memref<9x12x8xbf16, #tpu.memory_space<vmem>>, vector<1x12x8xbf16>
    %72 = vector.shape_cast %71 : vector<1x12x8xbf16> to vector<12x8xbf16>
    %cst_42 = arith.constant dense<0.000000e+00> : vector<64x8xf32>
    %73 = tpu.matmul %70, %72, %cst_42 {dimension_numbers = #tpu.dot_dimension_numbers<[1], [0], [0], [1], [0, 0, 1, 1], [], []>} : vector<64x12xbf16>, vector<12x8xbf16>, vector<64x8xf32> -> vector<64x8xf32>
    %74 = arith.addf %65, %73 : vector<64x8xf32>
    %c0_43 = arith.constant 0 : index
    %c4 = arith.constant 4 : index
    %75 = vector.load %arg21[%c0_43, %c4] : memref<64x9xf32, #tpu.memory_space<vmem>>, vector<64x1xf32>
    %76 = vector.broadcast %75 : vector<64x1xf32> to vector<64x12xf32>
    %77 = arith.mulf %36, %76 : vector<64x12xf32>
    %78 = arith.truncf %77 : vector<64x12xf32> to vector<64x12xbf16>
    %c4_44 = arith.constant 4 : index
    %c0_45 = arith.constant 0 : index
    %c0_46 = arith.constant 0 : index
    %79 = vector.load %arg7[%c4_44, %c0_45, %c0_46] : memref<9x12x8xbf16, #tpu.memory_space<vmem>>, vector<1x12x8xbf16>
    %80 = vector.shape_cast %79 : vector<1x12x8xbf16> to vector<12x8xbf16>
    %cst_47 = arith.constant dense<0.000000e+00> : vector<64x8xf32>
    %81 = tpu.matmul %78, %80, %cst_47 {dimension_numbers = #tpu.dot_dimension_numbers<[1], [0], [0], [1], [0, 0, 1, 1], [], []>} : vector<64x12xbf16>, vector<12x8xbf16>, vector<64x8xf32> -> vector<64x8xf32>
    %82 = arith.addf %74, %81 : vector<64x8xf32>
    %c63_i32 = arith.constant 63 : i32
    %83 = tpu.dynamic_rotate %36 by %c63_i32 dim 0 : vector<64x12xf32>, i32 -> vector<64x12xf32>
    %c0_48 = arith.constant 0 : index
    %c5 = arith.constant 5 : index
    %84 = vector.load %arg21[%c0_48, %c5] : memref<64x9xf32, #tpu.memory_space<vmem>>, vector<64x1xf32>
    %85 = vector.broadcast %84 : vector<64x1xf32> to vector<64x12xf32>
    %86 = arith.mulf %83, %85 : vector<64x12xf32>
    %87 = arith.truncf %86 : vector<64x12xf32> to vector<64x12xbf16>
    %c5_49 = arith.constant 5 : index
    %c0_50 = arith.constant 0 : index
    %c0_51 = arith.constant 0 : index
    %88 = vector.load %arg7[%c5_49, %c0_50, %c0_51] : memref<9x12x8xbf16, #tpu.memory_space<vmem>>, vector<1x12x8xbf16>
    %89 = vector.shape_cast %88 : vector<1x12x8xbf16> to vector<12x8xbf16>
    %cst_52 = arith.constant dense<0.000000e+00> : vector<64x8xf32>
    %90 = tpu.matmul %87, %89, %cst_52 {dimension_numbers = #tpu.dot_dimension_numbers<[1], [0], [0], [1], [0, 0, 1, 1], [], []>} : vector<64x12xbf16>, vector<12x8xbf16>, vector<64x8xf32> -> vector<64x8xf32>
    %91 = arith.addf %82, %90 : vector<64x8xf32>
    %c57_i32 = arith.constant 57 : i32
    %92 = tpu.dynamic_rotate %36 by %c57_i32 dim 0 : vector<64x12xf32>, i32 -> vector<64x12xf32>
    %c0_53 = arith.constant 0 : index
    %c6 = arith.constant 6 : index
    %93 = vector.load %arg21[%c0_53, %c6] : memref<64x9xf32, #tpu.memory_space<vmem>>, vector<64x1xf32>
    %94 = vector.broadcast %93 : vector<64x1xf32> to vector<64x12xf32>
    %95 = arith.mulf %92, %94 : vector<64x12xf32>
    %96 = arith.truncf %95 : vector<64x12xf32> to vector<64x12xbf16>
    %c6_54 = arith.constant 6 : index
    %c0_55 = arith.constant 0 : index
    %c0_56 = arith.constant 0 : index
    %97 = vector.load %arg7[%c6_54, %c0_55, %c0_56] : memref<9x12x8xbf16, #tpu.memory_space<vmem>>, vector<1x12x8xbf16>
    %98 = vector.shape_cast %97 : vector<1x12x8xbf16> to vector<12x8xbf16>
    %cst_57 = arith.constant dense<0.000000e+00> : vector<64x8xf32>
    %99 = tpu.matmul %96, %98, %cst_57 {dimension_numbers = #tpu.dot_dimension_numbers<[1], [0], [0], [1], [0, 0, 1, 1], [], []>} : vector<64x12xbf16>, vector<12x8xbf16>, vector<64x8xf32> -> vector<64x8xf32>
    %100 = arith.addf %91, %99 : vector<64x8xf32>
    %c56_i32 = arith.constant 56 : i32
    %101 = tpu.dynamic_rotate %36 by %c56_i32 dim 0 : vector<64x12xf32>, i32 -> vector<64x12xf32>
    %c0_58 = arith.constant 0 : index
    %c7 = arith.constant 7 : index
    %102 = vector.load %arg21[%c0_58, %c7] : memref<64x9xf32, #tpu.memory_space<vmem>>, vector<64x1xf32>
    %103 = vector.broadcast %102 : vector<64x1xf32> to vector<64x12xf32>
    %104 = arith.mulf %101, %103 : vector<64x12xf32>
    %105 = arith.truncf %104 : vector<64x12xf32> to vector<64x12xbf16>
    %c7_59 = arith.constant 7 : index
    %c0_60 = arith.constant 0 : index
    %c0_61 = arith.constant 0 : index
    %106 = vector.load %arg7[%c7_59, %c0_60, %c0_61] : memref<9x12x8xbf16, #tpu.memory_space<vmem>>, vector<1x12x8xbf16>
    %107 = vector.shape_cast %106 : vector<1x12x8xbf16> to vector<12x8xbf16>
    %cst_62 = arith.constant dense<0.000000e+00> : vector<64x8xf32>
    %108 = tpu.matmul %105, %107, %cst_62 {dimension_numbers = #tpu.dot_dimension_numbers<[1], [0], [0], [1], [0, 0, 1, 1], [], []>} : vector<64x12xbf16>, vector<12x8xbf16>, vector<64x8xf32> -> vector<64x8xf32>
    %109 = arith.addf %100, %108 : vector<64x8xf32>
    %c55_i32 = arith.constant 55 : i32
    %110 = tpu.dynamic_rotate %36 by %c55_i32 dim 0 : vector<64x12xf32>, i32 -> vector<64x12xf32>
    %c0_63 = arith.constant 0 : index
    %c8 = arith.constant 8 : index
    %111 = vector.load %arg21[%c0_63, %c8] : memref<64x9xf32, #tpu.memory_space<vmem>>, vector<64x1xf32>
    %112 = vector.broadcast %111 : vector<64x1xf32> to vector<64x12xf32>
    %113 = arith.mulf %110, %112 : vector<64x12xf32>
    %114 = arith.truncf %113 : vector<64x12xf32> to vector<64x12xbf16>
    %c8_64 = arith.constant 8 : index
    %c0_65 = arith.constant 0 : index
    %c0_66 = arith.constant 0 : index
    %115 = vector.load %arg7[%c8_64, %c0_65, %c0_66] : memref<9x12x8xbf16, #tpu.memory_space<vmem>>, vector<1x12x8xbf16>
    %116 = vector.shape_cast %115 : vector<1x12x8xbf16> to vector<12x8xbf16>
    %cst_67 = arith.constant dense<0.000000e+00> : vector<64x8xf32>
    %117 = tpu.matmul %114, %116, %cst_67 {dimension_numbers = #tpu.dot_dimension_numbers<[1], [0], [0], [1], [0, 0, 1, 1], [], []>} : vector<64x12xbf16>, vector<12x8xbf16>, vector<64x8xf32> -> vector<64x8xf32>
    %118 = arith.addf %109, %117 : vector<64x8xf32>
    %119 = vector.broadcast %37 : vector<1x8xf32> to vector<64x8xf32>
    %120 = arith.addf %118, %119 : vector<64x8xf32>
    %c0_68 = arith.constant 0 : index
    %c0_69 = arith.constant 0 : index
    %c0_70 = arith.constant 0 : index
    %121 = vector.load %arg2[%c0_68, %c0_69, %c0_70] : memref<1x1x16xf32, #tpu.memory_space<vmem>>, vector<1x1x16xf32>
    %122 = vector.shape_cast %121 : vector<1x1x16xf32> to vector<1x16xf32>
    %123 = arith.negf %122 : vector<1x16xf32>
    %124 = math.exp %123 : vector<1x16xf32>
    %cst_71 = arith.constant 1.000000e+00 : f32
    %125 = vector.broadcast %cst_71 : f32 to vector<1x16xf32>
    %126 = arith.addf %125, %124 : vector<1x16xf32>
    %127 = arith.divf %125, %126 : vector<1x16xf32>
    %128 = arith.mulf %122, %127 : vector<1x16xf32>
    %129 = arith.truncf %128 : vector<1x16xf32> to vector<1x16xbf16>
    %c0_72 = arith.constant 0 : index
    %c0_73 = arith.constant 0 : index
    %130 = vector.load %arg9[%c0_72, %c0_73] : memref<16x8xbf16, #tpu.memory_space<vmem>>, vector<16x8xbf16>
    %cst_74 = arith.constant dense<0.000000e+00> : vector<1x8xf32>
    %131 = tpu.matmul %129, %130, %cst_74 {dimension_numbers = #tpu.dot_dimension_numbers<[1], [0], [0], [1], [0, 0, 1, 1], [], []>} : vector<1x16xbf16>, vector<16x8xbf16>, vector<1x8xf32> -> vector<1x8xf32>
    %c0_75 = arith.constant 0 : index
    %c0_76 = arith.constant 0 : index
    %132 = vector.load %arg10[%c0_75, %c0_76] : memref<1x8xf32, #tpu.memory_space<vmem>>, vector<1x8xf32>
    %133 = arith.addf %131, %132 : vector<1x8xf32>
    %134 = vector.broadcast %133 : vector<1x8xf32> to vector<64x8xf32>
    %135 = arith.addf %120, %134 : vector<64x8xf32>
    %c0_77 = arith.constant 0 : index
    %c0_78 = arith.constant 0 : index
    %136 = vector.load %arg11[%c0_77, %c0_78] : memref<1x8xf32, #tpu.memory_space<vmem>>, vector<1x8xf32>
    %c0_79 = arith.constant 0 : index
    %c0_80 = arith.constant 0 : index
    %137 = vector.load %arg12[%c0_79, %c0_80] : memref<1x8xf32, #tpu.memory_space<vmem>>, vector<1x8xf32>
    %c0_81 = arith.constant 0 : index
    %c0_82 = arith.constant 0 : index
    %138 = vector.load %arg13[%c0_81, %c0_82] : memref<8x2xf32, #tpu.memory_space<vmem>>, vector<8x2xf32>
    %c0_83 = arith.constant 0 : index
    %c0_84 = arith.constant 0 : index
    %139 = vector.load %arg14[%c0_83, %c0_84] : memref<2x8xf32, #tpu.memory_space<vmem>>, vector<2x8xf32>
    %cst_85 = arith.constant dense<0.000000e+00> : vector<8xf32>
    %140 = vector.multi_reduction <add>, %135, %cst_85 [0] : vector<64x8xf32> to vector<8xf32>
    %141 = vector.shape_cast %140 : vector<8xf32> to vector<1x8xf32>
    %cst_86 = arith.constant dense<0.000000e+00> : vector<1x2xf32>
    %142 = tpu.matmul %141, %138, %cst_86 {dimension_numbers = #tpu.dot_dimension_numbers<[1], [0], [0], [1], [0, 0, 1, 1], [], []>} : vector<1x8xf32>, vector<8x2xf32>, vector<1x2xf32> -> vector<1x2xf32>
    %143 = arith.mulf %135, %135 : vector<64x8xf32>
    %cst_87 = arith.constant dense<0.000000e+00> : vector<8xf32>
    %144 = vector.multi_reduction <add>, %143, %cst_87 [0] : vector<64x8xf32> to vector<8xf32>
    %145 = vector.shape_cast %144 : vector<8xf32> to vector<1x8xf32>
    %cst_88 = arith.constant dense<0.000000e+00> : vector<1x2xf32>
    %146 = tpu.matmul %145, %138, %cst_88 {dimension_numbers = #tpu.dot_dimension_numbers<[1], [0], [0], [1], [0, 0, 1, 1], [], []>} : vector<1x8xf32>, vector<8x2xf32>, vector<1x2xf32> -> vector<1x2xf32>
    %cst_89 = arith.constant 3.906250e-03 : f32
    %147 = vector.broadcast %cst_89 : f32 to vector<1x2xf32>
    %148 = arith.mulf %142, %147 : vector<1x2xf32>
    %cst_90 = arith.constant 3.906250e-03 : f32
    %149 = vector.broadcast %cst_90 : f32 to vector<1x2xf32>
    %150 = arith.mulf %146, %149 : vector<1x2xf32>
    %151 = arith.mulf %148, %148 : vector<1x2xf32>
    %152 = arith.subf %150, %151 : vector<1x2xf32>
    %cst_91 = arith.constant 9.99999974E-6 : f32
    %153 = vector.broadcast %cst_91 : f32 to vector<1x2xf32>
    %154 = arith.addf %152, %153 : vector<1x2xf32>
    %155 = math.rsqrt %154 : vector<1x2xf32>
    %cst_92 = arith.constant dense<0.000000e+00> : vector<1x8xf32>
    %156 = tpu.matmul %148, %139, %cst_92 {dimension_numbers = #tpu.dot_dimension_numbers<[1], [0], [0], [1], [0, 0, 1, 1], [], []>} : vector<1x2xf32>, vector<2x8xf32>, vector<1x8xf32> -> vector<1x8xf32>
    %cst_93 = arith.constant dense<0.000000e+00> : vector<1x8xf32>
    %157 = tpu.matmul %155, %139, %cst_93 {dimension_numbers = #tpu.dot_dimension_numbers<[1], [0], [0], [1], [0, 0, 1, 1], [], []>} : vector<1x2xf32>, vector<2x8xf32>, vector<1x8xf32> -> vector<1x8xf32>
    %158 = vector.broadcast %156 : vector<1x8xf32> to vector<64x8xf32>
    %159 = arith.subf %135, %158 : vector<64x8xf32>
    %160 = arith.mulf %157, %136 : vector<1x8xf32>
    %161 = vector.broadcast %160 : vector<1x8xf32> to vector<64x8xf32>
    %162 = arith.mulf %159, %161 : vector<64x8xf32>
    %163 = vector.broadcast %137 : vector<1x8xf32> to vector<64x8xf32>
    %164 = arith.addf %162, %163 : vector<64x8xf32>
    %165 = arith.negf %164 : vector<64x8xf32>
    %166 = math.exp %165 : vector<64x8xf32>
    %cst_94 = arith.constant 1.000000e+00 : f32
    %167 = vector.broadcast %cst_94 : f32 to vector<64x8xf32>
    %168 = arith.addf %167, %166 : vector<64x8xf32>
    %169 = arith.divf %167, %168 : vector<64x8xf32>
    %170 = arith.mulf %164, %169 : vector<64x8xf32>
    %c0_95 = arith.constant 0 : index
    %c0_96 = arith.constant 0 : index
    %171 = vector.load %arg16[%c0_95, %c0_96] : memref<1x8xf32, #tpu.memory_space<vmem>>, vector<1x8xf32>
    %cst_97 = arith.constant 0.000000e+00 : f32
    %172 = vector.broadcast %cst_97 : f32 to vector<64x8xf32>
    %c9_i32_98 = arith.constant 9 : i32
    %173 = tpu.dynamic_rotate %170 by %c9_i32_98 dim 0 : vector<64x8xf32>, i32 -> vector<64x8xf32>
    %c0_99 = arith.constant 0 : index
    %c0_100 = arith.constant 0 : index
    %174 = vector.load %arg21[%c0_99, %c0_100] : memref<64x9xf32, #tpu.memory_space<vmem>>, vector<64x1xf32>
    %175 = vector.broadcast %174 : vector<64x1xf32> to vector<64x8xf32>
    %176 = arith.mulf %173, %175 : vector<64x8xf32>
    %177 = arith.truncf %176 : vector<64x8xf32> to vector<64x8xbf16>
    %c0_101 = arith.constant 0 : index
    %c0_102 = arith.constant 0 : index
    %c0_103 = arith.constant 0 : index
    %178 = vector.load %arg15[%c0_101, %c0_102, %c0_103] : memref<9x8x8xbf16, #tpu.memory_space<vmem>>, vector<1x8x8xbf16>
    %179 = vector.shape_cast %178 : vector<1x8x8xbf16> to vector<8x8xbf16>
    %cst_104 = arith.constant dense<0.000000e+00> : vector<64x8xf32>
    %180 = tpu.matmul %177, %179, %cst_104 {dimension_numbers = #tpu.dot_dimension_numbers<[1], [0], [0], [1], [0, 0, 1, 1], [], []>} : vector<64x8xbf16>, vector<8x8xbf16>, vector<64x8xf32> -> vector<64x8xf32>
    %181 = arith.addf %172, %180 : vector<64x8xf32>
    %c8_i32_105 = arith.constant 8 : i32
    %182 = tpu.dynamic_rotate %170 by %c8_i32_105 dim 0 : vector<64x8xf32>, i32 -> vector<64x8xf32>
    %c0_106 = arith.constant 0 : index
    %c1_107 = arith.constant 1 : index
    %183 = vector.load %arg21[%c0_106, %c1_107] : memref<64x9xf32, #tpu.memory_space<vmem>>, vector<64x1xf32>
    %184 = vector.broadcast %183 : vector<64x1xf32> to vector<64x8xf32>
    %185 = arith.mulf %182, %184 : vector<64x8xf32>
    %186 = arith.truncf %185 : vector<64x8xf32> to vector<64x8xbf16>
    %c1_108 = arith.constant 1 : index
    %c0_109 = arith.constant 0 : index
    %c0_110 = arith.constant 0 : index
    %187 = vector.load %arg15[%c1_108, %c0_109, %c0_110] : memref<9x8x8xbf16, #tpu.memory_space<vmem>>, vector<1x8x8xbf16>
    %188 = vector.shape_cast %187 : vector<1x8x8xbf16> to vector<8x8xbf16>
    %cst_111 = arith.constant dense<0.000000e+00> : vector<64x8xf32>
    %189 = tpu.matmul %186, %188, %cst_111 {dimension_numbers = #tpu.dot_dimension_numbers<[1], [0], [0], [1], [0, 0, 1, 1], [], []>} : vector<64x8xbf16>, vector<8x8xbf16>, vector<64x8xf32> -> vector<64x8xf32>
    %190 = arith.addf %181, %189 : vector<64x8xf32>
    %c7_i32_112 = arith.constant 7 : i32
    %191 = tpu.dynamic_rotate %170 by %c7_i32_112 dim 0 : vector<64x8xf32>, i32 -> vector<64x8xf32>
    %c0_113 = arith.constant 0 : index
    %c2_114 = arith.constant 2 : index
    %192 = vector.load %arg21[%c0_113, %c2_114] : memref<64x9xf32, #tpu.memory_space<vmem>>, vector<64x1xf32>
    %193 = vector.broadcast %192 : vector<64x1xf32> to vector<64x8xf32>
    %194 = arith.mulf %191, %193 : vector<64x8xf32>
    %195 = arith.truncf %194 : vector<64x8xf32> to vector<64x8xbf16>
    %c2_115 = arith.constant 2 : index
    %c0_116 = arith.constant 0 : index
    %c0_117 = arith.constant 0 : index
    %196 = vector.load %arg15[%c2_115, %c0_116, %c0_117] : memref<9x8x8xbf16, #tpu.memory_space<vmem>>, vector<1x8x8xbf16>
    %197 = vector.shape_cast %196 : vector<1x8x8xbf16> to vector<8x8xbf16>
    %cst_118 = arith.constant dense<0.000000e+00> : vector<64x8xf32>
    %198 = tpu.matmul %195, %197, %cst_118 {dimension_numbers = #tpu.dot_dimension_numbers<[1], [0], [0], [1], [0, 0, 1, 1], [], []>} : vector<64x8xbf16>, vector<8x8xbf16>, vector<64x8xf32> -> vector<64x8xf32>
    %199 = arith.addf %190, %198 : vector<64x8xf32>
    %c1_i32_119 = arith.constant 1 : i32
    %200 = tpu.dynamic_rotate %170 by %c1_i32_119 dim 0 : vector<64x8xf32>, i32 -> vector<64x8xf32>
    %c0_120 = arith.constant 0 : index
    %c3_121 = arith.constant 3 : index
    %201 = vector.load %arg21[%c0_120, %c3_121] : memref<64x9xf32, #tpu.memory_space<vmem>>, vector<64x1xf32>
    %202 = vector.broadcast %201 : vector<64x1xf32> to vector<64x8xf32>
    %203 = arith.mulf %200, %202 : vector<64x8xf32>
    %204 = arith.truncf %203 : vector<64x8xf32> to vector<64x8xbf16>
    %c3_122 = arith.constant 3 : index
    %c0_123 = arith.constant 0 : index
    %c0_124 = arith.constant 0 : index
    %205 = vector.load %arg15[%c3_122, %c0_123, %c0_124] : memref<9x8x8xbf16, #tpu.memory_space<vmem>>, vector<1x8x8xbf16>
    %206 = vector.shape_cast %205 : vector<1x8x8xbf16> to vector<8x8xbf16>
    %cst_125 = arith.constant dense<0.000000e+00> : vector<64x8xf32>
    %207 = tpu.matmul %204, %206, %cst_125 {dimension_numbers = #tpu.dot_dimension_numbers<[1], [0], [0], [1], [0, 0, 1, 1], [], []>} : vector<64x8xbf16>, vector<8x8xbf16>, vector<64x8xf32> -> vector<64x8xf32>
    %208 = arith.addf %199, %207 : vector<64x8xf32>
    %c0_126 = arith.constant 0 : index
    %c4_127 = arith.constant 4 : index
    %209 = vector.load %arg21[%c0_126, %c4_127] : memref<64x9xf32, #tpu.memory_space<vmem>>, vector<64x1xf32>
    %210 = vector.broadcast %209 : vector<64x1xf32> to vector<64x8xf32>
    %211 = arith.mulf %170, %210 : vector<64x8xf32>
    %212 = arith.truncf %211 : vector<64x8xf32> to vector<64x8xbf16>
    %c4_128 = arith.constant 4 : index
    %c0_129 = arith.constant 0 : index
    %c0_130 = arith.constant 0 : index
    %213 = vector.load %arg15[%c4_128, %c0_129, %c0_130] : memref<9x8x8xbf16, #tpu.memory_space<vmem>>, vector<1x8x8xbf16>
    %214 = vector.shape_cast %213 : vector<1x8x8xbf16> to vector<8x8xbf16>
    %cst_131 = arith.constant dense<0.000000e+00> : vector<64x8xf32>
    %215 = tpu.matmul %212, %214, %cst_131 {dimension_numbers = #tpu.dot_dimension_numbers<[1], [0], [0], [1], [0, 0, 1, 1], [], []>} : vector<64x8xbf16>, vector<8x8xbf16>, vector<64x8xf32> -> vector<64x8xf32>
    %216 = arith.addf %208, %215 : vector<64x8xf32>
    %c63_i32_132 = arith.constant 63 : i32
    %217 = tpu.dynamic_rotate %170 by %c63_i32_132 dim 0 : vector<64x8xf32>, i32 -> vector<64x8xf32>
    %c0_133 = arith.constant 0 : index
    %c5_134 = arith.constant 5 : index
    %218 = vector.load %arg21[%c0_133, %c5_134] : memref<64x9xf32, #tpu.memory_space<vmem>>, vector<64x1xf32>
    %219 = vector.broadcast %218 : vector<64x1xf32> to vector<64x8xf32>
    %220 = arith.mulf %217, %219 : vector<64x8xf32>
    %221 = arith.truncf %220 : vector<64x8xf32> to vector<64x8xbf16>
    %c5_135 = arith.constant 5 : index
    %c0_136 = arith.constant 0 : index
    %c0_137 = arith.constant 0 : index
    %222 = vector.load %arg15[%c5_135, %c0_136, %c0_137] : memref<9x8x8xbf16, #tpu.memory_space<vmem>>, vector<1x8x8xbf16>
    %223 = vector.shape_cast %222 : vector<1x8x8xbf16> to vector<8x8xbf16>
    %cst_138 = arith.constant dense<0.000000e+00> : vector<64x8xf32>
    %224 = tpu.matmul %221, %223, %cst_138 {dimension_numbers = #tpu.dot_dimension_numbers<[1], [0], [0], [1], [0, 0, 1, 1], [], []>} : vector<64x8xbf16>, vector<8x8xbf16>, vector<64x8xf32> -> vector<64x8xf32>
    %225 = arith.addf %216, %224 : vector<64x8xf32>
    %c57_i32_139 = arith.constant 57 : i32
    %226 = tpu.dynamic_rotate %170 by %c57_i32_139 dim 0 : vector<64x8xf32>, i32 -> vector<64x8xf32>
    %c0_140 = arith.constant 0 : index
    %c6_141 = arith.constant 6 : index
    %227 = vector.load %arg21[%c0_140, %c6_141] : memref<64x9xf32, #tpu.memory_space<vmem>>, vector<64x1xf32>
    %228 = vector.broadcast %227 : vector<64x1xf32> to vector<64x8xf32>
    %229 = arith.mulf %226, %228 : vector<64x8xf32>
    %230 = arith.truncf %229 : vector<64x8xf32> to vector<64x8xbf16>
    %c6_142 = arith.constant 6 : index
    %c0_143 = arith.constant 0 : index
    %c0_144 = arith.constant 0 : index
    %231 = vector.load %arg15[%c6_142, %c0_143, %c0_144] : memref<9x8x8xbf16, #tpu.memory_space<vmem>>, vector<1x8x8xbf16>
    %232 = vector.shape_cast %231 : vector<1x8x8xbf16> to vector<8x8xbf16>
    %cst_145 = arith.constant dense<0.000000e+00> : vector<64x8xf32>
    %233 = tpu.matmul %230, %232, %cst_145 {dimension_numbers = #tpu.dot_dimension_numbers<[1], [0], [0], [1], [0, 0, 1, 1], [], []>} : vector<64x8xbf16>, vector<8x8xbf16>, vector<64x8xf32> -> vector<64x8xf32>
    %234 = arith.addf %225, %233 : vector<64x8xf32>
    %c56_i32_146 = arith.constant 56 : i32
    %235 = tpu.dynamic_rotate %170 by %c56_i32_146 dim 0 : vector<64x8xf32>, i32 -> vector<64x8xf32>
    %c0_147 = arith.constant 0 : index
    %c7_148 = arith.constant 7 : index
    %236 = vector.load %arg21[%c0_147, %c7_148] : memref<64x9xf32, #tpu.memory_space<vmem>>, vector<64x1xf32>
    %237 = vector.broadcast %236 : vector<64x1xf32> to vector<64x8xf32>
    %238 = arith.mulf %235, %237 : vector<64x8xf32>
    %239 = arith.truncf %238 : vector<64x8xf32> to vector<64x8xbf16>
    %c7_149 = arith.constant 7 : index
    %c0_150 = arith.constant 0 : index
    %c0_151 = arith.constant 0 : index
    %240 = vector.load %arg15[%c7_149, %c0_150, %c0_151] : memref<9x8x8xbf16, #tpu.memory_space<vmem>>, vector<1x8x8xbf16>
    %241 = vector.shape_cast %240 : vector<1x8x8xbf16> to vector<8x8xbf16>
    %cst_152 = arith.constant dense<0.000000e+00> : vector<64x8xf32>
    %242 = tpu.matmul %239, %241, %cst_152 {dimension_numbers = #tpu.dot_dimension_numbers<[1], [0], [0], [1], [0, 0, 1, 1], [], []>} : vector<64x8xbf16>, vector<8x8xbf16>, vector<64x8xf32> -> vector<64x8xf32>
    %243 = arith.addf %234, %242 : vector<64x8xf32>
    %c55_i32_153 = arith.constant 55 : i32
    %244 = tpu.dynamic_rotate %170 by %c55_i32_153 dim 0 : vector<64x8xf32>, i32 -> vector<64x8xf32>
    %c0_154 = arith.constant 0 : index
    %c8_155 = arith.constant 8 : index
    %245 = vector.load %arg21[%c0_154, %c8_155] : memref<64x9xf32, #tpu.memory_space<vmem>>, vector<64x1xf32>
    %246 = vector.broadcast %245 : vector<64x1xf32> to vector<64x8xf32>
    %247 = arith.mulf %244, %246 : vector<64x8xf32>
    %248 = arith.truncf %247 : vector<64x8xf32> to vector<64x8xbf16>
    %c8_156 = arith.constant 8 : index
    %c0_157 = arith.constant 0 : index
    %c0_158 = arith.constant 0 : index
    %249 = vector.load %arg15[%c8_156, %c0_157, %c0_158] : memref<9x8x8xbf16, #tpu.memory_space<vmem>>, vector<1x8x8xbf16>
    %250 = vector.shape_cast %249 : vector<1x8x8xbf16> to vector<8x8xbf16>
    %cst_159 = arith.constant dense<0.000000e+00> : vector<64x8xf32>
    %251 = tpu.matmul %248, %250, %cst_159 {dimension_numbers = #tpu.dot_dimension_numbers<[1], [0], [0], [1], [0, 0, 1, 1], [], []>} : vector<64x8xbf16>, vector<8x8xbf16>, vector<64x8xf32> -> vector<64x8xf32>
    %252 = arith.addf %243, %251 : vector<64x8xf32>
    %253 = vector.broadcast %171 : vector<1x8xf32> to vector<64x8xf32>
    %254 = arith.addf %252, %253 : vector<64x8xf32>
    %255 = arith.truncf %1 : vector<64x12xf32> to vector<64x12xbf16>
    %c0_160 = arith.constant 0 : index
    %c0_161 = arith.constant 0 : index
    %256 = vector.load %arg17[%c0_160, %c0_161] : memref<12x8xbf16, #tpu.memory_space<vmem>>, vector<12x8xbf16>
    %cst_162 = arith.constant dense<0.000000e+00> : vector<64x8xf32>
    %257 = tpu.matmul %255, %256, %cst_162 {dimension_numbers = #tpu.dot_dimension_numbers<[1], [0], [0], [1], [0, 0, 1, 1], [], []>} : vector<64x12xbf16>, vector<12x8xbf16>, vector<64x8xf32> -> vector<64x8xf32>
    %c0_163 = arith.constant 0 : index
    %c0_164 = arith.constant 0 : index
    %258 = vector.load %arg18[%c0_163, %c0_164] : memref<1x8xf32, #tpu.memory_space<vmem>>, vector<1x8xf32>
    %259 = vector.broadcast %258 : vector<1x8xf32> to vector<64x8xf32>
    %260 = arith.addf %257, %259 : vector<64x8xf32>
    %261 = arith.addf %254, %260 : vector<64x8xf32>
    %262 = arith.truncf %261 : vector<64x8xf32> to vector<64x8xbf16>
    %c0_165 = arith.constant 0 : index
    %c0_166 = arith.constant 0 : index
    %263 = vector.load %arg19[%c0_165, %c0_166] : memref<8x24xbf16, #tpu.memory_space<vmem>>, vector<8x24xbf16>
    %cst_167 = arith.constant dense<0.000000e+00> : vector<64x24xf32>
    %264 = tpu.matmul %262, %263, %cst_167 {dimension_numbers = #tpu.dot_dimension_numbers<[1], [0], [0], [1], [0, 0, 1, 1], [], []>} : vector<64x8xbf16>, vector<8x24xbf16>, vector<64x24xf32> -> vector<64x24xf32>
    %c0_168 = arith.constant 0 : index
    %c0_169 = arith.constant 0 : index
    %265 = vector.load %arg20[%c0_168, %c0_169] : memref<1x24xf32, #tpu.memory_space<vmem>>, vector<1x24xf32>
    %266 = vector.broadcast %265 : vector<1x24xf32> to vector<64x24xf32>
    %267 = arith.addf %264, %266 : vector<64x24xf32>
    %268 = vector.extract_strided_slice %267 {offsets = [0, 0], sizes = [64, 4], strides = [1, 1]} : vector<64x24xf32> to vector<64x4xf32>
    %cst_170 = arith.constant 0.353553385 : f32
    %269 = vector.broadcast %cst_170 : f32 to vector<64x4xf32>
    %270 = arith.mulf %268, %269 : vector<64x4xf32>
    %271 = arith.truncf %270 : vector<64x4xf32> to vector<64x4xbf16>
    %272 = vector.extract_strided_slice %267 {offsets = [0, 4], sizes = [64, 4], strides = [1, 1]} : vector<64x24xf32> to vector<64x4xf32>
    %273 = arith.truncf %272 : vector<64x4xf32> to vector<64x4xbf16>
    %274 = vector.extract_strided_slice %267 {offsets = [0, 8], sizes = [64, 4], strides = [1, 1]} : vector<64x24xf32> to vector<64x4xf32>
    %275 = arith.truncf %274 : vector<64x4xf32> to vector<64x4xbf16>
    %cst_171 = arith.constant dense<0.000000e+00> : vector<64x64xf32>
    %276 = tpu.matmul %271, %273, %cst_171 {dimension_numbers = #tpu.dot_dimension_numbers<[1], [1], [0], [0], [0, 0, 1, 0], [], []>} : vector<64x4xbf16>, vector<64x4xbf16>, vector<64x64xf32> -> vector<64x64xf32>
    %cst_172 = arith.constant dense<0xFF800000> : vector<64xf32>
    %277 = vector.multi_reduction <maximumf>, %276, %cst_172 [1] : vector<64x64xf32> to vector<64xf32>
    %278 = vector.shape_cast %277 : vector<64xf32> to vector<64x1xf32>
    %279 = vector.broadcast %278 : vector<64x1xf32> to vector<64x64xf32>
    %280 = arith.subf %276, %279 : vector<64x64xf32>
    %281 = math.exp %280 : vector<64x64xf32>
    %cst_173 = arith.constant dense<0.000000e+00> : vector<64xf32>
    %282 = vector.multi_reduction <add>, %281, %cst_173 [1] : vector<64x64xf32> to vector<64xf32>
    %283 = vector.shape_cast %282 : vector<64xf32> to vector<64x1xf32>
    %284 = tpu.reciprocal %283 {approx = true} : vector<64x1xf32> -> vector<64x1xf32>
    %285 = vector.broadcast %284 : vector<64x1xf32> to vector<64x64xf32>
    %286 = arith.mulf %281, %285 : vector<64x64xf32>
    %287 = arith.truncf %286 : vector<64x64xf32> to vector<64x64xbf16>
    %cst_174 = arith.constant dense<0.000000e+00> : vector<64x4xf32>
    %288 = tpu.matmul %287, %275, %cst_174 {dimension_numbers = #tpu.dot_dimension_numbers<[1], [0], [0], [1], [0, 0, 1, 1], [], []>} : vector<64x64xbf16>, vector<64x4xbf16>, vector<64x4xf32> -> vector<64x4xf32>
    %289 = vector.extract_strided_slice %261 {offsets = [0, 0], sizes = [64, 4], strides = [1, 1]} : vector<64x8xf32> to vector<64x4xf32>
    %290 = arith.addf %288, %289 : vector<64x4xf32>
    %c0_175 = arith.constant 0 : index
    %c0_176 = arith.constant 0 : index
    %c0_177 = arith.constant 0 : index
    %291 = vector.load %arg22[%c0_175, %c0_176, %c0_177] : memref<1x64x8xf32, #tpu.memory_space<vmem>>, vector<1x64x4xf32>
    %292 = vector.shape_cast %291 : vector<1x64x4xf32> to vector<64x4xf32>
    %293 = vector.shape_cast %290 : vector<64x4xf32> to vector<1x64x4xf32>
    tpu.vector_store %arg22[%c0_175, %c0_176, %c0_177], %293 {strides = array<i32>} : memref<1x64x8xf32, #tpu.memory_space<vmem>>, vector<1x64x4xf32>,
    %294 = vector.extract_strided_slice %267 {offsets = [0, 12], sizes = [64, 4], strides = [1, 1]} : vector<64x24xf32> to vector<64x4xf32>
    %cst_178 = arith.constant 0.353553385 : f32
    %295 = vector.broadcast %cst_178 : f32 to vector<64x4xf32>
    %296 = arith.mulf %294, %295 : vector<64x4xf32>
    %297 = arith.truncf %296 : vector<64x4xf32> to vector<64x4xbf16>
    %298 = vector.extract_strided_slice %267 {offsets = [0, 16], sizes = [64, 4], strides = [1, 1]} : vector<64x24xf32> to vector<64x4xf32>
    %299 = arith.truncf %298 : vector<64x4xf32> to vector<64x4xbf16>
    %300 = vector.extract_strided_slice %267 {offsets = [0, 20], sizes = [64, 4], strides = [1, 1]} : vector<64x24xf32> to vector<64x4xf32>
    %301 = arith.truncf %300 : vector<64x4xf32> to vector<64x4xbf16>
    %cst_179 = arith.constant dense<0.000000e+00> : vector<64x64xf32>
    %302 = tpu.matmul %297, %299, %cst_179 {dimension_numbers = #tpu.dot_dimension_numbers<[1], [1], [0], [0], [0, 0, 1, 0], [], []>} : vector<64x4xbf16>, vector<64x4xbf16>, vector<64x64xf32> -> vector<64x64xf32>
    %cst_180 = arith.constant dense<0xFF800000> : vector<64xf32>
    %303 = vector.multi_reduction <maximumf>, %302, %cst_180 [1] : vector<64x64xf32> to vector<64xf32>
    %304 = vector.shape_cast %303 : vector<64xf32> to vector<64x1xf32>
    %305 = vector.broadcast %304 : vector<64x1xf32> to vector<64x64xf32>
    %306 = arith.subf %302, %305 : vector<64x64xf32>
    %307 = math.exp %306 : vector<64x64xf32>
    %cst_181 = arith.constant dense<0.000000e+00> : vector<64xf32>
    %308 = vector.multi_reduction <add>, %307, %cst_181 [1] : vector<64x64xf32> to vector<64xf32>
    %309 = vector.shape_cast %308 : vector<64xf32> to vector<64x1xf32>
    %310 = tpu.reciprocal %309 {approx = true} : vector<64x1xf32> -> vector<64x1xf32>
    %311 = vector.broadcast %310 : vector<64x1xf32> to vector<64x64xf32>
    %312 = arith.mulf %307, %311 : vector<64x64xf32>
    %313 = arith.truncf %312 : vector<64x64xf32> to vector<64x64xbf16>
    %cst_182 = arith.constant dense<0.000000e+00> : vector<64x4xf32>
    %314 = tpu.matmul %313, %301, %cst_182 {dimension_numbers = #tpu.dot_dimension_numbers<[1], [0], [0], [1], [0, 0, 1, 1], [], []>} : vector<64x64xbf16>, vector<64x4xbf16>, vector<64x4xf32> -> vector<64x4xf32>
    %315 = vector.extract_strided_slice %261 {offsets = [0, 4], sizes = [64, 4], strides = [1, 1]} : vector<64x8xf32> to vector<64x4xf32>
    %316 = arith.addf %314, %315 : vector<64x4xf32>
    %c0_183 = arith.constant 0 : index
    %c0_184 = arith.constant 0 : index
    %c4_185 = arith.constant 4 : index
    %317 = vector.load %arg22[%c0_183, %c0_184, %c4_185] : memref<1x64x8xf32, #tpu.memory_space<vmem>>, vector<1x64x4xf32>
    %318 = vector.shape_cast %317 : vector<1x64x4xf32> to vector<64x4xf32>
    %319 = vector.shape_cast %316 : vector<64x4xf32> to vector<1x64x4xf32>
    tpu.vector_store %arg22[%c0_183, %c0_184, %c4_185], %319 {strides = array<i32>} : memref<1x64x8xf32, #tpu.memory_space<vmem>>, vector<1x64x4xf32>,
    return
  }
  func.func @transform_0(%arg0: i32) -> (i32, i32, i32) {
    %c0_i32 = arith.constant 0 : i32
    %c0_i32_0 = arith.constant 0 : i32
    %c0_i32_1 = arith.constant 0 : i32
    return %arg0, %c0_i32, %c0_i32_0 : i32, i32, i32
  }
  func.func @transform_1(%arg0: i32) -> (i32, i32, i32) {
    %c0_i32 = arith.constant 0 : i32
    %c0_i32_0 = arith.constant 0 : i32
    %c0_i32_1 = arith.constant 0 : i32
    return %arg0, %c0_i32, %c0_i32_0 : i32, i32, i32
  }
  func.func @transform_2(%arg0: i32) -> (i32, i32) {
    %c0_i32 = arith.constant 0 : i32
    %c0_i32_0 = arith.constant 0 : i32
    %c0_i32_1 = arith.constant 0 : i32
    return %c0_i32, %c0_i32_0 : i32, i32
  }
  func.func @transform_3(%arg0: i32) -> (i32, i32) {
    %c0_i32 = arith.constant 0 : i32
    %c0_i32_0 = arith.constant 0 : i32
    %c0_i32_1 = arith.constant 0 : i32
    return %c0_i32, %c0_i32_0 : i32, i32
  }
  func.func @transform_4(%arg0: i32) -> (i32, i32) {
    %c0_i32 = arith.constant 0 : i32
    %c0_i32_0 = arith.constant 0 : i32
    %c0_i32_1 = arith.constant 0 : i32
    return %c0_i32, %c0_i32_0 : i32, i32
  }
  func.func @transform_5(%arg0: i32) -> (i32, i32) {
    %c0_i32 = arith.constant 0 : i32
    %c0_i32_0 = arith.constant 0 : i32
    %c0_i32_1 = arith.constant 0 : i32
    return %c0_i32, %c0_i32_0 : i32, i32
  }
  func.func @transform_6(%arg0: i32) -> (i32, i32, i32) {
    %c0_i32 = arith.constant 0 : i32
    %c0_i32_0 = arith.constant 0 : i32
    %c0_i32_1 = arith.constant 0 : i32
    %c0_i32_2 = arith.constant 0 : i32
    return %c0_i32, %c0_i32_0, %c0_i32_1 : i32, i32, i32
  }
  func.func @transform_7(%arg0: i32) -> (i32, i32) {
    %c0_i32 = arith.constant 0 : i32
    %c0_i32_0 = arith.constant 0 : i32
    %c0_i32_1 = arith.constant 0 : i32
    return %c0_i32, %c0_i32_0 : i32, i32
  }
  func.func @transform_8(%arg0: i32) -> (i32, i32) {
    %c0_i32 = arith.constant 0 : i32
    %c0_i32_0 = arith.constant 0 : i32
    %c0_i32_1 = arith.constant 0 : i32
    return %c0_i32, %c0_i32_0 : i32, i32
  }
  func.func @transform_9(%arg0: i32) -> (i32, i32) {
    %c0_i32 = arith.constant 0 : i32
    %c0_i32_0 = arith.constant 0 : i32
    %c0_i32_1 = arith.constant 0 : i32
    return %c0_i32, %c0_i32_0 : i32, i32
  }
  func.func @transform_10(%arg0: i32) -> (i32, i32) {
    %c0_i32 = arith.constant 0 : i32
    %c0_i32_0 = arith.constant 0 : i32
    %c0_i32_1 = arith.constant 0 : i32
    return %c0_i32, %c0_i32_0 : i32, i32
  }
  func.func @transform_11(%arg0: i32) -> (i32, i32) {
    %c0_i32 = arith.constant 0 : i32
    %c0_i32_0 = arith.constant 0 : i32
    %c0_i32_1 = arith.constant 0 : i32
    return %c0_i32, %c0_i32_0 : i32, i32
  }
  func.func @transform_12(%arg0: i32) -> (i32, i32) {
    %c0_i32 = arith.constant 0 : i32
    %c0_i32_0 = arith.constant 0 : i32
    %c0_i32_1 = arith.constant 0 : i32
    return %c0_i32, %c0_i32_0 : i32, i32
  }
  func.func @transform_13(%arg0: i32) -> (i32, i32) {
    %c0_i32 = arith.constant 0 : i32
    %c0_i32_0 = arith.constant 0 : i32
    %c0_i32_1 = arith.constant 0 : i32
    return %c0_i32, %c0_i32_0 : i32, i32
  }
  func.func @transform_14(%arg0: i32) -> (i32, i32, i32) {
    %c0_i32 = arith.constant 0 : i32
    %c0_i32_0 = arith.constant 0 : i32
    %c0_i32_1 = arith.constant 0 : i32
    %c0_i32_2 = arith.constant 0 : i32
    return %c0_i32, %c0_i32_0, %c0_i32_1 : i32, i32, i32
  }
  func.func @transform_15(%arg0: i32) -> (i32, i32) {
    %c0_i32 = arith.constant 0 : i32
    %c0_i32_0 = arith.constant 0 : i32
    %c0_i32_1 = arith.constant 0 : i32
    return %c0_i32, %c0_i32_0 : i32, i32
  }
  func.func @transform_16(%arg0: i32) -> (i32, i32) {
    %c0_i32 = arith.constant 0 : i32
    %c0_i32_0 = arith.constant 0 : i32
    %c0_i32_1 = arith.constant 0 : i32
    return %c0_i32, %c0_i32_0 : i32, i32
  }
  func.func @transform_17(%arg0: i32) -> (i32, i32) {
    %c0_i32 = arith.constant 0 : i32
    %c0_i32_0 = arith.constant 0 : i32
    %c0_i32_1 = arith.constant 0 : i32
    return %c0_i32, %c0_i32_0 : i32, i32
  }
  func.func @transform_18(%arg0: i32) -> (i32, i32) {
    %c0_i32 = arith.constant 0 : i32
    %c0_i32_0 = arith.constant 0 : i32
    %c0_i32_1 = arith.constant 0 : i32
    return %c0_i32, %c0_i32_0 : i32, i32
  }
  func.func @transform_19(%arg0: i32) -> (i32, i32) {
    %c0_i32 = arith.constant 0 : i32
    %c0_i32_0 = arith.constant 0 : i32
    %c0_i32_1 = arith.constant 0 : i32
    return %c0_i32, %c0_i32_0 : i32, i32
  }
  func.func @transform_20(%arg0: i32) -> (i32, i32) {
    %c0_i32 = arith.constant 0 : i32
    %c0_i32_0 = arith.constant 0 : i32
    %c0_i32_1 = arith.constant 0 : i32
    return %c0_i32, %c0_i32_0 : i32, i32
  }
  func.func @transform_21(%arg0: i32) -> (i32, i32, i32) {
    %c0_i32 = arith.constant 0 : i32
    %c0_i32_0 = arith.constant 0 : i32
    %c0_i32_1 = arith.constant 0 : i32
    return %arg0, %c0_i32, %c0_i32_0 : i32, i32, i32
  }
}

</mosaic_0001>

<llo_original>
// kernel: tpu_custom_call.1
$region0: #{tpu_custom_call.1}
  #allocation0 [shape = 'u32[]', space=smem, size = 0x4, offset = 0x4, fixed_abs, tag = 'smem constant byte address 0x4 - core index']
  #allocation1 [shape = 'u32[144,128]{1,0:T(1,128)}', space=vmem, size = 0x12000, scoped, tag = 'internal scratch']
  %s0 = inlined_call_operand.vmem [shape: f32[2,64,12], index: 0, kind: input, shape index: {}]
  %s1 = inlined_call_operand.vmem [shape: f32[2,1,16], index: 1, kind: input, shape index: {}]
  %s2 = inlined_call_operand.vmem [shape: f32[1,12], index: 2, kind: input, shape index: {}]
  %s3 = inlined_call_operand.vmem [shape: f32[1,12], index: 3, kind: input, shape index: {}]
  %s4 = inlined_call_operand.vmem [shape: f32[12,2], index: 4, kind: input, shape index: {}]
  %s5 = inlined_call_operand.vmem [shape: f32[2,12], index: 5, kind: input, shape index: {}]
  %s6 = inlined_call_operand.vmem [shape: bf16[9,12,8], index: 6, kind: input, shape index: {}]
  %s7 = inlined_call_operand.vmem [shape: f32[1,8], index: 7, kind: input, shape index: {}]
  %s8 = inlined_call_operand.vmem [shape: bf16[16,8], index: 8, kind: input, shape index: {}]
  %s9 = inlined_call_operand.vmem [shape: f32[1,8], index: 9, kind: input, shape index: {}]
  %s10 = inlined_call_operand.vmem [shape: f32[1,8], index: 10, kind: input, shape index: {}]
  %s11 = inlined_call_operand.vmem [shape: f32[1,8], index: 11, kind: input, shape index: {}]
  %s12 = inlined_call_operand.vmem [shape: f32[8,2], index: 12, kind: input, shape index: {}]
  %s13 = inlined_call_operand.vmem [shape: f32[2,8], index: 13, kind: input, shape index: {}]
  %s14 = inlined_call_operand.vmem [shape: bf16[9,8,8], index: 14, kind: input, shape index: {}]
  %s15 = inlined_call_operand.vmem [shape: f32[1,8], index: 15, kind: input, shape index: {}]
  %s16 = inlined_call_operand.vmem [shape: bf16[12,8], index: 16, kind: input, shape index: {}]
  %s17 = inlined_call_operand.vmem [shape: f32[1,8], index: 17, kind: input, shape index: {}]
  %s18 = inlined_call_operand.vmem [shape: bf16[8,24], index: 18, kind: input, shape index: {}]
  %s19 = inlined_call_operand.vmem [shape: f32[1,24], index: 19, kind: input, shape index: {}]
  %s20 = inlined_call_operand.vmem [shape: f32[64,9], index: 20, kind: input, shape index: {}]
  %s21 = inlined_call_operand.vmem [shape: f32[2,64,8], index: 21, kind: output, shape index: {}]
  %s22 = sld [smem:[#allocation0]]
  $region117: #{tpu_custom_call.1} parent=0
    _
  %s24 = ssub.s32 1, %s22
  %s25 = scalar_select 0, %s24, %s22
  loop: start=0, step=1, limit=4
  $region2: #{tpu_custom_call.1} parent=0 // loop_pre_header
    _
  $region3: #{tpu_custom_call.1} parent=0 // loop_header
    %s27 = sphi 0, %s31
    %p28 = scmp.ge.s32.totalorder %s27, 4
    %s37 = sphi 0, %s39
    %s40 = sphi 0, %s37
    %s41 = sphi 0, %s40
    %s57 = sphi 0, %s41
    %s63 = sphi 0, %s65
    %s66 = sphi 0, %s63
    %s67 = sphi 0, %s66
    %s83 = sphi 0, %s67
    %s87 = sphi 0, %s87
    %s89 = sphi 0, %s87
    %s90 = sphi 0, %s89
    %s104 = sphi 0, %s90
    %s108 = sphi 0, %s108
    %s110 = sphi 0, %s108
    %s111 = sphi 0, %s110
    %s125 = sphi 0, %s111
    %s129 = sphi 0, %s129
    %s131 = sphi 0, %s129
    %s132 = sphi 0, %s131
    %s146 = sphi 0, %s132
    %s150 = sphi 0, %s150
    %s152 = sphi 0, %s150
    %s153 = sphi 0, %s152
    %s167 = sphi 0, %s153
    %s171 = sphi 0, %s171
    %s173 = sphi 0, %s171
    %s174 = sphi 0, %s173
    %s188 = sphi 0, %s174
    %s192 = sphi 0, %s192
    %s194 = sphi 0, %s192
    %s195 = sphi 0, %s194
    %s209 = sphi 0, %s195
    %s213 = sphi 0, %s213
    %s215 = sphi 0, %s213
    %s216 = sphi 0, %s215
    %s230 = sphi 0, %s216
    %s234 = sphi 0, %s234
    %s236 = sphi 0, %s234
    %s237 = sphi 0, %s236
    %s251 = sphi 0, %s237
    %s255 = sphi 0, %s255
    %s257 = sphi 0, %s255
    %s258 = sphi 0, %s257
    %s272 = sphi 0, %s258
    %s276 = sphi 0, %s276
    %s278 = sphi 0, %s276
    %s279 = sphi 0, %s278
    %s293 = sphi 0, %s279
    %s297 = sphi 0, %s297
    %s299 = sphi 0, %s297
    %s300 = sphi 0, %s299
    %s314 = sphi 0, %s300
    %s318 = sphi 0, %s318
    %s320 = sphi 0, %s318
    %s321 = sphi 0, %s320
    %s335 = sphi 0, %s321
    %s339 = sphi 0, %s339
    %s341 = sphi 0, %s339
    %s342 = sphi 0, %s341
    %s356 = sphi 0, %s342
    %s360 = sphi 0, %s360
    %s362 = sphi 0, %s360
    %s363 = sphi 0, %s362
    %s377 = sphi 0, %s363
    %s381 = sphi 0, %s381
    %s383 = sphi 0, %s381
    %s384 = sphi 0, %s383
    %s398 = sphi 0, %s384
    %s402 = sphi 0, %s402
    %s404 = sphi 0, %s402
    %s405 = sphi 0, %s404
    %s419 = sphi 0, %s405
    %s423 = sphi 0, %s423
    %s425 = sphi 0, %s423
    %s426 = sphi 0, %s425
    %s440 = sphi 0, %s426
    %s444 = sphi 0, %s444
    %s446 = sphi 0, %s444
    %s447 = sphi 0, %s446
    %s461 = sphi 0, %s447
    %s465 = sphi 0, %s465
    %s467 = sphi 0, %s465
    %s468 = sphi 0, %s467
    %s482 = sphi 0, %s468
    %s488 = sphi 0, %s490
    %s491 = sphi 0, %s488
    %s492 = sphi 0, %s491
    %s508 = sphi 0, %s492
  $region4: #{tpu_custom_call.1} parent=0 // loop_header_branch
    %30 = sbr.rel (%p28) target = $region8
  $region5: #{tpu_custom_call.1} parent=0 // loop_body
    %s32 = ssub.s32 %s27, 1
    %s33 = ssub.s32 %s27, 2
    %s34 = sadd.s32 %s27, 1
    %s35 = ssub.s32 %s27, %s34
    %p36 = scmp.eq.s32.totalorder %s35, 0
    %s38 = sadd.s32 %s37, 1
    %s39 = scalar_select %p36, %s37, %s38
    %p42 = pneg %p36
    %p43 = scmp.eq.s32.totalorder %s27, 1
    %p44 = por %p42, %p43
    %p45 = scmp.ne.s32.totalorder %s37, %s40
    %p46 = scmp.eq.s32.totalorder %s27, 0
    %p47 = por %p45, %p46
    %p48 = scmp.ne.s32.totalorder %s37, %s40
    %p49 = scmp.eq.s32.totalorder %s32, 1
    %p50 = por %p48, %p49
    %p51 = scmp.ne.s32.totalorder %s40, %s41
    %p52 = scmp.eq.s32.totalorder %s32, 0
    %p53 = por %p51, %p52
    %p54 = scmp.ne.s32.totalorder %s40, %s41
    %p55 = scmp.eq.s32.totalorder %s33, 1
    %p56 = por %p54, %p55
    %p58 = scmp.ne.s32.totalorder %s41, %s57
    %p59 = scmp.eq.s32.totalorder %s33, 0
    %p60 = por %p58, %p59
    %s61 = ssub.s32 %s27, %s34
    %p62 = scmp.eq.s32.totalorder %s61, 0
    %s64 = sadd.s32 %s63, 1
    %s65 = scalar_select %p62, %s63, %s64
    %p68 = pneg %p62
    %p69 = scmp.eq.s32.totalorder %s27, 1
    %p70 = por %p68, %p69
    %p71 = scmp.ne.s32.totalorder %s63, %s66
    %p72 = scmp.eq.s32.totalorder %s27, 0
    %p73 = por %p71, %p72
    %p74 = scmp.ne.s32.totalorder %s63, %s66
    %p75 = scmp.eq.s32.totalorder %s32, 1
    %p76 = por %p74, %p75
    %p77 = scmp.ne.s32.totalorder %s66, %s67
    %p78 = scmp.eq.s32.totalorder %s32, 0
    %p79 = por %p77, %p78
    %p80 = scmp.ne.s32.totalorder %s66, %s67
    %p81 = scmp.eq.s32.totalorder %s33, 1
    %p82 = por %p80, %p81
    %p84 = scmp.ne.s32.totalorder %s67, %s83
    %p85 = scmp.eq.s32.totalorder %s33, 0
    %p86 = por %p84, %p85
    %s88 = sadd.s32 %s87, 1
    %p91 = scmp.eq.s32.totalorder %s27, 1
    %p92 = scmp.ne.s32.totalorder %s87, %s89
    %p93 = scmp.eq.s32.totalorder %s27, 0
    %p94 = por %p92, %p93
    %p95 = scmp.ne.s32.totalorder %s87, %s89
    %p96 = scmp.eq.s32.totalorder %s32, 1
    %p97 = por %p95, %p96
    %p98 = scmp.ne.s32.totalorder %s89, %s90
    %p99 = scmp.eq.s32.totalorder %s32, 0
    %p100 = por %p98, %p99
    %p101 = scmp.ne.s32.totalorder %s89, %s90
    %p102 = scmp.eq.s32.totalorder %s33, 1
    %p103 = por %p101, %p102
    %p105 = scmp.ne.s32.totalorder %s90, %s104
    %p106 = scmp.eq.s32.totalorder %s33, 0
    %p107 = por %p105, %p106
    %s109 = sadd.s32 %s108, 1
    %p112 = scmp.eq.s32.totalorder %s27, 1
    %p113 = scmp.ne.s32.totalorder %s108, %s110
    %p114 = scmp.eq.s32.totalorder %s27, 0
    %p115 = por %p113, %p114
    %p116 = scmp.ne.s32.totalorder %s108, %s110
    %p117 = scmp.eq.s32.totalorder %s32, 1
    %p118 = por %p116, %p117
    %p119 = scmp.ne.s32.totalorder %s110, %s111
    %p120 = scmp.eq.s32.totalorder %s32, 0
    %p121 = por %p119, %p120
    %p122 = scmp.ne.s32.totalorder %s110, %s111
    %p123 = scmp.eq.s32.totalorder %s33, 1
    %p124 = por %p122, %p123
    %p126 = scmp.ne.s32.totalorder %s111, %s125
    %p127 = scmp.eq.s32.totalorder %s33, 0
    %p128 = por %p126, %p127
    %s130 = sadd.s32 %s129, 1
    %p133 = scmp.eq.s32.totalorder %s27, 1
    %p134 = scmp.ne.s32.totalorder %s129, %s131
    %p135 = scmp.eq.s32.totalorder %s27, 0
    %p136 = por %p134, %p135
    %p137 = scmp.ne.s32.totalorder %s129, %s131
    %p138 = scmp.eq.s32.totalorder %s32, 1
    %p139 = por %p137, %p138
    %p140 = scmp.ne.s32.totalorder %s131, %s132
    %p141 = scmp.eq.s32.totalorder %s32, 0
    %p142 = por %p140, %p141
    %p143 = scmp.ne.s32.totalorder %s131, %s132
    %p144 = scmp.eq.s32.totalorder %s33, 1
    %p145 = por %p143, %p144
    %p147 = scmp.ne.s32.totalorder %s132, %s146
    %p148 = scmp.eq.s32.totalorder %s33, 0
    %p149 = por %p147, %p148
    %s151 = sadd.s32 %s150, 1
    %p154 = scmp.eq.s32.totalorder %s27, 1
    %p155 = scmp.ne.s32.totalorder %s150, %s152
    %p156 = scmp.eq.s32.totalorder %s27, 0
    %p157 = por %p155, %p156
    %p158 = scmp.ne.s32.totalorder %s150, %s152
    %p159 = scmp.eq.s32.totalorder %s32, 1
    %p160 = por %p158, %p159
    %p161 = scmp.ne.s32.totalorder %s152, %s153
    %p162 = scmp.eq.s32.totalorder %s32, 0
    %p163 = por %p161, %p162
    %p164 = scmp.ne.s32.totalorder %s152, %s153
    %p165 = scmp.eq.s32.totalorder %s33, 1
    %p166 = por %p164, %p165
    %p168 = scmp.ne.s32.totalorder %s153, %s167
    %p169 = scmp.eq.s32.totalorder %s33, 0
    %p170 = por %p168, %p169
    %s172 = sadd.s32 %s171, 1
    %p175 = scmp.eq.s32.totalorder %s27, 1
    %p176 = scmp.ne.s32.totalorder %s171, %s173
    %p177 = scmp.eq.s32.totalorder %s27, 0
    %p178 = por %p176, %p177
    %p179 = scmp.ne.s32.totalorder %s171, %s173
    %p180 = scmp.eq.s32.totalorder %s32, 1
    %p181 = por %p179, %p180
    %p182 = scmp.ne.s32.totalorder %s173, %s174
    %p183 = scmp.eq.s32.totalorder %s32, 0
    %p184 = por %p182, %p183
    %p185 = scmp.ne.s32.totalorder %s173, %s174
    %p186 = scmp.eq.s32.totalorder %s33, 1
    %p187 = por %p185, %p186
    %p189 = scmp.ne.s32.totalorder %s174, %s188
    %p190 = scmp.eq.s32.totalorder %s33, 0
    %p191 = por %p189, %p190
    %s193 = sadd.s32 %s192, 1
    %p196 = scmp.eq.s32.totalorder %s27, 1
    %p197 = scmp.ne.s32.totalorder %s192, %s194
    %p198 = scmp.eq.s32.totalorder %s27, 0
    %p199 = por %p197, %p198
    %p200 = scmp.ne.s32.totalorder %s192, %s194
    %p201 = scmp.eq.s32.totalorder %s32, 1
    %p202 = por %p200, %p201
    %p203 = scmp.ne.s32.totalorder %s194, %s195
    %p204 = scmp.eq.s32.totalorder %s32, 0
    %p205 = por %p203, %p204
    %p206 = scmp.ne.s32.totalorder %s194, %s195
    %p207 = scmp.eq.s32.totalorder %s33, 1
    %p208 = por %p206, %p207
    %p210 = scmp.ne.s32.totalorder %s195, %s209
    %p211 = scmp.eq.s32.totalorder %s33, 0
    %p212 = por %p210, %p211
    %s214 = sadd.s32 %s213, 1
    %p217 = scmp.eq.s32.totalorder %s27, 1
    %p218 = scmp.ne.s32.totalorder %s213, %s215
    %p219 = scmp.eq.s32.totalorder %s27, 0
    %p220 = por %p218, %p219
    %p221 = scmp.ne.s32.totalorder %s213, %s215
    %p222 = scmp.eq.s32.totalorder %s32, 1
    %p223 = por %p221, %p222
    %p224 = scmp.ne.s32.totalorder %s215, %s216
    %p225 = scmp.eq.s32.totalorder %s32, 0
    %p226 = por %p224, %p225
    %p227 = scmp.ne.s32.totalorder %s215, %s216
    %p228 = scmp.eq.s32.totalorder %s33, 1
    %p229 = por %p227, %p228
    %p231 = scmp.ne.s32.totalorder %s216, %s230
    %p232 = scmp.eq.s32.totalorder %s33, 0
    %p233 = por %p231, %p232
    %s235 = sadd.s32 %s234, 1
    %p238 = scmp.eq.s32.totalorder %s27, 1
    %p239 = scmp.ne.s32.totalorder %s234, %s236
    %p240 = scmp.eq.s32.totalorder %s27, 0
    %p241 = por %p239, %p240
    %p242 = scmp.ne.s32.totalorder %s234, %s236
    %p243 = scmp.eq.s32.totalorder %s32, 1
    %p244 = por %p242, %p243
    %p245 = scmp.ne.s32.totalorder %s236, %s237
    %p246 = scmp.eq.s32.totalorder %s32, 0
    %p247 = por %p245, %p246
    %p248 = scmp.ne.s32.totalorder %s236, %s237
    %p249 = scmp.eq.s32.totalorder %s33, 1
    %p250 = por %p248, %p249
    %p252 = scmp.ne.s32.totalorder %s237, %s251
    %p253 = scmp.eq.s32.totalorder %s33, 0
    %p254 = por %p252, %p253
    %s256 = sadd.s32 %s255, 1
    %p259 = scmp.eq.s32.totalorder %s27, 1
    %p260 = scmp.ne.s32.totalorder %s255, %s257
    %p261 = scmp.eq.s32.totalorder %s27, 0
    %p262 = por %p260, %p261
    %p263 = scmp.ne.s32.totalorder %s255, %s257
    %p264 = scmp.eq.s32.totalorder %s32, 1
    %p265 = por %p263, %p264
    %p266 = scmp.ne.s32.totalorder %s257, %s258
    %p267 = scmp.eq.s32.totalorder %s32, 0
    %p268 = por %p266, %p267
    %p269 = scmp.ne.s32.totalorder %s257, %s258
    %p270 = scmp.eq.s32.totalorder %s33, 1
    %p271 = por %p269, %p270
    %p273 = scmp.ne.s32.totalorder %s258, %s272
    %p274 = scmp.eq.s32.totalorder %s33, 0
    %p275 = por %p273, %p274
    %s277 = sadd.s32 %s276, 1
    %p280 = scmp.eq.s32.totalorder %s27, 1
    %p281 = scmp.ne.s32.totalorder %s276, %s278
    %p282 = scmp.eq.s32.totalorder %s27, 0
    %p283 = por %p281, %p282
    %p284 = scmp.ne.s32.totalorder %s276, %s278
    %p285 = scmp.eq.s32.totalorder %s32, 1
    %p286 = por %p284, %p285
    %p287 = scmp.ne.s32.totalorder %s278, %s279
    %p288 = scmp.eq.s32.totalorder %s32, 0
    %p289 = por %p287, %p288
    %p290 = scmp.ne.s32.totalorder %s278, %s279
    %p291 = scmp.eq.s32.totalorder %s33, 1
    %p292 = por %p290, %p291
    %p294 = scmp.ne.s32.totalorder %s279, %s293
    %p295 = scmp.eq.s32.totalorder %s33, 0
    %p296 = por %p294, %p295
    %s298 = sadd.s32 %s297, 1
    %p301 = scmp.eq.s32.totalorder %s27, 1
    %p302 = scmp.ne.s32.totalorder %s297, %s299
    %p303 = scmp.eq.s32.totalorder %s27, 0
    %p304 = por %p302, %p303
    %p305 = scmp.ne.s32.totalorder %s297, %s299
    %p306 = scmp.eq.s32.totalorder %s32, 1
    %p307 = por %p305, %p306
    %p308 = scmp.ne.s32.totalorder %s299, %s300
    %p309 = scmp.eq.s32.totalorder %s32, 0
    %p310 = por %p308, %p309
    %p311 = scmp.ne.s32.totalorder %s299, %s300
    %p312 = scmp.eq.s32.totalorder %s33, 1
    %p313 = por %p311, %p312
    %p315 = scmp.ne.s32.totalorder %s300, %s314
    %p316 = scmp.eq.s32.totalorder %s33, 0
    %p317 = por %p315, %p316
    %s319 = sadd.s32 %s318, 1
    %p322 = scmp.eq.s32.totalorder %s27, 1
    %p323 = scmp.ne.s32.totalorder %s318, %s320
    %p324 = scmp.eq.s32.totalorder %s27, 0
    %p325 = por %p323, %p324
    %p326 = scmp.ne.s32.totalorder %s318, %s320
    %p327 = scmp.eq.s32.totalorder %s32, 1
    %p328 = por %p326, %p327
    %p329 = scmp.ne.s32.totalorder %s320, %s321
    %p330 = scmp.eq.s32.totalorder %s32, 0
    %p331 = por %p329, %p330
    %p332 = scmp.ne.s32.totalorder %s320, %s321
    %p333 = scmp.eq.s32.totalorder %s33, 1
    %p334 = por %p332, %p333
    %p336 = scmp.ne.s32.totalorder %s321, %s335
    %p337 = scmp.eq.s32.totalorder %s33, 0
    %p338 = por %p336, %p337
    %s340 = sadd.s32 %s339, 1
    %p343 = scmp.eq.s32.totalorder %s27, 1
    %p344 = scmp.ne.s32.totalorder %s339, %s341
    %p345 = scmp.eq.s32.totalorder %s27, 0
    %p346 = por %p344, %p345
    %p347 = scmp.ne.s32.totalorder %s339, %s341
    %p348 = scmp.eq.s32.totalorder %s32, 1
    %p349 = por %p347, %p348
    %p350 = scmp.ne.s32.totalorder %s341, %s342
    %p351 = scmp.eq.s32.totalorder %s32, 0
    %p352 = por %p350, %p351
    %p353 = scmp.ne.s32.totalorder %s341, %s342
    %p354 = scmp.eq.s32.totalorder %s33, 1
    %p355 = por %p353, %p354
    %p357 = scmp.ne.s32.totalorder %s342, %s356
    %p358 = scmp.eq.s32.totalorder %s33, 0
    %p359 = por %p357, %p358
    %s361 = sadd.s32 %s360, 1
    %p364 = scmp.eq.s32.totalorder %s27, 1
    %p365 = scmp.ne.s32.totalorder %s360, %s362
    %p366 = scmp.eq.s32.totalorder %s27, 0
    %p367 = por %p365, %p366
    %p368 = scmp.ne.s32.totalorder %s360, %s362
    %p369 = scmp.eq.s32.totalorder %s32, 1
    %p370 = por %p368, %p369
    %p371 = scmp.ne.s32.totalorder %s362, %s363
    %p372 = scmp.eq.s32.totalorder %s32, 0
    %p373 = por %p371, %p372
    %p374 = scmp.ne.s32.totalorder %s362, %s363
    %p375 = scmp.eq.s32.totalorder %s33, 1
    %p376 = por %p374, %p375
    %p378 = scmp.ne.s32.totalorder %s363, %s377
    %p379 = scmp.eq.s32.totalorder %s33, 0
    %p380 = por %p378, %p379
    %s382 = sadd.s32 %s381, 1
    %p385 = scmp.eq.s32.totalorder %s27, 1
    %p386 = scmp.ne.s32.totalorder %s381, %s383
    %p387 = scmp.eq.s32.totalorder %s27, 0
    %p388 = por %p386, %p387
    %p389 = scmp.ne.s32.totalorder %s381, %s383
    %p390 = scmp.eq.s32.totalorder %s32, 1
    %p391 = por %p389, %p390
    %p392 = scmp.ne.s32.totalorder %s383, %s384
    %p393 = scmp.eq.s32.totalorder %s32, 0
    %p394 = por %p392, %p393
    %p395 = scmp.ne.s32.totalorder %s383, %s384
    %p396 = scmp.eq.s32.totalorder %s33, 1
    %p397 = por %p395, %p396
    %p399 = scmp.ne.s32.totalorder %s384, %s398
    %p400 = scmp.eq.s32.totalorder %s33, 0
    %p401 = por %p399, %p400
    %s403 = sadd.s32 %s402, 1
    %p406 = scmp.eq.s32.totalorder %s27, 1
    %p407 = scmp.ne.s32.totalorder %s402, %s404
    %p408 = scmp.eq.s32.totalorder %s27, 0
    %p409 = por %p407, %p408
    %p410 = scmp.ne.s32.totalorder %s402, %s404
    %p411 = scmp.eq.s32.totalorder %s32, 1
    %p412 = por %p410, %p411
    %p413 = scmp.ne.s32.totalorder %s404, %s405
    %p414 = scmp.eq.s32.totalorder %s32, 0
    %p415 = por %p413, %p414
    %p416 = scmp.ne.s32.totalorder %s404, %s405
    %p417 = scmp.eq.s32.totalorder %s33, 1
    %p418 = por %p416, %p417
    %p420 = scmp.ne.s32.totalorder %s405, %s419
    %p421 = scmp.eq.s32.totalorder %s33, 0
    %p422 = por %p420, %p421
    %s424 = sadd.s32 %s423, 1
    %p427 = scmp.eq.s32.totalorder %s27, 1
    %p428 = scmp.ne.s32.totalorder %s423, %s425
    %p429 = scmp.eq.s32.totalorder %s27, 0
    %p430 = por %p428, %p429
    %p431 = scmp.ne.s32.totalorder %s423, %s425
    %p432 = scmp.eq.s32.totalorder %s32, 1
    %p433 = por %p431, %p432
    %p434 = scmp.ne.s32.totalorder %s425, %s426
    %p435 = scmp.eq.s32.totalorder %s32, 0
    %p436 = por %p434, %p435
    %p437 = scmp.ne.s32.totalorder %s425, %s426
    %p438 = scmp.eq.s32.totalorder %s33, 1
    %p439 = por %p437, %p438
    %p441 = scmp.ne.s32.totalorder %s426, %s440
    %p442 = scmp.eq.s32.totalorder %s33, 0
    %p443 = por %p441, %p442
    %s445 = sadd.s32 %s444, 1
    %p448 = scmp.eq.s32.totalorder %s27, 1
    %p449 = scmp.ne.s32.totalorder %s444, %s446
    %p450 = scmp.eq.s32.totalorder %s27, 0
    %p451 = por %p449, %p450
    %p452 = scmp.ne.s32.totalorder %s444, %s446
    %p453 = scmp.eq.s32.totalorder %s32, 1
    %p454 = por %p452, %p453
    %p455 = scmp.ne.s32.totalorder %s446, %s447
    %p456 = scmp.eq.s32.totalorder %s32, 0
    %p457 = por %p455, %p456
    %p458 = scmp.ne.s32.totalorder %s446, %s447
    %p459 = scmp.eq.s32.totalorder %s33, 1
    %p460 = por %p458, %p459
    %p462 = scmp.ne.s32.totalorder %s447, %s461
    %p463 = scmp.eq.s32.totalorder %s33, 0
    %p464 = por %p462, %p463
    %s466 = sadd.s32 %s465, 1
    %p469 = scmp.eq.s32.totalorder %s27, 1
    %p470 = scmp.ne.s32.totalorder %s465, %s467
    %p471 = scmp.eq.s32.totalorder %s27, 0
    %p472 = por %p470, %p471
    %p473 = scmp.ne.s32.totalorder %s465, %s467
    %p474 = scmp.eq.s32.totalorder %s32, 1
    %p475 = por %p473, %p474
    %p476 = scmp.ne.s32.totalorder %s467, %s468
    %p477 = scmp.eq.s32.totalorder %s32, 0
    %p478 = por %p476, %p477
    %p479 = scmp.ne.s32.totalorder %s467, %s468
    %p480 = scmp.eq.s32.totalorder %s33, 1
    %p481 = por %p479, %p480
    %p483 = scmp.ne.s32.totalorder %s468, %s482
    %p484 = scmp.eq.s32.totalorder %s33, 0
    %p485 = por %p483, %p484
    %s486 = ssub.s32 %s27, %s34
    %p487 = scmp.eq.s32.totalorder %s486, 0
    %s489 = sadd.s32 %s488, 1
    %s490 = scalar_select %p487, %s488, %s489
    %p493 = pneg %p487
    %p494 = scmp.eq.s32.totalorder %s27, 1
    %p495 = por %p493, %p494
    %p496 = scmp.ne.s32.totalorder %s488, %s491
    %p497 = scmp.eq.s32.totalorder %s27, 0
    %p498 = por %p496, %p497
    %p499 = scmp.ne.s32.totalorder %s488, %s491
    %p500 = scmp.eq.s32.totalorder %s32, 1
    %p501 = por %p499, %p500
    %p502 = scmp.ne.s32.totalorder %s491, %s492
    %p503 = scmp.eq.s32.totalorder %s32, 0
    %p504 = por %p502, %p503
    %p505 = scmp.ne.s32.totalorder %s491, %s492
    %p506 = scmp.eq.s32.totalorder %s33, 1
    %p507 = por %p505, %p506
    %p509 = scmp.ne.s32.totalorder %s492, %s508
    %p510 = scmp.eq.s32.totalorder %s33, 0
    %p511 = por %p509, %p510
    %p512 = scmp.le.s32.totalorder 1, %s27
    %p513 = scmp.lt.s32.totalorder %s27, 3
    %p514 = pnand %p512, %p513
    %p515 = pneg %p514
    // Predicated region
    $region9: #{tpu_custom_call.1} parent=5 // pred_check
      _
    $region10: #{tpu_custom_call.1} parent=5 // pred_check_branch
      %517 = sbr.rel (%p514) target = $region12
    $region11: #{tpu_custom_call.1} parent=5 // pred_region
      %s518 = ssub.s32 %s27, 1
      // Predicated region
      $region13: #{tpu_custom_call.1} parent=11 // pred_check
        %p519 = pneg %p100
      $region14: #{tpu_custom_call.1} parent=11 // pred_check_branch
        %521 = sbr.rel (%p519) target = $region16
      $region15: #{tpu_custom_call.1} parent=11 // pred_region
        _
      $region16: #{tpu_custom_call.1} parent=11 // pred_fallthru
        _
      // Predicated region
      $region17: #{tpu_custom_call.1} parent=11 // pred_check
        %p522 = pneg %p121
      $region18: #{tpu_custom_call.1} parent=11 // pred_check_branch
        %524 = sbr.rel (%p522) target = $region20
      $region19: #{tpu_custom_call.1} parent=11 // pred_region
        _
      $region20: #{tpu_custom_call.1} parent=11 // pred_fallthru
        _
      // Predicated region
      $region21: #{tpu_custom_call.1} parent=11 // pred_check
        %p525 = pneg %p142
      $region22: #{tpu_custom_call.1} parent=11 // pred_check_branch
        %527 = sbr.rel (%p525) target = $region24
      $region23: #{tpu_custom_call.1} parent=11 // pred_region
        _
      $region24: #{tpu_custom_call.1} parent=11 // pred_fallthru
        _
      // Predicated region
      $region25: #{tpu_custom_call.1} parent=11 // pred_check
        %p528 = pneg %p163
      $region26: #{tpu_custom_call.1} parent=11 // pred_check_branch
        %530 = sbr.rel (%p528) target = $region28
      $region27: #{tpu_custom_call.1} parent=11 // pred_region
        _
      $region28: #{tpu_custom_call.1} parent=11 // pred_fallthru
        _
      // Predicated region
      $region29: #{tpu_custom_call.1} parent=11 // pred_check
        %p531 = pneg %p184
      $region30: #{tpu_custom_call.1} parent=11 // pred_check_branch
        %533 = sbr.rel (%p531) target = $region32
      $region31: #{tpu_custom_call.1} parent=11 // pred_region
        _
      $region32: #{tpu_custom_call.1} parent=11 // pred_fallthru
        _
      // Predicated region
      $region33: #{tpu_custom_call.1} parent=11 // pred_check
        %p534 = pneg %p205
      $region34: #{tpu_custom_call.1} parent=11 // pred_check_branch
        %536 = sbr.rel (%p534) target = $region36
      $region35: #{tpu_custom_call.1} parent=11 // pred_region
        _
      $region36: #{tpu_custom_call.1} parent=11 // pred_fallthru
        _
      // Predicated region
      $region37: #{tpu_custom_call.1} parent=11 // pred_check
        %p537 = pneg %p226
      $region38: #{tpu_custom_call.1} parent=11 // pred_check_branch
        %539 = sbr.rel (%p537) target = $region40
      $region39: #{tpu_custom_call.1} parent=11 // pred_region
        _
      $region40: #{tpu_custom_call.1} parent=11 // pred_fallthru
        _
      // Predicated region
      $region41: #{tpu_custom_call.1} parent=11 // pred_check
        %p540 = pneg %p247
      $region42: #{tpu_custom_call.1} parent=11 // pred_check_branch
        %542 = sbr.rel (%p540) target = $region44
      $region43: #{tpu_custom_call.1} parent=11 // pred_region
        _
      $region44: #{tpu_custom_call.1} parent=11 // pred_fallthru
        _
      // Predicated region
      $region45: #{tpu_custom_call.1} parent=11 // pred_check
        %p543 = pneg %p268
      $region46: #{tpu_custom_call.1} parent=11 // pred_check_branch
        %545 = sbr.rel (%p543) target = $region48
      $region47: #{tpu_custom_call.1} parent=11 // pred_region
        _
      $region48: #{tpu_custom_call.1} parent=11 // pred_fallthru
        _
      // Predicated region
      $region49: #{tpu_custom_call.1} parent=11 // pred_check
        %p546 = pneg %p289
      $region50: #{tpu_custom_call.1} parent=11 // pred_check_branch
        %548 = sbr.rel (%p546) target = $region52
      $region51: #{tpu_custom_call.1} parent=11 // pred_region
        _
      $region52: #{tpu_custom_call.1} parent=11 // pred_fallthru
        _
      // Predicated region
      $region53: #{tpu_custom_call.1} parent=11 // pred_check
        %p549 = pneg %p310
      $region54: #{tpu_custom_call.1} parent=11 // pred_check_branch
        %551 = sbr.rel (%p549) target = $region56
      $region55: #{tpu_custom_call.1} parent=11 // pred_region
        _
      $region56: #{tpu_custom_call.1} parent=11 // pred_fallthru
        _
      // Predicated region
      $region57: #{tpu_custom_call.1} parent=11 // pred_check
        %p552 = pneg %p331
      $region58: #{tpu_custom_call.1} parent=11 // pred_check_branch
        %554 = sbr.rel (%p552) target = $region60
      $region59: #{tpu_custom_call.1} parent=11 // pred_region
        _
      $region60: #{tpu_custom_call.1} parent=11 // pred_fallthru
        _
      // Predicated region
      $region61: #{tpu_custom_call.1} parent=11 // pred_check
        %p555 = pneg %p352
      $region62: #{tpu_custom_call.1} parent=11 // pred_check_branch
        %557 = sbr.rel (%p555) target = $region64
      $region63: #{tpu_custom_call.1} parent=11 // pred_region
        _
      $region64: #{tpu_custom_call.1} parent=11 // pred_fallthru
        _
      // Predicated region
      $region65: #{tpu_custom_call.1} parent=11 // pred_check
        %p558 = pneg %p373
      $region66: #{tpu_custom_call.1} parent=11 // pred_check_branch
        %560 = sbr.rel (%p558) target = $region68
      $region67: #{tpu_custom_call.1} parent=11 // pred_region
        _
      $region68: #{tpu_custom_call.1} parent=11 // pred_fallthru
        _
      // Predicated region
      $region69: #{tpu_custom_call.1} parent=11 // pred_check
        %p561 = pneg %p394
      $region70: #{tpu_custom_call.1} parent=11 // pred_check_branch
        %563 = sbr.rel (%p561) target = $region72
      $region71: #{tpu_custom_call.1} parent=11 // pred_region
        _
      $region72: #{tpu_custom_call.1} parent=11 // pred_fallthru
        _
      // Predicated region
      $region73: #{tpu_custom_call.1} parent=11 // pred_check
        %p564 = pneg %p415
      $region74: #{tpu_custom_call.1} parent=11 // pred_check_branch
        %566 = sbr.rel (%p564) target = $region76
      $region75: #{tpu_custom_call.1} parent=11 // pred_region
        _
      $region76: #{tpu_custom_call.1} parent=11 // pred_fallthru
        _
      // Predicated region
      $region77: #{tpu_custom_call.1} parent=11 // pred_check
        %p567 = pneg %p436
      $region78: #{tpu_custom_call.1} parent=11 // pred_check_branch
        %569 = sbr.rel (%p567) target = $region80
      $region79: #{tpu_custom_call.1} parent=11 // pred_region
        _
      $region80: #{tpu_custom_call.1} parent=11 // pred_fallthru
        _
      // Predicated region
      $region81: #{tpu_custom_call.1} parent=11 // pred_check
        %p570 = pneg %p457
      $region82: #{tpu_custom_call.1} parent=11 // pred_check_branch
        %572 = sbr.rel (%p570) target = $region84
      $region83: #{tpu_custom_call.1} parent=11 // pred_region
        _
      $region84: #{tpu_custom_call.1} parent=11 // pred_fallthru
        _
      // Predicated region
      $region85: #{tpu_custom_call.1} parent=11 // pred_check
        %p573 = pneg %p478
      $region86: #{tpu_custom_call.1} parent=11 // pred_check_branch
        %575 = sbr.rel (%p573) target = $region88
      $region87: #{tpu_custom_call.1} parent=11 // pred_region
        _
      $region88: #{tpu_custom_call.1} parent=11 // pred_fallthru
        _
    $region12: #{tpu_custom_call.1} parent=5 // pred_fallthru
      _
    %p576 = scmp.lt.s32.totalorder %s27, 2
    // Predicated region
    $region89: #{tpu_custom_call.1} parent=5 // pred_check
      %p577 = pneg %p576
    $region90: #{tpu_custom_call.1} parent=5 // pred_check_branch
      %579 = sbr.rel (%p577) target = $region92
    $region91: #{tpu_custom_call.1} parent=5 // pred_region
      // Predicated region
      $region93: #{tpu_custom_call.1} parent=91 // pred_check
        %p580 = pneg %p47
      $region94: #{tpu_custom_call.1} parent=91 // pred_check_branch
        %582 = sbr.rel (%p580) target = $region96
      $region95: #{tpu_custom_call.1} parent=91 // pred_region
        %p583 = scmp.lt.s32.totalorder %s27, 1
        %s584 = scalar_select %p583, %s27, 1
        %s585 = smul.addr %s584, 8
        %s586 = smul.addr %s585, 8
        %s587 = scalar_lea.vmem %s0, %s586
      $region96: #{tpu_custom_call.1} parent=91 // pred_fallthru
        _
      // Predicated region
      $region97: #{tpu_custom_call.1} parent=91 // pred_check
        %p588 = pneg %p73
      $region98: #{tpu_custom_call.1} parent=91 // pred_check_branch
        %590 = sbr.rel (%p588) target = $region100
      $region99: #{tpu_custom_call.1} parent=91 // pred_region
        %p591 = scmp.lt.s32.totalorder %s27, 1
        %s592 = scalar_select %p591, %s27, 1
        %s593 = scalar_lea.vmem %s1, %s592
      $region100: #{tpu_custom_call.1} parent=91 // pred_fallthru
        _
    $region92: #{tpu_custom_call.1} parent=5 // pred_fallthru
      _
    %p594 = scmp.le.s32.totalorder 1, %s27
    %p595 = scmp.lt.s32.totalorder %s27, 3
    %p596 = pnand %p594, %p595
    %p597 = pneg %p596
    // Predicated region
    $region101: #{tpu_custom_call.1} parent=5 // pred_check
      _
    $region102: #{tpu_custom_call.1} parent=5 // pred_check_branch
      %599 = sbr.rel (%p596) target = $region104
    $region103: #{tpu_custom_call.1} parent=5 // pred_region
      %s600 = ssub.s32 %s27, 1
      %p601 = scmp.lt.s32.totalorder %s32, 1
      %s602 = scalar_select %p601, %s32, 1
      %s603 = smul.addr %s602, 8
      %s604 = smul.addr %s603, 8
      %s605 = scalar_lea.vmem %s0, %s604
      %p606 = pneg %p53
      %p607 = pneg %p50
      %p608 = scmp.lt.s32.totalorder %s32, 1
      %s609 = scalar_select %p608, %s32, 1
      %s610 = scalar_lea.vmem %s1, %s609
      %p611 = pneg %p79
      %p612 = pneg %p76
      %p613 = pneg %p100
      %p614 = pneg %p97
      %p615 = pneg %p121
      %p616 = pneg %p118
      %p617 = pneg %p142
      %p618 = pneg %p139
      %p619 = pneg %p163
      %p620 = pneg %p160
      %p621 = pneg %p184
      %p622 = pneg %p181
      %p623 = pneg %p205
      %p624 = pneg %p202
      %p625 = pneg %p226
      %p626 = pneg %p223
      %p627 = pneg %p247
      %p628 = pneg %p244
      %p629 = pneg %p268
      %p630 = pneg %p265
      %p631 = pneg %p289
      %p632 = pneg %p286
      %p633 = pneg %p310
      %p634 = pneg %p307
      %p635 = pneg %p331
      %p636 = pneg %p328
      %p637 = pneg %p352
      %p638 = pneg %p349
      %p639 = pneg %p373
      %p640 = pneg %p370
      %p641 = pneg %p394
      %p642 = pneg %p391
      %p643 = pneg %p415
      %p644 = pneg %p412
      %p645 = pneg %p436
      %p646 = pneg %p433
      %p647 = pneg %p457
      %p648 = pneg %p454
      %p649 = pneg %p478
      %p650 = pneg %p475
      %p651 = pneg %p504
      %p652 = pneg %p501
      %p653 = scmp.lt.s32.totalorder %s32, 1
      %s654 = scalar_select %p653, %s32, 1
      %s655 = smul.addr %s654, 8
      %s656 = smul.addr %s655, 8
      %s657 = scalar_lea.vmem %s21, %s656
      %p658 = scmp.lt.s32.totalorder %s32, 1
      %s659 = scalar_select %p658, %s32, 1
      %s660 = smul.addr %s659, 8
      %s661 = smul.addr %s660, 8
      %s662 = scalar_lea.vmem %s0, %s661
      %p663 = scmp.lt.s32.totalorder %s32, 1
      %s664 = scalar_select %p663, %s32, 1
      %s665 = scalar_lea.vmem %s1, %s664
      %p666 = scmp.lt.s32.totalorder %s32, 1
      %s667 = scalar_select %p666, %s32, 1
      %s668 = smul.addr %s667, 8
      %s669 = smul.addr %s668, 8
      %s670 = scalar_lea.vmem %s21, %s669
      %v672 = vld [vmem:[%s662] sm:$0xff]
      %v673 = vld [vmem:[%s662 + $0x8] sm:$0xff]
      %v674 = vld [vmem:[%s662 + $0x10] sm:$0xff]
      %v675 = vld [vmem:[%s662 + $0x18] sm:$0xff]
      %v676 = vld [vmem:[%s662 + $0x20] sm:$0xff]
      %v677 = vld [vmem:[%s662 + $0x28] sm:$0xff]
      %v678 = vld [vmem:[%s662 + $0x30] sm:$0xff]
      %v679 = vld [vmem:[%s662 + $0x38] sm:$0xff]
      %v680 = vld [vmem:[%s2] sm:$0x1]
      %v681 = vld [vmem:[%s3] sm:$0x1]
      %v682 = vld [vmem:[%s4] sm:$0xff]
      %v683 = vld [vmem:[%s4 + $0x8] sm:$0xf]
      %v684 = vld [vmem:[%s5] sm:$0x3]
      %vm685 = vcmask 97280
      %v686 = vsel %vm685, %v672, 0.0
      %v687 = vsel %vm685, %v673, 0.0
      %v688 = vadd.f32 %v686, %v687
      %v689 = vsel %vm685, %v674, 0.0
      %v690 = vadd.f32 %v688, %v689
      %v691 = vsel %vm685, %v675, 0.0
      %v692 = vadd.f32 %v690, %v691
      %v693 = vsel %vm685, %v676, 0.0
      %v694 = vadd.f32 %v692, %v693
      %v695 = vsel %vm685, %v677, 0.0
      %v696 = vadd.f32 %v694, %v695
      %v697 = vsel %vm685, %v678, 0.0
      %v698 = vadd.f32 %v696, %v697
      %v699 = vsel %vm685, %v679, 0.0
      %v700 = vadd.f32 %v698, %v699
      %v701 = vrot.slane %v700, 4
      %v702 = vadd.f32 %v700, %v701
      %v703 = vrot.slane %v702, 2
      %v704 = vadd.f32 %v702, %v703
      %v705 = vrot.slane %v704, 1
      %v706 = vadd.f32 %v704, %v705
      %v708 = vsel %vm685, %v706, 0
      %vm710 = vcmask 1043456
      %v712 = vsel %vm710, %v683, 0
      %714 = vmatprep.subr.mxu0 0.0
      %715 = vmatpush1.msra.mxu0 %v682
      %716 = vmatprep.subr.mxu0 0.0
      %717 = vmatpush1.msra.mxu0 %v712
      %718 = vmatprep.subr.mxu0 0.0
      %719 = vmatpush1.msra.mxu0 0.0
      %720 = vmatprep.subr.mxu0 0.0
      %721 = vmatpush1.msra.mxu0 0.0
      %722 = vmatprep.subr.mxu0 0.0
      %723 = vmatpush1.msra.mxu0 0.0
      %724 = vmatprep.subr.mxu0 0.0
      %725 = vmatpush1.msra.mxu0 0.0
      %726 = vmatprep.subr.mxu0 0.0
      %727 = vmatpush1.msra.mxu0 0.0
      %728 = vmatprep.subr.mxu0 0.0
      %729 = vmatpush1.msra.mxu0 0.0
      %730 = vmatprep.subr.mxu0 0.0
      %731 = vmatpush1.msra.mxu0 0.0
      %732 = vmatprep.subr.mxu0 0.0
      %733 = vmatpush1.msra.mxu0 0.0
      %734 = vmatprep.subr.mxu0 0.0
      %735 = vmatpush1.msra.mxu0 0.0
      %736 = vmatprep.subr.mxu0 0.0
      %737 = vmatpush1.msra.mxu0 0.0
      %738 = vmatprep.subr.mxu0 0.0
      %739 = vmatpush1.msra.mxu0 0.0
      %740 = vmatprep.subr.mxu0 0.0
      %741 = vmatpush1.msra.mxu0 0.0
      %742 = vmatprep.subr.mxu0 0.0
      %743 = vmatpush1.msra.mxu0 0.0
      %744 = vmatprep.subr.mxu0 0.0
      %745 = vmatpush1.msra.mxu0 0.0
      %746 = vmatprep.subr.mxu0 0.0
      %747 = vmatpush1.msra.mxu0 0.0
      %748 = vmatprep.subr.mxu0 0.0
      %749 = vmatpush1.msra.mxu0 0.0
      %750 = vmatprep.subr.mxu0 0.0
      %751 = vmatpush1.msra.mxu0 0.0
      %752 = vmatprep.subr.mxu0 0.0
      %753 = vmatpush1.msra.mxu0 0.0
      %754 = vmatprep.subr.mxu0 0.0
      %755 = vmatpush1.msra.mxu0 0.0
      %756 = vmatprep.subr.mxu0 0.0
      %757 = vmatpush1.msra.mxu0 0.0
      %758 = vmatprep.subr.mxu0 0.0
      %759 = vmatpush1.msra.mxu0 0.0
      %760 = vmatprep.subr.mxu0 0.0
      %761 = vmatpush1.msra.mxu0 0.0
      %762 = vmatprep.subr.mxu0 0.0
      %763 = vmatpush1.msra.mxu0 0.0
      %764 = vmatprep.subr.mxu0 0.0
      %765 = vmatpush1.msra.mxu0 0.0
      %766 = vmatprep.subr.mxu0 0.0
      %767 = vmatpush1.msra.mxu0 0.0
      %768 = vmatprep.subr.mxu0 0.0
      %769 = vmatpush1.msra.mxu0 0.0
      %770 = vmatprep.subr.mxu0 0.0
      %771 = vmatpush1.msra.mxu0 0.0
      %772 = vmatprep.subr.mxu0 0.0
      %773 = vmatpush1.msra.mxu0 0.0
      %774 = vmatprep.subr.mxu0 0.0
      %775 = vmatpush1.msra.mxu0 0.0
      %776 = vmatprep.subr.mxu0 0.0
      %777 = vmatpush1.msra.mxu0 0.0
      %778 = vmatprep.mubr.f32.mxu0 0.0
      %779 = vmatmul.mubr.f32.gmra.mrb[0].mxu0 %v708
      %v780 = vpop.f32.mrb[0].mxu0
      %v781 = vadd.f32 0.0, %v780
      %v782 = vpop.f32.mrb[0].mxu0
      %783 = vdwg.mxu0
      %v784 = vmul.f32 %v672, %v672
      %v785 = vmul.f32 %v673, %v673
      %v786 = vmul.f32 %v674, %v674
      %v787 = vmul.f32 %v675, %v675
      %v788 = vmul.f32 %v676, %v676
      %v789 = vmul.f32 %v677, %v677
      %v790 = vmul.f32 %v678, %v678
      %v791 = vmul.f32 %v679, %v679
      %v792 = vsel %vm685, %v784, 0.0
      %v793 = vsel %vm685, %v785, 0.0
      %v794 = vadd.f32 %v792, %v793
      %v795 = vsel %vm685, %v786, 0.0
      %v796 = vadd.f32 %v794, %v795
      %v797 = vsel %vm685, %v787, 0.0
      %v798 = vadd.f32 %v796, %v797
      %v799 = vsel %vm685, %v788, 0.0
      %v800 = vadd.f32 %v798, %v799
      %v801 = vsel %vm685, %v789, 0.0
      %v802 = vadd.f32 %v800, %v801
      %v803 = vsel %vm685, %v790, 0.0
      %v804 = vadd.f32 %v802, %v803
      %v805 = vsel %vm685, %v791, 0.0
      %v806 = vadd.f32 %v804, %v805
      %v807 = vrot.slane %v806, 4
      %v808 = vadd.f32 %v806, %v807
      %v809 = vrot.slane %v808, 2
      %v810 = vadd.f32 %v808, %v809
      %v811 = vrot.slane %v810, 1
      %v812 = vadd.f32 %v810, %v811
      %v814 = vsel %vm685, %v812, 0
      %816 = vmatprep.subr.mxu0 0.0
      %817 = vmatpush1.msra.mxu0 %v682
      %818 = vmatprep.subr.mxu0 0.0
      %819 = vmatpush1.msra.mxu0 %v712
      %820 = vmatprep.subr.mxu0 0.0
      %821 = vmatpush1.msra.mxu0 0.0
      %822 = vmatprep.subr.mxu0 0.0
      %823 = vmatpush1.msra.mxu0 0.0
      %824 = vmatprep.subr.mxu0 0.0
      %825 = vmatpush1.msra.mxu0 0.0
      %826 = vmatprep.subr.mxu0 0.0
      %827 = vmatpush1.msra.mxu0 0.0
      %828 = vmatprep.subr.mxu0 0.0
      %829 = vmatpush1.msra.mxu0 0.0
      %830 = vmatprep.subr.mxu0 0.0
      %831 = vmatpush1.msra.mxu0 0.0
      %832 = vmatprep.subr.mxu0 0.0
      %833 = vmatpush1.msra.mxu0 0.0
      %834 = vmatprep.subr.mxu0 0.0
      %835 = vmatpush1.msra.mxu0 0.0
      %836 = vmatprep.subr.mxu0 0.0
      %837 = vmatpush1.msra.mxu0 0.0
      %838 = vmatprep.subr.mxu0 0.0
      %839 = vmatpush1.msra.mxu0 0.0
      %840 = vmatprep.subr.mxu0 0.0
      %841 = vmatpush1.msra.mxu0 0.0
      %842 = vmatprep.subr.mxu0 0.0
      %843 = vmatpush1.msra.mxu0 0.0
      %844 = vmatprep.subr.mxu0 0.0
      %845 = vmatpush1.msra.mxu0 0.0
      %846 = vmatprep.subr.mxu0 0.0
      %847 = vmatpush1.msra.mxu0 0.0
      %848 = vmatprep.subr.mxu0 0.0
      %849 = vmatpush1.msra.mxu0 0.0
      %850 = vmatprep.subr.mxu0 0.0
      %851 = vmatpush1.msra.mxu0 0.0
      %852 = vmatprep.subr.mxu0 0.0
      %853 = vmatpush1.msra.mxu0 0.0
      %854 = vmatprep.subr.mxu0 0.0
      %855 = vmatpush1.msra.mxu0 0.0
      %856 = vmatprep.subr.mxu0 0.0
      %857 = vmatpush1.msra.mxu0 0.0
      %858 = vmatprep.subr.mxu0 0.0
      %859 = vmatpush1.msra.mxu0 0.0
      %860 = vmatprep.subr.mxu0 0.0
      %861 = vmatpush1.msra.mxu0 0.0
      %862 = vmatprep.subr.mxu0 0.0
      %863 = vmatpush1.msra.mxu0 0.0
      %864 = vmatprep.subr.mxu0 0.0
      %865 = vmatpush1.msra.mxu0 0.0
      %866 = vmatprep.subr.mxu0 0.0
      %867 = vmatpush1.msra.mxu0 0.0
      %868 = vmatprep.subr.mxu0 0.0
      %869 = vmatpush1.msra.mxu0 0.0
      %870 = vmatprep.subr.mxu0 0.0
      %871 = vmatpush1.msra.mxu0 0.0
      %872 = vmatprep.subr.mxu0 0.0
      %873 = vmatpush1.msra.mxu0 0.0
      %874 = vmatprep.subr.mxu0 0.0
      %875 = vmatpush1.msra.mxu0 0.0
      %876 = vmatprep.subr.mxu0 0.0
      %877 = vmatpush1.msra.mxu0 0.0
      %878 = vmatprep.subr.mxu0 0.0
      %879 = vmatpush1.msra.mxu0 0.0
      %880 = vmatprep.mubr.f32.mxu0 0.0
      %881 = vmatmul.mubr.f32.gmra.mrb[0].mxu0 %v814
      %v882 = vpop.f32.mrb[0].mxu0
      %v883 = vadd.f32 0.0, %v882
      %v884 = vpop.f32.mrb[0].mxu0
      %885 = vdwg.mxu0
      %v886 = vmul.f32 %v781, 0.0026041667
      %v887 = vmul.f32 %v883, 0.0026041667
      %v888 = vmul.f32 %v886, %v886
      %v889 = vsub.f32 %v887, %v888
      %v890 = vadd.f32 %v889, 1e-05
      %v891 = vrsqrt.pop %v890
      %vm892 = vcmask 15360
      %v894 = vsel %vm892, %v886, 0
      %vm896 = vcmask 1041408
      %v898 = vsel %vm896, %v684, 0
      %900 = vmatprep.subr.mxu0 0.0
      %901 = vmatpush1.msra.mxu0 %v898
      %902 = vmatprep.subr.mxu0 0.0
      %903 = vmatpush1.msra.mxu0 0.0
      %904 = vmatprep.subr.mxu0 0.0
      %905 = vmatpush1.msra.mxu0 0.0
      %906 = vmatprep.subr.mxu0 0.0
      %907 = vmatpush1.msra.mxu0 0.0
      %908 = vmatprep.subr.mxu0 0.0
      %909 = vmatpush1.msra.mxu0 0.0
      %910 = vmatprep.subr.mxu0 0.0
      %911 = vmatpush1.msra.mxu0 0.0
      %912 = vmatprep.subr.mxu0 0.0
      %913 = vmatpush1.msra.mxu0 0.0
      %914 = vmatprep.subr.mxu0 0.0
      %915 = vmatpush1.msra.mxu0 0.0
      %916 = vmatprep.subr.mxu0 0.0
      %917 = vmatpush1.msra.mxu0 0.0
      %918 = vmatprep.subr.mxu0 0.0
      %919 = vmatpush1.msra.mxu0 0.0
      %920 = vmatprep.subr.mxu0 0.0
      %921 = vmatpush1.msra.mxu0 0.0
      %922 = vmatprep.subr.mxu0 0.0
      %923 = vmatpush1.msra.mxu0 0.0
      %924 = vmatprep.subr.mxu0 0.0
      %925 = vmatpush1.msra.mxu0 0.0
      %926 = vmatprep.subr.mxu0 0.0
      %927 = vmatpush1.msra.mxu0 0.0
      %928 = vmatprep.subr.mxu0 0.0
      %929 = vmatpush1.msra.mxu0 0.0
      %930 = vmatprep.subr.mxu0 0.0
      %931 = vmatpush1.msra.mxu0 0.0
      %932 = vmatprep.subr.mxu0 0.0
      %933 = vmatpush1.msra.mxu0 0.0
      %934 = vmatprep.subr.mxu0 0.0
      %935 = vmatpush1.msra.mxu0 0.0
      %936 = vmatprep.subr.mxu0 0.0
      %937 = vmatpush1.msra.mxu0 0.0
      %938 = vmatprep.subr.mxu0 0.0
      %939 = vmatpush1.msra.mxu0 0.0
      %940 = vmatprep.subr.mxu0 0.0
      %941 = vmatpush1.msra.mxu0 0.0
      %942 = vmatprep.subr.mxu0 0.0
      %943 = vmatpush1.msra.mxu0 0.0
      %944 = vmatprep.subr.mxu0 0.0
      %945 = vmatpush1.msra.mxu0 0.0
      %946 = vmatprep.subr.mxu0 0.0
      %947 = vmatpush1.msra.mxu0 0.0
      %948 = vmatprep.subr.mxu0 0.0
      %949 = vmatpush1.msra.mxu0 0.0
      %950 = vmatprep.subr.mxu0 0.0
      %951 = vmatpush1.msra.mxu0 0.0
      %952 = vmatprep.subr.mxu0 0.0
      %953 = vmatpush1.msra.mxu0 0.0
      %954 = vmatprep.subr.mxu0 0.0
      %955 = vmatpush1.msra.mxu0 0.0
      %956 = vmatprep.subr.mxu0 0.0
      %957 = vmatpush1.msra.mxu0 0.0
      %958 = vmatprep.subr.mxu0 0.0
      %959 = vmatpush1.msra.mxu0 0.0
      %960 = vmatprep.subr.mxu0 0.0
      %961 = vmatpush1.msra.mxu0 0.0
      %962 = vmatprep.subr.mxu0 0.0
      %963 = vmatpush1.msra.mxu0 0.0
      %964 = vmatprep.mubr.f32.mxu0 0.0
      %965 = vmatmul.mubr.f32.gmra.mrb[0].mxu0 %v894
      %v966 = vpop.f32.mrb[0].mxu0
      %v967 = vadd.f32 0.0, %v966
      %v968 = vpop.f32.mrb[0].mxu0
      %969 = vdwg.mxu0
      %v971 = vsel %vm892, %v891, 0
      %973 = vmatprep.subr.mxu0 0.0
      %974 = vmatpush1.msra.mxu0 %v898
      %975 = vmatprep.subr.mxu0 0.0
      %976 = vmatpush1.msra.mxu0 0.0
      %977 = vmatprep.subr.mxu0 0.0
      %978 = vmatpush1.msra.mxu0 0.0
      %979 = vmatprep.subr.mxu0 0.0
      %980 = vmatpush1.msra.mxu0 0.0
      %981 = vmatprep.subr.mxu0 0.0
      %982 = vmatpush1.msra.mxu0 0.0
      %983 = vmatprep.subr.mxu0 0.0
      %984 = vmatpush1.msra.mxu0 0.0
      %985 = vmatprep.subr.mxu0 0.0
      %986 = vmatpush1.msra.mxu0 0.0
      %987 = vmatprep.subr.mxu0 0.0
      %988 = vmatpush1.msra.mxu0 0.0
      %989 = vmatprep.subr.mxu0 0.0
      %990 = vmatpush1.msra.mxu0 0.0
      %991 = vmatprep.subr.mxu0 0.0
      %992 = vmatpush1.msra.mxu0 0.0
      %993 = vmatprep.subr.mxu0 0.0
      %994 = vmatpush1.msra.mxu0 0.0
      %995 = vmatprep.subr.mxu0 0.0
      %996 = vmatpush1.msra.mxu0 0.0
      %997 = vmatprep.subr.mxu0 0.0
      %998 = vmatpush1.msra.mxu0 0.0
      %999 = vmatprep.subr.mxu0 0.0
      %1000 = vmatpush1.msra.mxu0 0.0
      %1001 = vmatprep.subr.mxu0 0.0
      %1002 = vmatpush1.msra.mxu0 0.0
      %1003 = vmatprep.subr.mxu0 0.0
      %1004 = vmatpush1.msra.mxu0 0.0
      %1005 = vmatprep.subr.mxu0 0.0
      %1006 = vmatpush1.msra.mxu0 0.0
      %1007 = vmatprep.subr.mxu0 0.0
      %1008 = vmatpush1.msra.mxu0 0.0
      %1009 = vmatprep.subr.mxu0 0.0
      %1010 = vmatpush1.msra.mxu0 0.0
      %1011 = vmatprep.subr.mxu0 0.0
      %1012 = vmatpush1.msra.mxu0 0.0
      %1013 = vmatprep.subr.mxu0 0.0
      %1014 = vmatpush1.msra.mxu0 0.0
      %1015 = vmatprep.subr.mxu0 0.0
      %1016 = vmatpush1.msra.mxu0 0.0
      %1017 = vmatprep.subr.mxu0 0.0
      %1018 = vmatpush1.msra.mxu0 0.0
      %1019 = vmatprep.subr.mxu0 0.0
      %1020 = vmatpush1.msra.mxu0 0.0
      %1021 = vmatprep.subr.mxu0 0.0
      %1022 = vmatpush1.msra.mxu0 0.0
      %1023 = vmatprep.subr.mxu0 0.0
      %1024 = vmatpush1.msra.mxu0 0.0
      %1025 = vmatprep.subr.mxu0 0.0
      %1026 = vmatpush1.msra.mxu0 0.0
      %1027 = vmatprep.subr.mxu0 0.0
      %1028 = vmatpush1.msra.mxu0 0.0
      %1029 = vmatprep.subr.mxu0 0.0
      %1030 = vmatpush1.msra.mxu0 0.0
      %1031 = vmatprep.subr.mxu0 0.0
      %1032 = vmatpush1.msra.mxu0 0.0
      %1033 = vmatprep.subr.mxu0 0.0
      %1034 = vmatpush1.msra.mxu0 0.0
      %1035 = vmatprep.subr.mxu0 0.0
      %1036 = vmatpush1.msra.mxu0 0.0
      %1037 = vmatprep.mubr.f32.mxu0 0.0
      %1038 = vmatmul.mubr.f32.gmra.mrb[0].mxu0 %v971
      %v1039 = vpop.f32.mrb[0].mxu0
      %v1040 = vadd.f32 0.0, %v1039
      %v1041 = vpop.f32.mrb[0].mxu0
      %1042 = vdwg.mxu0
      %v1043 = vlaneseq
      %v1044 = vshrl.u32 %v1043, 7
      %v1045 = vsub.s32 0, %v1044
      %v1046 = vrot.slane %v967, %v1045
      %v1047 = vsub.f32 %v672, %v1046
      %v1048 = vsub.f32 %v673, %v1046
      %v1049 = vsub.f32 %v674, %v1046
      %v1050 = vsub.f32 %v675, %v1046
      %v1051 = vsub.f32 %v676, %v1046
      %v1052 = vsub.f32 %v677, %v1046
      %v1053 = vsub.f32 %v678, %v1046
      %v1054 = vsub.f32 %v679, %v1046
      %v1055 = vmul.f32 %v1040, %v680
      %v1056 = vlaneseq
      %v1057 = vshrl.u32 %v1056, 7
      %v1058 = vsub.s32 0, %v1057
      %v1059 = vrot.slane %v1055, %v1058
      %v1060 = vmul.f32 %v1047, %v1059
      %v1061 = vmul.f32 %v1048, %v1059
      %v1062 = vmul.f32 %v1049, %v1059
      %v1063 = vmul.f32 %v1050, %v1059
      %v1064 = vmul.f32 %v1051, %v1059
      %v1065 = vmul.f32 %v1052, %v1059
      %v1066 = vmul.f32 %v1053, %v1059
      %v1067 = vmul.f32 %v1054, %v1059
      %v1069 = vlaneseq
      %v1070 = vshrl.u32 %v1069, 7
      %v1071 = vsub.s32 0, %v1070
      %v1072 = vrot.slane %v681, %v1071
      %v1074 = vadd.f32 %v1060, %v1072
      %v1075 = vadd.f32 %v1061, %v1072
      %v1076 = vadd.f32 %v1062, %v1072
      %v1077 = vadd.f32 %v1063, %v1072
      %v1078 = vadd.f32 %v1064, %v1072
      %v1079 = vadd.f32 %v1065, %v1072
      %v1080 = vadd.f32 %v1066, %v1072
      %v1081 = vadd.f32 %v1067, %v1072
      %v1082 = vxor.u32 %v1074, 2147483648
      %v1083 = vxor.u32 %v1075, 2147483648
      %v1084 = vxor.u32 %v1076, 2147483648
      %v1085 = vxor.u32 %v1077, 2147483648
      %v1086 = vxor.u32 %v1078, 2147483648
      %v1087 = vxor.u32 %v1079, 2147483648
      %v1088 = vxor.u32 %v1080, 2147483648
      %v1089 = vxor.u32 %v1081, 2147483648
      %v1090 = vmul.f32 %v1082, 1.442695
      %v1091 = vpow.pop %v1090
      %v1092 = vmul.f32 %v1083, 1.442695
      %v1093 = vpow.pop %v1092
      %v1094 = vmul.f32 %v1084, 1.442695
      %v1095 = vpow.pop %v1094
      %v1096 = vmul.f32 %v1085, 1.442695
      %v1097 = vpow.pop %v1096
      %v1098 = vmul.f32 %v1086, 1.442695
      %v1099 = vpow.pop %v1098
      %v1100 = vmul.f32 %v1087, 1.442695
      %v1101 = vpow.pop %v1100
      %v1102 = vmul.f32 %v1088, 1.442695
      %v1103 = vpow.pop %v1102
      %v1104 = vmul.f32 %v1089, 1.442695
      %v1105 = vpow.pop %v1104
      %v1106 = vadd.f32 %v1091, 1.0
      %v1107 = vadd.f32 %v1093, 1.0
      %v1108 = vadd.f32 %v1095, 1.0
      %v1109 = vadd.f32 %v1097, 1.0
      %v1110 = vadd.f32 %v1099, 1.0
      %v1111 = vadd.f32 %v1101, 1.0
      %v1112 = vadd.f32 %v1103, 1.0
      %v1113 = vadd.f32 %v1105, 1.0
      %v1114 = vrcp.pop %v1106
      %v1115 = vmul.f32 1.0, %v1114
      %v1116 = vrcp.pop %v1107
      %v1117 = vmul.f32 1.0, %v1116
      %v1118 = vrcp.pop %v1108
      %v1119 = vmul.f32 1.0, %v1118
      %v1120 = vrcp.pop %v1109
      %v1121 = vmul.f32 1.0, %v1120
      %v1122 = vrcp.pop %v1110
      %v1123 = vmul.f32 1.0, %v1122
      %v1124 = vrcp.pop %v1111
      %v1125 = vmul.f32 1.0, %v1124
      %v1126 = vrcp.pop %v1112
      %v1127 = vmul.f32 1.0, %v1126
      %v1128 = vrcp.pop %v1113
      %v1129 = vmul.f32 1.0, %v1128
      %v1130 = vmul.f32 %v1074, %v1115
      %v1131 = vmul.f32 %v1075, %v1117
      %v1132 = vmul.f32 %v1076, %v1119
      %v1133 = vmul.f32 %v1077, %v1121
      %v1134 = vmul.f32 %v1078, %v1123
      %v1135 = vmul.f32 %v1079, %v1125
      %v1136 = vmul.f32 %v1080, %v1127
      %v1137 = vmul.f32 %v1081, %v1129
      %v1138 = vld [vmem:[%s7] sm:$0x1]
      %v1139 = vrot.slane %v1130, 7
      %v1140 = vrot.slane %v1131, 7
      %v1141 = vrot.slane %v1132, 7
      %v1142 = vrot.slane %v1133, 7
      %v1143 = vrot.slane %v1134, 7
      %v1144 = vrot.slane %v1135, 7
      %v1145 = vrot.slane %v1136, 7
      %v1146 = vrot.slane %v1137, 7
      %v1147 = vlaneseq
      %v1148 = vshrl.u32 %v1147, 7
      %vm1149 = vcmp.lt.s32.totalorder %v1148, 1
      %v1150 = vsel %vm1149, %v1145, %v1146
      %v1151 = vsel %vm1149, %v1144, %v1145
      %v1152 = vsel %vm1149, %v1143, %v1144
      %v1153 = vsel %vm1149, %v1142, %v1143
      %v1154 = vsel %vm1149, %v1141, %v1142
      %v1155 = vsel %vm1149, %v1140, %v1141
      %v1156 = vsel %vm1149, %v1139, %v1140
      %v1157 = vsel %vm1149, %v1146, %v1139
      %v1158 = vld [vmem:[%s20] sm:$0xff]
      %v1159 = vld [vmem:[%s20 + $0x8] sm:$0xff]
      %v1160 = vld [vmem:[%s20 + $0x10] sm:$0xff]
      %v1161 = vld [vmem:[%s20 + $0x18] sm:$0xff]
      %v1162 = vld [vmem:[%s20 + $0x20] sm:$0xff]
      %v1163 = vld [vmem:[%s20 + $0x28] sm:$0xff]
      %v1164 = vld [vmem:[%s20 + $0x30] sm:$0xff]
      %v1165 = vld [vmem:[%s20 + $0x38] sm:$0xff]
      %1167 = vset.pattern.permute.xlu0 0
      %1168 = vperm.xlu0 %1167, %v1158
      %v1169 = vpop.permute.xlu0 %1168
      %1172 = vset.pattern.permute.xlu0 0
      %1173 = vperm.xlu0 %1172, %v1159
      %v1174 = vpop.permute.xlu0 %1173
      %1177 = vset.pattern.permute.xlu0 0
      %1178 = vperm.xlu0 %1177, %v1160
      %v1179 = vpop.permute.xlu0 %1178
      %1182 = vset.pattern.permute.xlu0 0
      %1183 = vperm.xlu0 %1182, %v1161
      %v1184 = vpop.permute.xlu0 %1183
      %1187 = vset.pattern.permute.xlu0 0
      %1188 = vperm.xlu0 %1187, %v1162
      %v1189 = vpop.permute.xlu0 %1188
      %1192 = vset.pattern.permute.xlu0 0
      %1193 = vperm.xlu0 %1192, %v1163
      %v1194 = vpop.permute.xlu0 %1193
      %1197 = vset.pattern.permute.xlu0 0
      %1198 = vperm.xlu0 %1197, %v1164
      %v1199 = vpop.permute.xlu0 %1198
      %1202 = vset.pattern.permute.xlu0 0
      %1203 = vperm.xlu0 %1202, %v1165
      %v1204 = vpop.permute.xlu0 %1203
      %v1206 = vmul.f32 %v1150, %v1169
      %v1207 = vmul.f32 %v1157, %v1174
      %v1208 = vmul.f32 %v1156, %v1179
      %v1209 = vmul.f32 %v1155, %v1184
      %v1210 = vmul.f32 %v1154, %v1189
      %v1211 = vmul.f32 %v1153, %v1194
      %v1212 = vmul.f32 %v1152, %v1199
      %v1213 = vmul.f32 %v1151, %v1204
      %v1214 = vpack.c.bf16 %v1207, %v1206
      %v1215 = vpack.c.bf16 %v1209, %v1208
      %v1216 = vpack.c.bf16 %v1211, %v1210
      %v1217 = vpack.c.bf16 %v1213, %v1212
      %v1218 = vld [vmem:[%s6] sm:$0xf]
      %v1219 = vld [vmem:[%s6 + $0x4] sm:$0x3]
      %1220 = vset.pattern.permute.xlu0 1
      %1221 = vperm.xlu0 %1220, %v1158
      %v1222 = vpop.permute.xlu0 %1221
      %1224 = vset.pattern.permute.xlu0 1
      %1225 = vperm.xlu0 %1224, %v1159
      %v1226 = vpop.permute.xlu0 %1225
      %1228 = vset.pattern.permute.xlu0 1
      %1229 = vperm.xlu0 %1228, %v1160
      %v1230 = vpop.permute.xlu0 %1229
      %1232 = vset.pattern.permute.xlu0 1
      %1233 = vperm.xlu0 %1232, %v1161
      %v1234 = vpop.permute.xlu0 %1233
      %1236 = vset.pattern.permute.xlu0 1
      %1237 = vperm.xlu0 %1236, %v1162
      %v1238 = vpop.permute.xlu0 %1237
      %1240 = vset.pattern.permute.xlu0 1
      %1241 = vperm.xlu0 %1240, %v1163
      %v1242 = vpop.permute.xlu0 %1241
      %1244 = vset.pattern.permute.xlu0 1
      %1245 = vperm.xlu0 %1244, %v1164
      %v1246 = vpop.permute.xlu0 %1245
      %1248 = vset.pattern.permute.xlu0 1
      %1249 = vperm.xlu0 %1248, %v1165
      %v1250 = vpop.permute.xlu0 %1249
      %v1252 = vmul.f32 %v1137, %v1222
      %v1253 = vmul.f32 %v1130, %v1226
      %v1254 = vmul.f32 %v1131, %v1230
      %v1255 = vmul.f32 %v1132, %v1234
      %v1256 = vmul.f32 %v1133, %v1238
      %v1257 = vmul.f32 %v1134, %v1242
      %v1258 = vmul.f32 %v1135, %v1246
      %v1259 = vmul.f32 %v1136, %v1250
      %v1260 = vpack.c.bf16 %v1253, %v1252
      %v1261 = vpack.c.bf16 %v1255, %v1254
      %v1262 = vpack.c.bf16 %v1257, %v1256
      %v1263 = vpack.c.bf16 %v1259, %v1258
      %s1264 = scalar_lea.vmem %s6, 8
      %v1265 = vld [vmem:[%s1264] sm:$0xf]
      %v1266 = vld [vmem:[%s1264 + $0x4] sm:$0x3]
      %v1269 = vunpack.c.l.b16 %v1265
      %v1270 = vunpack.c.l.b16 %v1266
      %v1271 = vpack.c.b16 %v1270, %v1269
      %v1273 = vsel %vm685, %v1260, 0
      %v1276 = vsel %vm685, %v1261, 0
      %v1279 = vsel %vm685, %v1262, 0
      %v1282 = vsel %vm685, %v1263, 0
      %vm1284 = vcmask 1045504
      %v1286 = vsel %vm1284, %v1271, 0
      %1288 = vmatprep.subr.bf16.mxu0 0
      %1289 = vmatpush1.bf16.msra.mxu0 %v1286
      %1290 = vmatprep.subr.bf16.mxu0 0
      %1291 = vmatpush1.bf16.msra.mxu0 0
      %1292 = vmatprep.subr.bf16.mxu0 0
      %1293 = vmatpush1.bf16.msra.mxu0 0
      %1294 = vmatprep.subr.bf16.mxu0 0
      %1295 = vmatpush1.bf16.msra.mxu0 0
      %1296 = vmatprep.subr.bf16.mxu0 0
      %1297 = vmatpush1.bf16.msra.mxu0 0
      %1298 = vmatprep.subr.bf16.mxu0 0
      %1299 = vmatpush1.bf16.msra.mxu0 0
      %1300 = vmatprep.subr.bf16.mxu0 0
      %1301 = vmatpush1.bf16.msra.mxu0 0
      %1302 = vmatprep.subr.bf16.mxu0 0
      %1303 = vmatpush1.bf16.msra.mxu0 0
      %1304 = vmatprep.subr.bf16.mxu0 0
      %1305 = vmatpush1.bf16.msra.mxu0 0
      %1306 = vmatprep.subr.bf16.mxu0 0
      %1307 = vmatpush1.bf16.msra.mxu0 0
      %1308 = vmatprep.subr.bf16.mxu0 0
      %1309 = vmatpush1.bf16.msra.mxu0 0
      %1310 = vmatprep.subr.bf16.mxu0 0
      %1311 = vmatpush1.bf16.msra.mxu0 0
      %1312 = vmatprep.subr.bf16.mxu0 0
      %1313 = vmatpush1.bf16.msra.mxu0 0
      %1314 = vmatprep.subr.bf16.mxu0 0
      %1315 = vmatpush1.bf16.msra.mxu0 0
      %1316 = vmatprep.subr.bf16.mxu0 0
      %1317 = vmatpush1.bf16.msra.mxu0 0
      %1318 = vmatprep.subr.bf16.mxu0 0
      %1319 = vmatpush1.bf16.msra.mxu0 0
      %1320 = vmatprep.mubr.bf16.mxu0 0
      %1321 = vmatmul.mubr.bf16.gmra.mrb[0].mxu0 %v1273
      %v1322 = vpop.f32.mrb[0].mxu0
      %v1323 = vadd.f32 0.0, %v1322
      %v1324 = vpop.f32.mrb[0].mxu0
      %v1325 = vpop.f32.mrb[0].mxu0
      %v1326 = vadd.f32 0.0, %v1325
      %v1327 = vpop.f32.mrb[0].mxu0
      %1328 = vmatprep.mubr.bf16.mxu0 0
      %1329 = vmatmul.mubr.bf16.gmra.mrb[0].mxu0 %v1276
      %v1330 = vpop.f32.mrb[0].mxu0
      %v1331 = vadd.f32 0.0, %v1330
      %v1332 = vpop.f32.mrb[0].mxu0
      %v1333 = vpop.f32.mrb[0].mxu0
      %v1334 = vadd.f32 0.0, %v1333
      %v1335 = vpop.f32.mrb[0].mxu0
      %1336 = vmatprep.mubr.bf16.mxu0 0
      %1337 = vmatmul.mubr.bf16.gmra.mrb[0].mxu0 %v1279
      %v1338 = vpop.f32.mrb[0].mxu0
      %v1339 = vadd.f32 0.0, %v1338
      %v1340 = vpop.f32.mrb[0].mxu0
      %v1341 = vpop.f32.mrb[0].mxu0
      %v1342 = vadd.f32 0.0, %v1341
      %v1343 = vpop.f32.mrb[0].mxu0
      %1344 = vmatprep.mubr.bf16.mxu0 0
      %1345 = vmatmul.mubr.bf16.gmra.mrb[0].mxu0 %v1282
      %v1346 = vpop.f32.mrb[0].mxu0
      %v1347 = vadd.f32 0.0, %v1346
      %v1348 = vpop.f32.mrb[0].mxu0
      %v1349 = vpop.f32.mrb[0].mxu0
      %v1350 = vadd.f32 0.0, %v1349
      %v1351 = vpop.f32.mrb[0].mxu0
      %1352 = vdwg.mxu0
      %v1355 = vunpack.c.l.b16 %v1218
      %v1356 = vunpack.c.l.b16 %v1219
      %v1357 = vpack.c.b16 %v1356, %v1355
      %v1359 = vsel %vm685, %v1214, 0
      %v1362 = vsel %vm685, %v1215, 0
      %v1365 = vsel %vm685, %v1216, 0
      %v1368 = vsel %vm685, %v1217, 0
      %v1371 = vsel %vm1284, %v1357, 0
      %1373 = vmatprep.subr.bf16.mxu0 0
      %1374 = vmatpush1.bf16.msra.mxu0 %v1371
      %1375 = vmatprep.subr.bf16.mxu0 0
      %1376 = vmatpush1.bf16.msra.mxu0 0
      %1377 = vmatprep.subr.bf16.mxu0 0
      %1378 = vmatpush1.bf16.msra.mxu0 0
      %1379 = vmatprep.subr.bf16.mxu0 0
      %1380 = vmatpush1.bf16.msra.mxu0 0
      %1381 = vmatprep.subr.bf16.mxu0 0
      %1382 = vmatpush1.bf16.msra.mxu0 0
      %1383 = vmatprep.subr.bf16.mxu0 0
      %1384 = vmatpush1.bf16.msra.mxu0 0
      %1385 = vmatprep.subr.bf16.mxu0 0
      %1386 = vmatpush1.bf16.msra.mxu0 0
      %1387 = vmatprep.subr.bf16.mxu0 0
      %1388 = vmatpush1.bf16.msra.mxu0 0
      %1389 = vmatprep.subr.bf16.mxu0 0
      %1390 = vmatpush1.bf16.msra.mxu0 0
      %1391 = vmatprep.subr.bf16.mxu0 0
      %1392 = vmatpush1.bf16.msra.mxu0 0
      %1393 = vmatprep.subr.bf16.mxu0 0
      %1394 = vmatpush1.bf16.msra.mxu0 0
      %1395 = vmatprep.subr.bf16.mxu0 0
      %1396 = vmatpush1.bf16.msra.mxu0 0
      %1397 = vmatprep.subr.bf16.mxu0 0
      %1398 = vmatpush1.bf16.msra.mxu0 0
      %1399 = vmatprep.subr.bf16.mxu0 0
      %1400 = vmatpush1.bf16.msra.mxu0 0
      %1401 = vmatprep.subr.bf16.mxu0 0
      %1402 = vmatpush1.bf16.msra.mxu0 0
      %1403 = vmatprep.subr.bf16.mxu0 0
      %1404 = vmatpush1.bf16.msra.mxu0 0
      %1405 = vmatprep.mubr.bf16.mxu0 0
      %1406 = vmatmul.mubr.bf16.gmra.mrb[0].mxu0 %v1359
      %v1407 = vpop.f32.mrb[0].mxu0
      %v1408 = vadd.f32 %v1323, %v1407
      %v1409 = vpop.f32.mrb[0].mxu0
      %v1410 = vpop.f32.mrb[0].mxu0
      %v1411 = vadd.f32 %v1326, %v1410
      %v1412 = vpop.f32.mrb[0].mxu0
      %1413 = vmatprep.mubr.bf16.mxu0 0
      %1414 = vmatmul.mubr.bf16.gmra.mrb[0].mxu0 %v1362
      %v1415 = vpop.f32.mrb[0].mxu0
      %v1416 = vadd.f32 %v1331, %v1415
      %v1417 = vpop.f32.mrb[0].mxu0
      %v1418 = vpop.f32.mrb[0].mxu0
      %v1419 = vadd.f32 %v1334, %v1418
      %v1420 = vpop.f32.mrb[0].mxu0
      %1421 = vmatprep.mubr.bf16.mxu0 0
      %1422 = vmatmul.mubr.bf16.gmra.mrb[0].mxu0 %v1365
      %v1423 = vpop.f32.mrb[0].mxu0
      %v1424 = vadd.f32 %v1339, %v1423
      %v1425 = vpop.f32.mrb[0].mxu0
      %v1426 = vpop.f32.mrb[0].mxu0
      %v1427 = vadd.f32 %v1342, %v1426
      %v1428 = vpop.f32.mrb[0].mxu0
      %1429 = vmatprep.mubr.bf16.mxu0 0
      %1430 = vmatmul.mubr.bf16.gmra.mrb[0].mxu0 %v1368
      %v1431 = vpop.f32.mrb[0].mxu0
      %v1432 = vadd.f32 %v1347, %v1431
      %v1433 = vpop.f32.mrb[0].mxu0
      %v1434 = vpop.f32.mrb[0].mxu0
      %v1435 = vadd.f32 %v1350, %v1434
      %v1436 = vpop.f32.mrb[0].mxu0
      %1437 = vdwg.mxu0
      %v1438 = vrot.slane %v1130, 1
      %v1439 = vrot.slane %v1131, 1
      %v1440 = vrot.slane %v1132, 1
      %v1441 = vrot.slane %v1133, 1
      %v1442 = vrot.slane %v1134, 1
      %v1443 = vrot.slane %v1135, 1
      %v1444 = vrot.slane %v1136, 1
      %v1445 = vrot.slane %v1137, 1
      %vm1446 = vcmp.lt.s32.totalorder %v1148, 7
      %v1447 = vsel %vm1446, %v1444, %v1445
      %v1448 = vsel %vm1446, %v1443, %v1444
      %v1449 = vsel %vm1446, %v1442, %v1443
      %v1450 = vsel %vm1446, %v1441, %v1442
      %v1451 = vsel %vm1446, %v1440, %v1441
      %v1452 = vsel %vm1446, %v1439, %v1440
      %v1453 = vsel %vm1446, %v1438, %v1439
      %v1454 = vsel %vm1446, %v1445, %v1438
      %1455 = vset.pattern.permute.xlu0 2
      %1456 = vperm.xlu0 %1455, %v1158
      %v1457 = vpop.permute.xlu0 %1456
      %1459 = vset.pattern.permute.xlu0 2
      %1460 = vperm.xlu0 %1459, %v1159
      %v1461 = vpop.permute.xlu0 %1460
      %1463 = vset.pattern.permute.xlu0 2
      %1464 = vperm.xlu0 %1463, %v1160
      %v1465 = vpop.permute.xlu0 %1464
      %1467 = vset.pattern.permute.xlu0 2
      %1468 = vperm.xlu0 %1467, %v1161
      %v1469 = vpop.permute.xlu0 %1468
      %1471 = vset.pattern.permute.xlu0 2
      %1472 = vperm.xlu0 %1471, %v1162
      %v1473 = vpop.permute.xlu0 %1472
      %1475 = vset.pattern.permute.xlu0 2
      %1476 = vperm.xlu0 %1475, %v1163
      %v1477 = vpop.permute.xlu0 %1476
      %1479 = vset.pattern.permute.xlu0 2
      %1480 = vperm.xlu0 %1479, %v1164
      %v1481 = vpop.permute.xlu0 %1480
      %1483 = vset.pattern.permute.xlu0 2
      %1484 = vperm.xlu0 %1483, %v1165
      %v1485 = vpop.permute.xlu0 %1484
      %v1487 = vmul.f32 %v1454, %v1457
      %v1488 = vmul.f32 %v1453, %v1461
      %v1489 = vmul.f32 %v1452, %v1465
      %v1490 = vmul.f32 %v1451, %v1469
      %v1491 = vmul.f32 %v1450, %v1473
      %v1492 = vmul.f32 %v1449, %v1477
      %v1493 = vmul.f32 %v1448, %v1481
      %v1494 = vmul.f32 %v1447, %v1485
      %v1495 = vpack.c.bf16 %v1488, %v1487
      %v1496 = vpack.c.bf16 %v1490, %v1489
      %v1497 = vpack.c.bf16 %v1492, %v1491
      %v1498 = vpack.c.bf16 %v1494, %v1493
      %s1499 = scalar_lea.vmem %s6, 16
      %v1500 = vld [vmem:[%s1499] sm:$0xf]
      %v1501 = vld [vmem:[%s1499 + $0x4] sm:$0x3]
      %v1504 = vunpack.c.l.b16 %v1500
      %v1505 = vunpack.c.l.b16 %v1501
      %v1506 = vpack.c.b16 %v1505, %v1504
      %v1508 = vsel %vm685, %v1495, 0
      %v1511 = vsel %vm685, %v1496, 0
      %v1514 = vsel %vm685, %v1497, 0
      %v1517 = vsel %vm685, %v1498, 0
      %v1520 = vsel %vm1284, %v1506, 0
      %1522 = vmatprep.subr.bf16.mxu0 0
      %1523 = vmatpush1.bf16.msra.mxu0 %v1520
      %1524 = vmatprep.subr.bf16.mxu0 0
      %1525 = vmatpush1.bf16.msra.mxu0 0
      %1526 = vmatprep.subr.bf16.mxu0 0
      %1527 = vmatpush1.bf16.msra.mxu0 0
      %1528 = vmatprep.subr.bf16.mxu0 0
      %1529 = vmatpush1.bf16.msra.mxu0 0
      %1530 = vmatprep.subr.bf16.mxu0 0
      %1531 = vmatpush1.bf16.msra.mxu0 0
      %1532 = vmatprep.subr.bf16.mxu0 0
      %1533 = vmatpush1.bf16.msra.mxu0 0
      %1534 = vmatprep.subr.bf16.mxu0 0
      %1535 = vmatpush1.bf16.msra.mxu0 0
      %1536 = vmatprep.subr.bf16.mxu0 0
      %1537 = vmatpush1.bf16.msra.mxu0 0
      %1538 = vmatprep.subr.bf16.mxu0 0
      %1539 = vmatpush1.bf16.msra.mxu0 0
      %1540 = vmatprep.subr.bf16.mxu0 0
      %1541 = vmatpush1.bf16.msra.mxu0 0
      %1542 = vmatprep.subr.bf16.mxu0 0
      %1543 = vmatpush1.bf16.msra.mxu0 0
      %1544 = vmatprep.subr.bf16.mxu0 0
      %1545 = vmatpush1.bf16.msra.mxu0 0
      %1546 = vmatprep.subr.bf16.mxu0 0
      %1547 = vmatpush1.bf16.msra.mxu0 0
      %1548 = vmatprep.subr.bf16.mxu0 0
      %1549 = vmatpush1.bf16.msra.mxu0 0
      %1550 = vmatprep.subr.bf16.mxu0 0
      %1551 = vmatpush1.bf16.msra.mxu0 0
      %1552 = vmatprep.subr.bf16.mxu0 0
      %1553 = vmatpush1.bf16.msra.mxu0 0
      %1554 = vmatprep.mubr.bf16.mxu0 0
      %1555 = vmatmul.mubr.bf16.gmra.mrb[0].mxu0 %v1508
      %v1556 = vpop.f32.mrb[0].mxu0
      %v1557 = vadd.f32 0.0, %v1556
      %v1558 = vpop.f32.mrb[0].mxu0
      %v1559 = vpop.f32.mrb[0].mxu0
      %v1560 = vadd.f32 0.0, %v1559
      %v1561 = vpop.f32.mrb[0].mxu0
      %1562 = vmatprep.mubr.bf16.mxu0 0
      %1563 = vmatmul.mubr.bf16.gmra.mrb[0].mxu0 %v1511
      %v1564 = vpop.f32.mrb[0].mxu0
      %v1565 = vadd.f32 0.0, %v1564
      %v1566 = vpop.f32.mrb[0].mxu0
      %v1567 = vpop.f32.mrb[0].mxu0
      %v1568 = vadd.f32 0.0, %v1567
      %v1569 = vpop.f32.mrb[0].mxu0
      %1570 = vmatprep.mubr.bf16.mxu0 0
      %1571 = vmatmul.mubr.bf16.gmra.mrb[0].mxu0 %v1514
      %v1572 = vpop.f32.mrb[0].mxu0
      %v1573 = vadd.f32 0.0, %v1572
      %v1574 = vpop.f32.mrb[0].mxu0
      %v1575 = vpop.f32.mrb[0].mxu0
      %v1576 = vadd.f32 0.0, %v1575
      %v1577 = vpop.f32.mrb[0].mxu0
      %1578 = vmatprep.mubr.bf16.mxu0 0
      %1579 = vmatmul.mubr.bf16.gmra.mrb[0].mxu0 %v1517
      %v1580 = vpop.f32.mrb[0].mxu0
      %v1581 = vadd.f32 0.0, %v1580
      %v1582 = vpop.f32.mrb[0].mxu0
      %v1583 = vpop.f32.mrb[0].mxu0
      %v1584 = vadd.f32 0.0, %v1583
      %v1585 = vpop.f32.mrb[0].mxu0
      %1586 = vdwg.mxu0
      %v1587 = vadd.f32 %v1408, %v1557
      %v1588 = vadd.f32 %v1411, %v1560
      %v1589 = vadd.f32 %v1416, %v1565
      %v1590 = vadd.f32 %v1419, %v1568
      %v1591 = vadd.f32 %v1424, %v1573
      %v1592 = vadd.f32 %v1427, %v1576
      %v1593 = vadd.f32 %v1432, %v1581
      %v1594 = vadd.f32 %v1435, %v1584
      %1595 = vset.pattern.permute.xlu0 3
      %1596 = vperm.xlu0 %1595, %v1158
      %v1597 = vpop.permute.xlu0 %1596
      %1599 = vset.pattern.permute.xlu0 3
      %1600 = vperm.xlu0 %1599, %v1159
      %v1601 = vpop.permute.xlu0 %1600
      %1603 = vset.pattern.permute.xlu0 3
      %1604 = vperm.xlu0 %1603, %v1160
      %v1605 = vpop.permute.xlu0 %1604
      %1607 = vset.pattern.permute.xlu0 3
      %1608 = vperm.xlu0 %1607, %v1161
      %v1609 = vpop.permute.xlu0 %1608
      %1611 = vset.pattern.permute.xlu0 3
      %1612 = vperm.xlu0 %1611, %v1162
      %v1613 = vpop.permute.xlu0 %1612
      %1615 = vset.pattern.permute.xlu0 3
      %1616 = vperm.xlu0 %1615, %v1163
      %v1617 = vpop.permute.xlu0 %1616
      %1619 = vset.pattern.permute.xlu0 3
      %1620 = vperm.xlu0 %1619, %v1164
      %v1621 = vpop.permute.xlu0 %1620
      %1623 = vset.pattern.permute.xlu0 3
      %1624 = vperm.xlu0 %1623, %v1165
      %v1625 = vpop.permute.xlu0 %1624
      %v1627 = vmul.f32 %v1157, %v1597
      %v1628 = vmul.f32 %v1156, %v1601
      %v1629 = vmul.f32 %v1155, %v1605
      %v1630 = vmul.f32 %v1154, %v1609
      %v1631 = vmul.f32 %v1153, %v1613
      %v1632 = vmul.f32 %v1152, %v1617
      %v1633 = vmul.f32 %v1151, %v1621
      %v1634 = vmul.f32 %v1150, %v1625
      %v1635 = vpack.c.bf16 %v1628, %v1627
      %v1636 = vpack.c.bf16 %v1630, %v1629
      %v1637 = vpack.c.bf16 %v1632, %v1631
      %v1638 = vpack.c.bf16 %v1634, %v1633
      %s1639 = scalar_lea.vmem %s6, 24
      %v1640 = vld [vmem:[%s1639] sm:$0xf]
      %v1641 = vld [vmem:[%s1639 + $0x4] sm:$0x3]
      %v1644 = vunpack.c.l.b16 %v1640
      %v1645 = vunpack.c.l.b16 %v1641
      %v1646 = vpack.c.b16 %v1645, %v1644
      %v1648 = vsel %vm685, %v1635, 0
      %v1651 = vsel %vm685, %v1636, 0
      %v1654 = vsel %vm685, %v1637, 0
      %v1657 = vsel %vm685, %v1638, 0
      %v1660 = vsel %vm1284, %v1646, 0
      %1662 = vmatprep.subr.bf16.mxu0 0
      %1663 = vmatpush1.bf16.msra.mxu0 %v1660
      %1664 = vmatprep.subr.bf16.mxu0 0
      %1665 = vmatpush1.bf16.msra.mxu0 0
      %1666 = vmatprep.subr.bf16.mxu0 0
      %1667 = vmatpush1.bf16.msra.mxu0 0
      %1668 = vmatprep.subr.bf16.mxu0 0
      %1669 = vmatpush1.bf16.msra.mxu0 0
      %1670 = vmatprep.subr.bf16.mxu0 0
      %1671 = vmatpush1.bf16.msra.mxu0 0
      %1672 = vmatprep.subr.bf16.mxu0 0
      %1673 = vmatpush1.bf16.msra.mxu0 0
      %1674 = vmatprep.subr.bf16.mxu0 0
      %1675 = vmatpush1.bf16.msra.mxu0 0
      %1676 = vmatprep.subr.bf16.mxu0 0
      %1677 = vmatpush1.bf16.msra.mxu0 0
      %1678 = vmatprep.subr.bf16.mxu0 0
      %1679 = vmatpush1.bf16.msra.mxu0 0
      %1680 = vmatprep.subr.bf16.mxu0 0
      %1681 = vmatpush1.bf16.msra.mxu0 0
      %1682 = vmatprep.subr.bf16.mxu0 0
      %1683 = vmatpush1.bf16.msra.mxu0 0
      %1684 = vmatprep.subr.bf16.mxu0 0
      %1685 = vmatpush1.bf16.msra.mxu0 0
      %1686 = vmatprep.subr.bf16.mxu0 0
      %1687 = vmatpush1.bf16.msra.mxu0 0
      %1688 = vmatprep.subr.bf16.mxu0 0
      %1689 = vmatpush1.bf16.msra.mxu0 0
      %1690 = vmatprep.subr.bf16.mxu0 0
      %1691 = vmatpush1.bf16.msra.mxu0 0
      %1692 = vmatprep.subr.bf16.mxu0 0
      %1693 = vmatpush1.bf16.msra.mxu0 0
      %1694 = vmatprep.mubr.bf16.mxu0 0
      %1695 = vmatmul.mubr.bf16.gmra.mrb[0].mxu0 %v1648
      %v1696 = vpop.f32.mrb[0].mxu0
      %v1697 = vadd.f32 0.0, %v1696
      %v1698 = vpop.f32.mrb[0].mxu0
      %v1699 = vpop.f32.mrb[0].mxu0
      %v1700 = vadd.f32 0.0, %v1699
      %v1701 = vpop.f32.mrb[0].mxu0
      %1702 = vmatprep.mubr.bf16.mxu0 0
      %1703 = vmatmul.mubr.bf16.gmra.mrb[0].mxu0 %v1651
      %v1704 = vpop.f32.mrb[0].mxu0
      %v1705 = vadd.f32 0.0, %v1704
      %v1706 = vpop.f32.mrb[0].mxu0
      %v1707 = vpop.f32.mrb[0].mxu0
      %v1708 = vadd.f32 0.0, %v1707
      %v1709 = vpop.f32.mrb[0].mxu0
      %1710 = vmatprep.mubr.bf16.mxu0 0
      %1711 = vmatmul.mubr.bf16.gmra.mrb[0].mxu0 %v1654
      %v1712 = vpop.f32.mrb[0].mxu0
      %v1713 = vadd.f32 0.0, %v1712
      %v1714 = vpop.f32.mrb[0].mxu0
      %v1715 = vpop.f32.mrb[0].mxu0
      %v1716 = vadd.f32 0.0, %v1715
      %v1717 = vpop.f32.mrb[0].mxu0
      %1718 = vmatprep.mubr.bf16.mxu0 0
      %1719 = vmatmul.mubr.bf16.gmra.mrb[0].mxu0 %v1657
      %v1720 = vpop.f32.mrb[0].mxu0
      %v1721 = vadd.f32 0.0, %v1720
      %v1722 = vpop.f32.mrb[0].mxu0
      %v1723 = vpop.f32.mrb[0].mxu0
      %v1724 = vadd.f32 0.0, %v1723
      %v1725 = vpop.f32.mrb[0].mxu0
      %1726 = vdwg.mxu0
      %v1727 = vadd.f32 %v1587, %v1697
      %v1728 = vadd.f32 %v1588, %v1700
      %v1729 = vadd.f32 %v1589, %v1705
      %v1730 = vadd.f32 %v1590, %v1708
      %v1731 = vadd.f32 %v1591, %v1713
      %v1732 = vadd.f32 %v1592, %v1716
      %v1733 = vadd.f32 %v1593, %v1721
      %v1734 = vadd.f32 %v1594, %v1724
      %1735 = vset.pattern.permute.xlu0 4
      %1736 = vperm.xlu0 %1735, %v1158
      %v1737 = vpop.permute.xlu0 %1736
      %1739 = vset.pattern.permute.xlu0 4
      %1740 = vperm.xlu0 %1739, %v1159
      %v1741 = vpop.permute.xlu0 %1740
      %1743 = vset.pattern.permute.xlu0 4
      %1744 = vperm.xlu0 %1743, %v1160
      %v1745 = vpop.permute.xlu0 %1744
      %1747 = vset.pattern.permute.xlu0 4
      %1748 = vperm.xlu0 %1747, %v1161
      %v1749 = vpop.permute.xlu0 %1748
      %1751 = vset.pattern.permute.xlu0 4
      %1752 = vperm.xlu0 %1751, %v1162
      %v1753 = vpop.permute.xlu0 %1752
      %1755 = vset.pattern.permute.xlu0 4
      %1756 = vperm.xlu0 %1755, %v1163
      %v1757 = vpop.permute.xlu0 %1756
      %1759 = vset.pattern.permute.xlu0 4
      %1760 = vperm.xlu0 %1759, %v1164
      %v1761 = vpop.permute.xlu0 %1760
      %1763 = vset.pattern.permute.xlu0 4
      %1764 = vperm.xlu0 %1763, %v1165
      %v1765 = vpop.permute.xlu0 %1764
      %v1767 = vmul.f32 %v1130, %v1737
      %v1768 = vmul.f32 %v1131, %v1741
      %v1769 = vmul.f32 %v1132, %v1745
      %v1770 = vmul.f32 %v1133, %v1749
      %v1771 = vmul.f32 %v1134, %v1753
      %v1772 = vmul.f32 %v1135, %v1757
      %v1773 = vmul.f32 %v1136, %v1761
      %v1774 = vmul.f32 %v1137, %v1765
      %v1775 = vpack.c.bf16 %v1768, %v1767
      %v1776 = vpack.c.bf16 %v1770, %v1769
      %v1777 = vpack.c.bf16 %v1772, %v1771
      %v1778 = vpack.c.bf16 %v1774, %v1773
      %s1779 = scalar_lea.vmem %s6, 32
      %v1780 = vld [vmem:[%s1779] sm:$0xf]
      %v1781 = vld [vmem:[%s1779 + $0x4] sm:$0x3]
      %v1784 = vunpack.c.l.b16 %v1780
      %v1785 = vunpack.c.l.b16 %v1781
      %v1786 = vpack.c.b16 %v1785, %v1784
      %v1788 = vsel %vm685, %v1775, 0
      %v1791 = vsel %vm685, %v1776, 0
      %v1794 = vsel %vm685, %v1777, 0
      %v1797 = vsel %vm685, %v1778, 0
      %v1800 = vsel %vm1284, %v1786, 0
      %1802 = vmatprep.subr.bf16.mxu0 0
      %1803 = vmatpush1.bf16.msra.mxu0 %v1800
      %1804 = vmatprep.subr.bf16.mxu0 0
      %1805 = vmatpush1.bf16.msra.mxu0 0
      %1806 = vmatprep.subr.bf16.mxu0 0
      %1807 = vmatpush1.bf16.msra.mxu0 0
      %1808 = vmatprep.subr.bf16.mxu0 0
      %1809 = vmatpush1.bf16.msra.mxu0 0
      %1810 = vmatprep.subr.bf16.mxu0 0
      %1811 = vmatpush1.bf16.msra.mxu0 0
      %1812 = vmatprep.subr.bf16.mxu0 0
      %1813 = vmatpush1.bf16.msra.mxu0 0
      %1814 = vmatprep.subr.bf16.mxu0 0
      %1815 = vmatpush1.bf16.msra.mxu0 0
      %1816 = vmatprep.subr.bf16.mxu0 0
      %1817 = vmatpush1.bf16.msra.mxu0 0
      %1818 = vmatprep.subr.bf16.mxu0 0
      %1819 = vmatpush1.bf16.msra.mxu0 0
      %1820 = vmatprep.subr.bf16.mxu0 0
      %1821 = vmatpush1.bf16.msra.mxu0 0
      %1822 = vmatprep.subr.bf16.mxu0 0
      %1823 = vmatpush1.bf16.msra.mxu0 0
      %1824 = vmatprep.subr.bf16.mxu0 0
      %1825 = vmatpush1.bf16.msra.mxu0 0
      %1826 = vmatprep.subr.bf16.mxu0 0
      %1827 = vmatpush1.bf16.msra.mxu0 0
      %1828 = vmatprep.subr.bf16.mxu0 0
      %1829 = vmatpush1.bf16.msra.mxu0 0
      %1830 = vmatprep.subr.bf16.mxu0 0
      %1831 = vmatpush1.bf16.msra.mxu0 0
      %1832 = vmatprep.subr.bf16.mxu0 0
      %1833 = vmatpush1.bf16.msra.mxu0 0
      %1834 = vmatprep.mubr.bf16.mxu0 0
      %1835 = vmatmul.mubr.bf16.gmra.mrb[0].mxu0 %v1788
      %v1836 = vpop.f32.mrb[0].mxu0
      %v1837 = vadd.f32 0.0, %v1836
      %v1838 = vpop.f32.mrb[0].mxu0
      %v1839 = vpop.f32.mrb[0].mxu0
      %v1840 = vadd.f32 0.0, %v1839
      %v1841 = vpop.f32.mrb[0].mxu0
      %1842 = vmatprep.mubr.bf16.mxu0 0
      %1843 = vmatmul.mubr.bf16.gmra.mrb[0].mxu0 %v1791
      %v1844 = vpop.f32.mrb[0].mxu0
      %v1845 = vadd.f32 0.0, %v1844
      %v1846 = vpop.f32.mrb[0].mxu0
      %v1847 = vpop.f32.mrb[0].mxu0
      %v1848 = vadd.f32 0.0, %v1847
      %v1849 = vpop.f32.mrb[0].mxu0
      %1850 = vmatprep.mubr.bf16.mxu0 0
      %1851 = vmatmul.mubr.bf16.gmra.mrb[0].mxu0 %v1794
      %v1852 = vpop.f32.mrb[0].mxu0
      %v1853 = vadd.f32 0.0, %v1852
      %v1854 = vpop.f32.mrb[0].mxu0
      %v1855 = vpop.f32.mrb[0].mxu0
      %v1856 = vadd.f32 0.0, %v1855
      %v1857 = vpop.f32.mrb[0].mxu0
      %1858 = vmatprep.mubr.bf16.mxu0 0
      %1859 = vmatmul.mubr.bf16.gmra.mrb[0].mxu0 %v1797
      %v1860 = vpop.f32.mrb[0].mxu0
      %v1861 = vadd.f32 0.0, %v1860
      %v1862 = vpop.f32.mrb[0].mxu0
      %v1863 = vpop.f32.mrb[0].mxu0
      %v1864 = vadd.f32 0.0, %v1863
      %v1865 = vpop.f32.mrb[0].mxu0
      %1866 = vdwg.mxu0
      %v1867 = vadd.f32 %v1727, %v1837
      %v1868 = vadd.f32 %v1728, %v1840
      %v1869 = vadd.f32 %v1729, %v1845
      %v1870 = vadd.f32 %v1730, %v1848
      %v1871 = vadd.f32 %v1731, %v1853
      %v1872 = vadd.f32 %v1732, %v1856
      %v1873 = vadd.f32 %v1733, %v1861
      %v1874 = vadd.f32 %v1734, %v1864
      %1875 = vset.pattern.permute.xlu0 5
      %1876 = vperm.xlu0 %1875, %v1158
      %v1877 = vpop.permute.xlu0 %1876
      %1879 = vset.pattern.permute.xlu0 5
      %1880 = vperm.xlu0 %1879, %v1159
      %v1881 = vpop.permute.xlu0 %1880
      %1883 = vset.pattern.permute.xlu0 5
      %1884 = vperm.xlu0 %1883, %v1160
      %v1885 = vpop.permute.xlu0 %1884
      %1887 = vset.pattern.permute.xlu0 5
      %1888 = vperm.xlu0 %1887, %v1161
      %v1889 = vpop.permute.xlu0 %1888
      %1891 = vset.pattern.permute.xlu0 5
      %1892 = vperm.xlu0 %1891, %v1162
      %v1893 = vpop.permute.xlu0 %1892
      %1895 = vset.pattern.permute.xlu0 5
      %1896 = vperm.xlu0 %1895, %v1163
      %v1897 = vpop.permute.xlu0 %1896
      %1899 = vset.pattern.permute.xlu0 5
      %1900 = vperm.xlu0 %1899, %v1164
      %v1901 = vpop.permute.xlu0 %1900
      %1903 = vset.pattern.permute.xlu0 5
      %1904 = vperm.xlu0 %1903, %v1165
      %v1905 = vpop.permute.xlu0 %1904
      %v1907 = vmul.f32 %v1453, %v1877
      %v1908 = vmul.f32 %v1452, %v1881
      %v1909 = vmul.f32 %v1451, %v1885
      %v1910 = vmul.f32 %v1450, %v1889
      %v1911 = vmul.f32 %v1449, %v1893
      %v1912 = vmul.f32 %v1448, %v1897
      %v1913 = vmul.f32 %v1447, %v1901
      %v1914 = vmul.f32 %v1454, %v1905
      %v1915 = vpack.c.bf16 %v1908, %v1907
      %v1916 = vpack.c.bf16 %v1910, %v1909
      %v1917 = vpack.c.bf16 %v1912, %v1911
      %v1918 = vpack.c.bf16 %v1914, %v1913
      %s1919 = scalar_lea.vmem %s6, 40
      %v1920 = vld [vmem:[%s1919] sm:$0xf]
      %v1921 = vld [vmem:[%s1919 + $0x4] sm:$0x3]
      %v1924 = vunpack.c.l.b16 %v1920
      %v1925 = vunpack.c.l.b16 %v1921
      %v1926 = vpack.c.b16 %v1925, %v1924
      %v1928 = vsel %vm685, %v1915, 0
      %v1931 = vsel %vm685, %v1916, 0
      %v1934 = vsel %vm685, %v1917, 0
      %v1937 = vsel %vm685, %v1918, 0
      %v1940 = vsel %vm1284, %v1926, 0
      %1942 = vmatprep.subr.bf16.mxu0 0
      %1943 = vmatpush1.bf16.msra.mxu0 %v1940
      %1944 = vmatprep.subr.bf16.mxu0 0
      %1945 = vmatpush1.bf16.msra.mxu0 0
      %1946 = vmatprep.subr.bf16.mxu0 0
      %1947 = vmatpush1.bf16.msra.mxu0 0
      %1948 = vmatprep.subr.bf16.mxu0 0
      %1949 = vmatpush1.bf16.msra.mxu0 0
      %1950 = vmatprep.subr.bf16.mxu0 0
      %1951 = vmatpush1.bf16.msra.mxu0 0
      %1952 = vmatprep.subr.bf16.mxu0 0
      %1953 = vmatpush1.bf16.msra.mxu0 0
      %1954 = vmatprep.subr.bf16.mxu0 0
      %1955 = vmatpush1.bf16.msra.mxu0 0
      %1956 = vmatprep.subr.bf16.mxu0 0
      %1957 = vmatpush1.bf16.msra.mxu0 0
      %1958 = vmatprep.subr.bf16.mxu0 0
      %1959 = vmatpush1.bf16.msra.mxu0 0
      %1960 = vmatprep.subr.bf16.mxu0 0
      %1961 = vmatpush1.bf16.msra.mxu0 0
      %1962 = vmatprep.subr.bf16.mxu0 0
      %1963 = vmatpush1.bf16.msra.mxu0 0
      %1964 = vmatprep.subr.bf16.mxu0 0
      %1965 = vmatpush1.bf16.msra.mxu0 0
      %1966 = vmatprep.subr.bf16.mxu0 0
      %1967 = vmatpush1.bf16.msra.mxu0 0
      %1968 = vmatprep.subr.bf16.mxu0 0
      %1969 = vmatpush1.bf16.msra.mxu0 0
      %1970 = vmatprep.subr.bf16.mxu0 0
      %1971 = vmatpush1.bf16.msra.mxu0 0
      %1972 = vmatprep.subr.bf16.mxu0 0
      %1973 = vmatpush1.bf16.msra.mxu0 0
      %1974 = vmatprep.mubr.bf16.mxu0 0
      %1975 = vmatmul.mubr.bf16.gmra.mrb[0].mxu0 %v1928
      %v1976 = vpop.f32.mrb[0].mxu0
      %v1977 = vadd.f32 0.0, %v1976
      %v1978 = vpop.f32.mrb[0].mxu0
      %v1979 = vpop.f32.mrb[0].mxu0
      %v1980 = vadd.f32 0.0, %v1979
      %v1981 = vpop.f32.mrb[0].mxu0
      %1982 = vmatprep.mubr.bf16.mxu0 0
      %1983 = vmatmul.mubr.bf16.gmra.mrb[0].mxu0 %v1931
      %v1984 = vpop.f32.mrb[0].mxu0
      %v1985 = vadd.f32 0.0, %v1984
      %v1986 = vpop.f32.mrb[0].mxu0
      %v1987 = vpop.f32.mrb[0].mxu0
      %v1988 = vadd.f32 0.0, %v1987
      %v1989 = vpop.f32.mrb[0].mxu0
      %1990 = vmatprep.mubr.bf16.mxu0 0
      %1991 = vmatmul.mubr.bf16.gmra.mrb[0].mxu0 %v1934
      %v1992 = vpop.f32.mrb[0].mxu0
      %v1993 = vadd.f32 0.0, %v1992
      %v1994 = vpop.f32.mrb[0].mxu0
      %v1995 = vpop.f32.mrb[0].mxu0
      %v1996 = vadd.f32 0.0, %v1995
      %v1997 = vpop.f32.mrb[0].mxu0
      %1998 = vmatprep.mubr.bf16.mxu0 0
      %1999 = vmatmul.mubr.bf16.gmra.mrb[0].mxu0 %v1937
      %v2000 = vpop.f32.mrb[0].mxu0
      %v2001 = vadd.f32 0.0, %v2000
      %v2002 = vpop.f32.mrb[0].mxu0
      %v2003 = vpop.f32.mrb[0].mxu0
      %v2004 = vadd.f32 0.0, %v2003
      %v2005 = vpop.f32.mrb[0].mxu0
      %2006 = vdwg.mxu0
      %v2007 = vadd.f32 %v1867, %v1977
      %v2008 = vadd.f32 %v1868, %v1980
      %v2009 = vadd.f32 %v1869, %v1985
      %v2010 = vadd.f32 %v1870, %v1988
      %v2011 = vadd.f32 %v1871, %v1993
      %v2012 = vadd.f32 %v1872, %v1996
      %v2013 = vadd.f32 %v1873, %v2001
      %v2014 = vadd.f32 %v1874, %v2004
      %2015 = vset.pattern.permute.xlu0 6
      %2016 = vperm.xlu0 %2015, %v1158
      %v2017 = vpop.permute.xlu0 %2016
      %2019 = vset.pattern.permute.xlu0 6
      %2020 = vperm.xlu0 %2019, %v1159
      %v2021 = vpop.permute.xlu0 %2020
      %2023 = vset.pattern.permute.xlu0 6
      %2024 = vperm.xlu0 %2023, %v1160
      %v2025 = vpop.permute.xlu0 %2024
      %2027 = vset.pattern.permute.xlu0 6
      %2028 = vperm.xlu0 %2027, %v1161
      %v2029 = vpop.permute.xlu0 %2028
      %2031 = vset.pattern.permute.xlu0 6
      %2032 = vperm.xlu0 %2031, %v1162
      %v2033 = vpop.permute.xlu0 %2032
      %2035 = vset.pattern.permute.xlu0 6
      %2036 = vperm.xlu0 %2035, %v1163
      %v2037 = vpop.permute.xlu0 %2036
      %2039 = vset.pattern.permute.xlu0 6
      %2040 = vperm.xlu0 %2039, %v1164
      %v2041 = vpop.permute.xlu0 %2040
      %2043 = vset.pattern.permute.xlu0 6
      %2044 = vperm.xlu0 %2043, %v1165
      %v2045 = vpop.permute.xlu0 %2044
      %v2047 = vmul.f32 %v1156, %v2017
      %v2048 = vmul.f32 %v1155, %v2021
      %v2049 = vmul.f32 %v1154, %v2025
      %v2050 = vmul.f32 %v1153, %v2029
      %v2051 = vmul.f32 %v1152, %v2033
      %v2052 = vmul.f32 %v1151, %v2037
      %v2053 = vmul.f32 %v1150, %v2041
      %v2054 = vmul.f32 %v1157, %v2045
      %v2055 = vpack.c.bf16 %v2048, %v2047
      %v2056 = vpack.c.bf16 %v2050, %v2049
      %v2057 = vpack.c.bf16 %v2052, %v2051
      %v2058 = vpack.c.bf16 %v2054, %v2053
      %s2059 = scalar_lea.vmem %s6, 48
      %v2060 = vld [vmem:[%s2059] sm:$0xf]
      %v2061 = vld [vmem:[%s2059 + $0x4] sm:$0x3]
      %v2064 = vunpack.c.l.b16 %v2060
      %v2065 = vunpack.c.l.b16 %v2061
      %v2066 = vpack.c.b16 %v2065, %v2064
      %v2068 = vsel %vm685, %v2055, 0
      %v2071 = vsel %vm685, %v2056, 0
      %v2074 = vsel %vm685, %v2057, 0
      %v2077 = vsel %vm685, %v2058, 0
      %v2080 = vsel %vm1284, %v2066, 0
      %2082 = vmatprep.subr.bf16.mxu0 0
      %2083 = vmatpush1.bf16.msra.mxu0 %v2080
      %2084 = vmatprep.subr.bf16.mxu0 0
      %2085 = vmatpush1.bf16.msra.mxu0 0
      %2086 = vmatprep.subr.bf16.mxu0 0
      %2087 = vmatpush1.bf16.msra.mxu0 0
      %2088 = vmatprep.subr.bf16.mxu0 0
      %2089 = vmatpush1.bf16.msra.mxu0 0
      %2090 = vmatprep.subr.bf16.mxu0 0
      %2091 = vmatpush1.bf16.msra.mxu0 0
      %2092 = vmatprep.subr.bf16.mxu0 0
      %2093 = vmatpush1.bf16.msra.mxu0 0
      %2094 = vmatprep.subr.bf16.mxu0 0
      %2095 = vmatpush1.bf16.msra.mxu0 0
      %2096 = vmatprep.subr.bf16.mxu0 0
      %2097 = vmatpush1.bf16.msra.mxu0 0
      %2098 = vmatprep.subr.bf16.mxu0 0
      %2099 = vmatpush1.bf16.msra.mxu0 0
      %2100 = vmatprep.subr.bf16.mxu0 0
      %2101 = vmatpush1.bf16.msra.mxu0 0
      %2102 = vmatprep.subr.bf16.mxu0 0
      %2103 = vmatpush1.bf16.msra.mxu0 0
      %2104 = vmatprep.subr.bf16.mxu0 0
      %2105 = vmatpush1.bf16.msra.mxu0 0
      %2106 = vmatprep.subr.bf16.mxu0 0
      %2107 = vmatpush1.bf16.msra.mxu0 0
      %2108 = vmatprep.subr.bf16.mxu0 0
      %2109 = vmatpush1.bf16.msra.mxu0 0
      %2110 = vmatprep.subr.bf16.mxu0 0
      %2111 = vmatpush1.bf16.msra.mxu0 0
      %2112 = vmatprep.subr.bf16.mxu0 0
      %2113 = vmatpush1.bf16.msra.mxu0 0
      %2114 = vmatprep.mubr.bf16.mxu0 0
      %2115 = vmatmul.mubr.bf16.gmra.mrb[0].mxu0 %v2068
      %v2116 = vpop.f32.mrb[0].mxu0
      %v2117 = vadd.f32 0.0, %v2116
      %v2118 = vpop.f32.mrb[0].mxu0
      %v2119 = vpop.f32.mrb[0].mxu0
      %v2120 = vadd.f32 0.0, %v2119
      %v2121 = vpop.f32.mrb[0].mxu0
      %2122 = vmatprep.mubr.bf16.mxu0 0
      %2123 = vmatmul.mubr.bf16.gmra.mrb[0].mxu0 %v2071
      %v2124 = vpop.f32.mrb[0].mxu0
      %v2125 = vadd.f32 0.0, %v2124
      %v2126 = vpop.f32.mrb[0].mxu0
      %v2127 = vpop.f32.mrb[0].mxu0
      %v2128 = vadd.f32 0.0, %v2127
      %v2129 = vpop.f32.mrb[0].mxu0
      %2130 = vmatprep.mubr.bf16.mxu0 0
      %2131 = vmatmul.mubr.bf16.gmra.mrb[0].mxu0 %v2074
      %v2132 = vpop.f32.mrb[0].mxu0
      %v2133 = vadd.f32 0.0, %v2132
      %v2134 = vpop.f32.mrb[0].mxu0
      %v2135 = vpop.f32.mrb[0].mxu0
      %v2136 = vadd.f32 0.0, %v2135
      %v2137 = vpop.f32.mrb[0].mxu0
      %2138 = vmatprep.mubr.bf16.mxu0 0
      %2139 = vmatmul.mubr.bf16.gmra.mrb[0].mxu0 %v2077
      %v2140 = vpop.f32.mrb[0].mxu0
      %v2141 = vadd.f32 0.0, %v2140
      %v2142 = vpop.f32.mrb[0].mxu0
      %v2143 = vpop.f32.mrb[0].mxu0
      %v2144 = vadd.f32 0.0, %v2143
      %v2145 = vpop.f32.mrb[0].mxu0
      %2146 = vdwg.mxu0
      %v2147 = vadd.f32 %v2007, %v2117
      %v2148 = vadd.f32 %v2008, %v2120
      %v2149 = vadd.f32 %v2009, %v2125
      %v2150 = vadd.f32 %v2010, %v2128
      %v2151 = vadd.f32 %v2011, %v2133
      %v2152 = vadd.f32 %v2012, %v2136
      %v2153 = vadd.f32 %v2013, %v2141
      %v2154 = vadd.f32 %v2014, %v2144
      %2155 = vset.pattern.permute.xlu0 7
      %2156 = vperm.xlu0 %2155, %v1158
      %v2157 = vpop.permute.xlu0 %2156
      %2159 = vset.pattern.permute.xlu0 7
      %2160 = vperm.xlu0 %2159, %v1159
      %v2161 = vpop.permute.xlu0 %2160
      %2163 = vset.pattern.permute.xlu0 7
      %2164 = vperm.xlu0 %2163, %v1160
      %v2165 = vpop.permute.xlu0 %2164
      %2167 = vset.pattern.permute.xlu0 7
      %2168 = vperm.xlu0 %2167, %v1161
      %v2169 = vpop.permute.xlu0 %2168
      %2171 = vset.pattern.permute.xlu0 7
      %2172 = vperm.xlu0 %2171, %v1162
      %v2173 = vpop.permute.xlu0 %2172
      %2175 = vset.pattern.permute.xlu0 7
      %2176 = vperm.xlu0 %2175, %v1163
      %v2177 = vpop.permute.xlu0 %2176
      %2179 = vset.pattern.permute.xlu0 7
      %2180 = vperm.xlu0 %2179, %v1164
      %v2181 = vpop.permute.xlu0 %2180
      %2183 = vset.pattern.permute.xlu0 7
      %2184 = vperm.xlu0 %2183, %v1165
      %v2185 = vpop.permute.xlu0 %2184
      %v2187 = vmul.f32 %v1131, %v2157
      %v2188 = vmul.f32 %v1132, %v2161
      %v2189 = vmul.f32 %v1133, %v2165
      %v2190 = vmul.f32 %v1134, %v2169
      %v2191 = vmul.f32 %v1135, %v2173
      %v2192 = vmul.f32 %v1136, %v2177
      %v2193 = vmul.f32 %v1137, %v2181
      %v2194 = vmul.f32 %v1130, %v2185
      %v2195 = vpack.c.bf16 %v2188, %v2187
      %v2196 = vpack.c.bf16 %v2190, %v2189
      %v2197 = vpack.c.bf16 %v2192, %v2191
      %v2198 = vpack.c.bf16 %v2194, %v2193
      %s2199 = scalar_lea.vmem %s6, 56
      %v2200 = vld [vmem:[%s2199] sm:$0xf]
      %v2201 = vld [vmem:[%s2199 + $0x4] sm:$0x3]
      %v2204 = vunpack.c.l.b16 %v2200
      %v2205 = vunpack.c.l.b16 %v2201
      %v2206 = vpack.c.b16 %v2205, %v2204
      %v2208 = vsel %vm685, %v2195, 0
      %v2211 = vsel %vm685, %v2196, 0
      %v2214 = vsel %vm685, %v2197, 0
      %v2217 = vsel %vm685, %v2198, 0
      %v2220 = vsel %vm1284, %v2206, 0
      %2222 = vmatprep.subr.bf16.mxu0 0
      %2223 = vmatpush1.bf16.msra.mxu0 %v2220
      %2224 = vmatprep.subr.bf16.mxu0 0
      %2225 = vmatpush1.bf16.msra.mxu0 0
      %2226 = vmatprep.subr.bf16.mxu0 0
      %2227 = vmatpush1.bf16.msra.mxu0 0
      %2228 = vmatprep.subr.bf16.mxu0 0
      %2229 = vmatpush1.bf16.msra.mxu0 0
      %2230 = vmatprep.subr.bf16.mxu0 0
      %2231 = vmatpush1.bf16.msra.mxu0 0
      %2232 = vmatprep.subr.bf16.mxu0 0
      %2233 = vmatpush1.bf16.msra.mxu0 0
      %2234 = vmatprep.subr.bf16.mxu0 0
      %2235 = vmatpush1.bf16.msra.mxu0 0
      %2236 = vmatprep.subr.bf16.mxu0 0
      %2237 = vmatpush1.bf16.msra.mxu0 0
      %2238 = vmatprep.subr.bf16.mxu0 0
      %2239 = vmatpush1.bf16.msra.mxu0 0
      %2240 = vmatprep.subr.bf16.mxu0 0
      %2241 = vmatpush1.bf16.msra.mxu0 0
      %2242 = vmatprep.subr.bf16.mxu0 0
      %2243 = vmatpush1.bf16.msra.mxu0 0
      %2244 = vmatprep.subr.bf16.mxu0 0
      %2245 = vmatpush1.bf16.msra.mxu0 0
      %2246 = vmatprep.subr.bf16.mxu0 0
      %2247 = vmatpush1.bf16.msra.mxu0 0
      %2248 = vmatprep.subr.bf16.mxu0 0
      %2249 = vmatpush1.bf16.msra.mxu0 0
      %2250 = vmatprep.subr.bf16.mxu0 0
      %2251 = vmatpush1.bf16.msra.mxu0 0
      %2252 = vmatprep.subr.bf16.mxu0 0
      %2253 = vmatpush1.bf16.msra.mxu0 0
      %2254 = vmatprep.mubr.bf16.mxu0 0
      %2255 = vmatmul.mubr.bf16.gmra.mrb[0].mxu0 %v2208
      %v2256 = vpop.f32.mrb[0].mxu0
      %v2257 = vadd.f32 0.0, %v2256
      %v2258 = vpop.f32.mrb[0].mxu0
      %v2259 = vpop.f32.mrb[0].mxu0
      %v2260 = vadd.f32 0.0, %v2259
      %v2261 = vpop.f32.mrb[0].mxu0
      %2262 = vmatprep.mubr.bf16.mxu0 0
      %2263 = vmatmul.mubr.bf16.gmra.mrb[0].mxu0 %v2211
      %v2264 = vpop.f32.mrb[0].mxu0
      %v2265 = vadd.f32 0.0, %v2264
      %v2266 = vpop.f32.mrb[0].mxu0
      %v2267 = vpop.f32.mrb[0].mxu0
      %v2268 = vadd.f32 0.0, %v2267
      %v2269 = vpop.f32.mrb[0].mxu0
      %2270 = vmatprep.mubr.bf16.mxu0 0
      %2271 = vmatmul.mubr.bf16.gmra.mrb[0].mxu0 %v2214
      %v2272 = vpop.f32.mrb[0].mxu0
      %v2273 = vadd.f32 0.0, %v2272
      %v2274 = vpop.f32.mrb[0].mxu0
      %v2275 = vpop.f32.mrb[0].mxu0
      %v2276 = vadd.f32 0.0, %v2275
      %v2277 = vpop.f32.mrb[0].mxu0
      %2278 = vmatprep.mubr.bf16.mxu0 0
      %2279 = vmatmul.mubr.bf16.gmra.mrb[0].mxu0 %v2217
      %v2280 = vpop.f32.mrb[0].mxu0
      %v2281 = vadd.f32 0.0, %v2280
      %v2282 = vpop.f32.mrb[0].mxu0
      %v2283 = vpop.f32.mrb[0].mxu0
      %v2284 = vadd.f32 0.0, %v2283
      %v2285 = vpop.f32.mrb[0].mxu0
      %2286 = vdwg.mxu0
      %v2287 = vadd.f32 %v2147, %v2257
      %v2288 = vadd.f32 %v2148, %v2260
      %v2289 = vadd.f32 %v2149, %v2265
      %v2290 = vadd.f32 %v2150, %v2268
      %v2291 = vadd.f32 %v2151, %v2273
      %v2292 = vadd.f32 %v2152, %v2276
      %v2293 = vadd.f32 %v2153, %v2281
      %v2294 = vadd.f32 %v2154, %v2284
      %2295 = vset.pattern.permute.xlu0 8
      %2296 = vperm.xlu0 %2295, %v1158
      %v2297 = vpop.permute.xlu0 %2296
      %2299 = vset.pattern.permute.xlu0 8
      %2300 = vperm.xlu0 %2299, %v1159
      %v2301 = vpop.permute.xlu0 %2300
      %2303 = vset.pattern.permute.xlu0 8
      %2304 = vperm.xlu0 %2303, %v1160
      %v2305 = vpop.permute.xlu0 %2304
      %2307 = vset.pattern.permute.xlu0 8
      %2308 = vperm.xlu0 %2307, %v1161
      %v2309 = vpop.permute.xlu0 %2308
      %2311 = vset.pattern.permute.xlu0 8
      %2312 = vperm.xlu0 %2311, %v1162
      %v2313 = vpop.permute.xlu0 %2312
      %2315 = vset.pattern.permute.xlu0 8
      %2316 = vperm.xlu0 %2315, %v1163
      %v2317 = vpop.permute.xlu0 %2316
      %2319 = vset.pattern.permute.xlu0 8
      %2320 = vperm.xlu0 %2319, %v1164
      %v2321 = vpop.permute.xlu0 %2320
      %2323 = vset.pattern.permute.xlu0 8
      %2324 = vperm.xlu0 %2323, %v1165
      %v2325 = vpop.permute.xlu0 %2324
      %v2327 = vmul.f32 %v1452, %v2297
      %v2328 = vmul.f32 %v1451, %v2301
      %v2329 = vmul.f32 %v1450, %v2305
      %v2330 = vmul.f32 %v1449, %v2309
      %v2331 = vmul.f32 %v1448, %v2313
      %v2332 = vmul.f32 %v1447, %v2317
      %v2333 = vmul.f32 %v1454, %v2321
      %v2334 = vmul.f32 %v1453, %v2325
      %v2335 = vpack.c.bf16 %v2328, %v2327
      %v2336 = vpack.c.bf16 %v2330, %v2329
      %v2337 = vpack.c.bf16 %v2332, %v2331
      %v2338 = vpack.c.bf16 %v2334, %v2333
      %s2339 = scalar_lea.vmem %s6, 64
      %v2340 = vld [vmem:[%s2339] sm:$0xf]
      %v2341 = vld [vmem:[%s2339 + $0x4] sm:$0x3]
      %v2344 = vunpack.c.l.b16 %v2340
      %v2345 = vunpack.c.l.b16 %v2341
      %v2346 = vpack.c.b16 %v2345, %v2344
      %v2348 = vsel %vm685, %v2335, 0
      %v2351 = vsel %vm685, %v2336, 0
      %v2354 = vsel %vm685, %v2337, 0
      %v2357 = vsel %vm685, %v2338, 0
      %v2360 = vsel %vm1284, %v2346, 0
      %2362 = vmatprep.subr.bf16.mxu0 0
      %2363 = vmatpush1.bf16.msra.mxu0 %v2360
      %2364 = vmatprep.subr.bf16.mxu0 0
      %2365 = vmatpush1.bf16.msra.mxu0 0
      %2366 = vmatprep.subr.bf16.mxu0 0
      %2367 = vmatpush1.bf16.msra.mxu0 0
      %2368 = vmatprep.subr.bf16.mxu0 0
      %2369 = vmatpush1.bf16.msra.mxu0 0
      %2370 = vmatprep.subr.bf16.mxu0 0
      %2371 = vmatpush1.bf16.msra.mxu0 0
      %2372 = vmatprep.subr.bf16.mxu0 0
      %2373 = vmatpush1.bf16.msra.mxu0 0
      %2374 = vmatprep.subr.bf16.mxu0 0
      %2375 = vmatpush1.bf16.msra.mxu0 0
      %2376 = vmatprep.subr.bf16.mxu0 0
      %2377 = vmatpush1.bf16.msra.mxu0 0
      %2378 = vmatprep.subr.bf16.mxu0 0
      %2379 = vmatpush1.bf16.msra.mxu0 0
      %2380 = vmatprep.subr.bf16.mxu0 0
      %2381 = vmatpush1.bf16.msra.mxu0 0
      %2382 = vmatprep.subr.bf16.mxu0 0
      %2383 = vmatpush1.bf16.msra.mxu0 0
      %2384 = vmatprep.subr.bf16.mxu0 0
      %2385 = vmatpush1.bf16.msra.mxu0 0
      %2386 = vmatprep.subr.bf16.mxu0 0
      %2387 = vmatpush1.bf16.msra.mxu0 0
      %2388 = vmatprep.subr.bf16.mxu0 0
      %2389 = vmatpush1.bf16.msra.mxu0 0
      %2390 = vmatprep.subr.bf16.mxu0 0
      %2391 = vmatpush1.bf16.msra.mxu0 0
      %2392 = vmatprep.subr.bf16.mxu0 0
      %2393 = vmatpush1.bf16.msra.mxu0 0
      %2394 = vmatprep.mubr.bf16.mxu0 0
      %2395 = vmatmul.mubr.bf16.gmra.mrb[0].mxu0 %v2348
      %v2396 = vpop.f32.mrb[0].mxu0
      %v2397 = vadd.f32 0.0, %v2396
      %v2398 = vpop.f32.mrb[0].mxu0
      %v2399 = vpop.f32.mrb[0].mxu0
      %v2400 = vadd.f32 0.0, %v2399
      %v2401 = vpop.f32.mrb[0].mxu0
      %2402 = vmatprep.mubr.bf16.mxu0 0
      %2403 = vmatmul.mubr.bf16.gmra.mrb[0].mxu0 %v2351
      %v2404 = vpop.f32.mrb[0].mxu0
      %v2405 = vadd.f32 0.0, %v2404
      %v2406 = vpop.f32.mrb[0].mxu0
      %v2407 = vpop.f32.mrb[0].mxu0
      %v2408 = vadd.f32 0.0, %v2407
      %v2409 = vpop.f32.mrb[0].mxu0
      %2410 = vmatprep.mubr.bf16.mxu0 0
      %2411 = vmatmul.mubr.bf16.gmra.mrb[0].mxu0 %v2354
      %v2412 = vpop.f32.mrb[0].mxu0
      %v2413 = vadd.f32 0.0, %v2412
      %v2414 = vpop.f32.mrb[0].mxu0
      %v2415 = vpop.f32.mrb[0].mxu0
      %v2416 = vadd.f32 0.0, %v2415
      %v2417 = vpop.f32.mrb[0].mxu0
      %2418 = vmatprep.mubr.bf16.mxu0 0
      %2419 = vmatmul.mubr.bf16.gmra.mrb[0].mxu0 %v2357
      %v2420 = vpop.f32.mrb[0].mxu0
      %v2421 = vadd.f32 0.0, %v2420
      %v2422 = vpop.f32.mrb[0].mxu0
      %v2423 = vpop.f32.mrb[0].mxu0
      %v2424 = vadd.f32 0.0, %v2423
      %v2425 = vpop.f32.mrb[0].mxu0
      %2426 = vdwg.mxu0
      %v2427 = vadd.f32 %v2287, %v2397
      %v2428 = vadd.f32 %v2288, %v2400
      %v2429 = vadd.f32 %v2289, %v2405
      %v2430 = vadd.f32 %v2290, %v2408
      %v2431 = vadd.f32 %v2291, %v2413
      %v2432 = vadd.f32 %v2292, %v2416
      %v2433 = vadd.f32 %v2293, %v2421
      %v2434 = vadd.f32 %v2294, %v2424
      %v2436 = vlaneseq
      %v2437 = vshrl.u32 %v2436, 7
      %v2438 = vsub.s32 0, %v2437
      %v2439 = vrot.slane %v1138, %v2438
      %v2441 = vadd.f32 %v2427, %v2439
      %v2442 = vadd.f32 %v2428, %v2439
      %v2443 = vadd.f32 %v2429, %v2439
      %v2444 = vadd.f32 %v2430, %v2439
      %v2445 = vadd.f32 %v2431, %v2439
      %v2446 = vadd.f32 %v2432, %v2439
      %v2447 = vadd.f32 %v2433, %v2439
      %v2448 = vadd.f32 %v2434, %v2439
      %v2449 = vld [vmem:[%s665] sm:$0x1]
      %v2450 = vxor.u32 %v2449, 2147483648
      %v2451 = vmul.f32 %v2450, 1.442695
      %v2452 = vpow.pop %v2451
      %v2453 = vadd.f32 %v2452, 1.0
      %v2454 = vrcp.pop %v2453
      %v2455 = vmul.f32 1.0, %v2454
      %v2456 = vmul.f32 %v2449, %v2455
      %v2457 = vpack.c.bf16 %v2456, %v2456
      %v2458 = vld [vmem:[%s8] sm:$0xf]
      %v2459 = vld [vmem:[%s8 + $0x4] sm:$0xf]
      %v2460 = vld [vmem:[%s9] sm:$0x1]
      %v2463 = vunpack.c.l.b16 %v2458
      %v2464 = vunpack.c.l.b16 %v2459
      %v2465 = vpack.c.b16 %v2464, %v2463
      %vm2467 = vcmask 130048
      %v2469 = vsel %vm2467, %v2457, 0
      %2471 = vmatprep.subr.bf16.mxu0 0
      %2472 = vmatpush1.bf16.msra.mxu0 %v2465
      %2473 = vmatprep.subr.bf16.mxu0 0
      %2474 = vmatpush1.bf16.msra.mxu0 0
      %2475 = vmatprep.subr.bf16.mxu0 0
      %2476 = vmatpush1.bf16.msra.mxu0 0
      %2477 = vmatprep.subr.bf16.mxu0 0
      %2478 = vmatpush1.bf16.msra.mxu0 0
      %2479 = vmatprep.subr.bf16.mxu0 0
      %2480 = vmatpush1.bf16.msra.mxu0 0
      %2481 = vmatprep.subr.bf16.mxu0 0
      %2482 = vmatpush1.bf16.msra.mxu0 0
      %2483 = vmatprep.subr.bf16.mxu0 0
      %2484 = vmatpush1.bf16.msra.mxu0 0
      %2485 = vmatprep.subr.bf16.mxu0 0
      %2486 = vmatpush1.bf16.msra.mxu0 0
      %2487 = vmatprep.subr.bf16.mxu0 0
      %2488 = vmatpush1.bf16.msra.mxu0 0
      %2489 = vmatprep.subr.bf16.mxu0 0
      %2490 = vmatpush1.bf16.msra.mxu0 0
      %2491 = vmatprep.subr.bf16.mxu0 0
      %2492 = vmatpush1.bf16.msra.mxu0 0
      %2493 = vmatprep.subr.bf16.mxu0 0
      %2494 = vmatpush1.bf16.msra.mxu0 0
      %2495 = vmatprep.subr.bf16.mxu0 0
      %2496 = vmatpush1.bf16.msra.mxu0 0
      %2497 = vmatprep.subr.bf16.mxu0 0
      %2498 = vmatpush1.bf16.msra.mxu0 0
      %2499 = vmatprep.subr.bf16.mxu0 0
      %2500 = vmatpush1.bf16.msra.mxu0 0
      %2501 = vmatprep.subr.bf16.mxu0 0
      %2502 = vmatpush1.bf16.msra.mxu0 0
      %2503 = vmatprep.mubr.bf16.mxu0 0
      %2504 = vmatmul.mubr.bf16.gmra.mrb[0].mxu0 %v2469
      %v2505 = vpop.f32.mrb[0].mxu0
      %v2506 = vadd.f32 %v2460, %v2505
      %v2507 = vpop.f32.mrb[0].mxu0
      %v2508 = vpop.f32.mrb[0].mxu0
      %v2509 = vpop.f32.mrb[0].mxu0
      %2510 = vdwg.mxu0
      %v2511 = vlaneseq
      %v2512 = vshrl.u32 %v2511, 7
      %v2513 = vsub.s32 0, %v2512
      %v2514 = vrot.slane %v2506, %v2513
      %v2515 = vadd.f32 %v2441, %v2514
      %v2516 = vadd.f32 %v2442, %v2514
      %v2517 = vadd.f32 %v2443, %v2514
      %v2518 = vadd.f32 %v2444, %v2514
      %v2519 = vadd.f32 %v2445, %v2514
      %v2520 = vadd.f32 %v2446, %v2514
      %v2521 = vadd.f32 %v2447, %v2514
      %v2522 = vadd.f32 %v2448, %v2514
      %v2523 = vld [vmem:[%s10] sm:$0x1]
      %v2524 = vld [vmem:[%s11] sm:$0x1]
      %v2525 = vld [vmem:[%s12] sm:$0xff]
      %v2526 = vld [vmem:[%s13] sm:$0x3]
      %vm2527 = vcmask 64512
      %v2528 = vsel %vm2527, %v2515, 0.0
      %v2529 = vsel %vm2527, %v2516, 0.0
      %v2530 = vadd.f32 %v2528, %v2529
      %v2531 = vsel %vm2527, %v2517, 0.0
      %v2532 = vadd.f32 %v2530, %v2531
      %v2533 = vsel %vm2527, %v2518, 0.0
      %v2534 = vadd.f32 %v2532, %v2533
      %v2535 = vsel %vm2527, %v2519, 0.0
      %v2536 = vadd.f32 %v2534, %v2535
      %v2537 = vsel %vm2527, %v2520, 0.0
      %v2538 = vadd.f32 %v2536, %v2537
      %v2539 = vsel %vm2527, %v2521, 0.0
      %v2540 = vadd.f32 %v2538, %v2539
      %v2541 = vsel %vm2527, %v2522, 0.0
      %v2542 = vadd.f32 %v2540, %v2541
      %v2543 = vrot.slane %v2542, 4
      %v2544 = vadd.f32 %v2542, %v2543
      %v2545 = vrot.slane %v2544, 2
      %v2546 = vadd.f32 %v2544, %v2545
      %v2547 = vrot.slane %v2546, 1
      %v2548 = vadd.f32 %v2546, %v2547
      %v2550 = vsel %vm2527, %v2548, 0
      %2552 = vmatprep.subr.mxu0 0.0
      %2553 = vmatpush1.msra.mxu0 %v2525
      %2554 = vmatprep.subr.mxu0 0.0
      %2555 = vmatpush1.msra.mxu0 0.0
      %2556 = vmatprep.subr.mxu0 0.0
      %2557 = vmatpush1.msra.mxu0 0.0
      %2558 = vmatprep.subr.mxu0 0.0
      %2559 = vmatpush1.msra.mxu0 0.0
      %2560 = vmatprep.subr.mxu0 0.0
      %2561 = vmatpush1.msra.mxu0 0.0
      %2562 = vmatprep.subr.mxu0 0.0
      %2563 = vmatpush1.msra.mxu0 0.0
      %2564 = vmatprep.subr.mxu0 0.0
      %2565 = vmatpush1.msra.mxu0 0.0
      %2566 = vmatprep.subr.mxu0 0.0
      %2567 = vmatpush1.msra.mxu0 0.0
      %2568 = vmatprep.subr.mxu0 0.0
      %2569 = vmatpush1.msra.mxu0 0.0
      %2570 = vmatprep.subr.mxu0 0.0
      %2571 = vmatpush1.msra.mxu0 0.0
      %2572 = vmatprep.subr.mxu0 0.0
      %2573 = vmatpush1.msra.mxu0 0.0
      %2574 = vmatprep.subr.mxu0 0.0
      %2575 = vmatpush1.msra.mxu0 0.0
      %2576 = vmatprep.subr.mxu0 0.0
      %2577 = vmatpush1.msra.mxu0 0.0
      %2578 = vmatprep.subr.mxu0 0.0
      %2579 = vmatpush1.msra.mxu0 0.0
      %2580 = vmatprep.subr.mxu0 0.0
      %2581 = vmatpush1.msra.mxu0 0.0
      %2582 = vmatprep.subr.mxu0 0.0
      %2583 = vmatpush1.msra.mxu0 0.0
      %2584 = vmatprep.subr.mxu0 0.0
      %2585 = vmatpush1.msra.mxu0 0.0
      %2586 = vmatprep.subr.mxu0 0.0
      %2587 = vmatpush1.msra.mxu0 0.0
      %2588 = vmatprep.subr.mxu0 0.0
      %2589 = vmatpush1.msra.mxu0 0.0
      %2590 = vmatprep.subr.mxu0 0.0
      %2591 = vmatpush1.msra.mxu0 0.0
      %2592 = vmatprep.subr.mxu0 0.0
      %2593 = vmatpush1.msra.mxu0 0.0
      %2594 = vmatprep.subr.mxu0 0.0
      %2595 = vmatpush1.msra.mxu0 0.0
      %2596 = vmatprep.subr.mxu0 0.0
      %2597 = vmatpush1.msra.mxu0 0.0
      %2598 = vmatprep.subr.mxu0 0.0
      %2599 = vmatpush1.msra.mxu0 0.0
      %2600 = vmatprep.subr.mxu0 0.0
      %2601 = vmatpush1.msra.mxu0 0.0
      %2602 = vmatprep.subr.mxu0 0.0
      %2603 = vmatpush1.msra.mxu0 0.0
      %2604 = vmatprep.subr.mxu0 0.0
      %2605 = vmatpush1.msra.mxu0 0.0
      %2606 = vmatprep.subr.mxu0 0.0
      %2607 = vmatpush1.msra.mxu0 0.0
      %2608 = vmatprep.subr.mxu0 0.0
      %2609 = vmatpush1.msra.mxu0 0.0
      %2610 = vmatprep.subr.mxu0 0.0
      %2611 = vmatpush1.msra.mxu0 0.0
      %2612 = vmatprep.subr.mxu0 0.0
      %2613 = vmatpush1.msra.mxu0 0.0
      %2614 = vmatprep.subr.mxu0 0.0
      %2615 = vmatpush1.msra.mxu0 0.0
      %2616 = vmatprep.mubr.f32.mxu0 0.0
      %2617 = vmatmul.mubr.f32.gmra.mrb[0].mxu0 %v2550
      %v2618 = vpop.f32.mrb[0].mxu0
      %v2619 = vadd.f32 0.0, %v2618
      %v2620 = vpop.f32.mrb[0].mxu0
      %2621 = vdwg.mxu0
      %v2622 = vmul.f32 %v2515, %v2515
      %v2623 = vmul.f32 %v2516, %v2516
      %v2624 = vmul.f32 %v2517, %v2517
      %v2625 = vmul.f32 %v2518, %v2518
      %v2626 = vmul.f32 %v2519, %v2519
      %v2627 = vmul.f32 %v2520, %v2520
      %v2628 = vmul.f32 %v2521, %v2521
      %v2629 = vmul.f32 %v2522, %v2522
      %v2630 = vsel %vm2527, %v2622, 0.0
      %v2631 = vsel %vm2527, %v2623, 0.0
      %v2632 = vadd.f32 %v2630, %v2631
      %v2633 = vsel %vm2527, %v2624, 0.0
      %v2634 = vadd.f32 %v2632, %v2633
      %v2635 = vsel %vm2527, %v2625, 0.0
      %v2636 = vadd.f32 %v2634, %v2635
      %v2637 = vsel %vm2527, %v2626, 0.0
      %v2638 = vadd.f32 %v2636, %v2637
      %v2639 = vsel %vm2527, %v2627, 0.0
      %v2640 = vadd.f32 %v2638, %v2639
      %v2641 = vsel %vm2527, %v2628, 0.0
      %v2642 = vadd.f32 %v2640, %v2641
      %v2643 = vsel %vm2527, %v2629, 0.0
      %v2644 = vadd.f32 %v2642, %v2643
      %v2645 = vrot.slane %v2644, 4
      %v2646 = vadd.f32 %v2644, %v2645
      %v2647 = vrot.slane %v2646, 2
      %v2648 = vadd.f32 %v2646, %v2647
      %v2649 = vrot.slane %v2648, 1
      %v2650 = vadd.f32 %v2648, %v2649
      %v2652 = vsel %vm2527, %v2650, 0
      %2654 = vmatprep.subr.mxu0 0.0
      %2655 = vmatpush1.msra.mxu0 %v2525
      %2656 = vmatprep.subr.mxu0 0.0
      %2657 = vmatpush1.msra.mxu0 0.0
      %2658 = vmatprep.subr.mxu0 0.0
      %2659 = vmatpush1.msra.mxu0 0.0
      %2660 = vmatprep.subr.mxu0 0.0
      %2661 = vmatpush1.msra.mxu0 0.0
      %2662 = vmatprep.subr.mxu0 0.0
      %2663 = vmatpush1.msra.mxu0 0.0
      %2664 = vmatprep.subr.mxu0 0.0
      %2665 = vmatpush1.msra.mxu0 0.0
      %2666 = vmatprep.subr.mxu0 0.0
      %2667 = vmatpush1.msra.mxu0 0.0
      %2668 = vmatprep.subr.mxu0 0.0
      %2669 = vmatpush1.msra.mxu0 0.0
      %2670 = vmatprep.subr.mxu0 0.0
      %2671 = vmatpush1.msra.mxu0 0.0
      %2672 = vmatprep.subr.mxu0 0.0
      %2673 = vmatpush1.msra.mxu0 0.0
      %2674 = vmatprep.subr.mxu0 0.0
      %2675 = vmatpush1.msra.mxu0 0.0
      %2676 = vmatprep.subr.mxu0 0.0
      %2677 = vmatpush1.msra.mxu0 0.0
      %2678 = vmatprep.subr.mxu0 0.0
      %2679 = vmatpush1.msra.mxu0 0.0
      %2680 = vmatprep.subr.mxu0 0.0
      %2681 = vmatpush1.msra.mxu0 0.0
      %2682 = vmatprep.subr.mxu0 0.0
      %2683 = vmatpush1.msra.mxu0 0.0
      %2684 = vmatprep.subr.mxu0 0.0
      %2685 = vmatpush1.msra.mxu0 0.0
      %2686 = vmatprep.subr.mxu0 0.0
      %2687 = vmatpush1.msra.mxu0 0.0
      %2688 = vmatprep.subr.mxu0 0.0
      %2689 = vmatpush1.msra.mxu0 0.0
      %2690 = vmatprep.subr.mxu0 0.0
      %2691 = vmatpush1.msra.mxu0 0.0
      %2692 = vmatprep.subr.mxu0 0.0
      %2693 = vmatpush1.msra.mxu0 0.0
      %2694 = vmatprep.subr.mxu0 0.0
      %2695 = vmatpush1.msra.mxu0 0.0
      %2696 = vmatprep.subr.mxu0 0.0
      %2697 = vmatpush1.msra.mxu0 0.0
      %2698 = vmatprep.subr.mxu0 0.0
      %2699 = vmatpush1.msra.mxu0 0.0
      %2700 = vmatprep.subr.mxu0 0.0
      %2701 = vmatpush1.msra.mxu0 0.0
      %2702 = vmatprep.subr.mxu0 0.0
      %2703 = vmatpush1.msra.mxu0 0.0
      %2704 = vmatprep.subr.mxu0 0.0
      %2705 = vmatpush1.msra.mxu0 0.0
      %2706 = vmatprep.subr.mxu0 0.0
      %2707 = vmatpush1.msra.mxu0 0.0
      %2708 = vmatprep.subr.mxu0 0.0
      %2709 = vmatpush1.msra.mxu0 0.0
      %2710 = vmatprep.subr.mxu0 0.0
      %2711 = vmatpush1.msra.mxu0 0.0
      %2712 = vmatprep.subr.mxu0 0.0
      %2713 = vmatpush1.msra.mxu0 0.0
      %2714 = vmatprep.subr.mxu0 0.0
      %2715 = vmatpush1.msra.mxu0 0.0
      %2716 = vmatprep.subr.mxu0 0.0
      %2717 = vmatpush1.msra.mxu0 0.0
      %2718 = vmatprep.mubr.f32.mxu0 0.0
      %2719 = vmatmul.mubr.f32.gmra.mrb[0].mxu0 %v2652
      %v2720 = vpop.f32.mrb[0].mxu0
      %v2721 = vadd.f32 0.0, %v2720
      %v2722 = vpop.f32.mrb[0].mxu0
      %2723 = vdwg.mxu0
      %v2724 = vmul.f32 %v2619, 0.00390625
      %v2725 = vmul.f32 %v2721, 0.00390625
      %v2726 = vmul.f32 %v2724, %v2724
      %v2727 = vsub.f32 %v2725, %v2726
      %v2728 = vadd.f32 %v2727, 1e-05
      %v2729 = vrsqrt.pop %v2728
      %v2731 = vsel %vm892, %v2724, 0
      %v2734 = vsel %vm896, %v2526, 0
      %2736 = vmatprep.subr.mxu0 0.0
      %2737 = vmatpush1.msra.mxu0 %v2734
      %2738 = vmatprep.subr.mxu0 0.0
      %2739 = vmatpush1.msra.mxu0 0.0
      %2740 = vmatprep.subr.mxu0 0.0
      %2741 = vmatpush1.msra.mxu0 0.0
      %2742 = vmatprep.subr.mxu0 0.0
      %2743 = vmatpush1.msra.mxu0 0.0
      %2744 = vmatprep.subr.mxu0 0.0
      %2745 = vmatpush1.msra.mxu0 0.0
      %2746 = vmatprep.subr.mxu0 0.0
      %2747 = vmatpush1.msra.mxu0 0.0
      %2748 = vmatprep.subr.mxu0 0.0
      %2749 = vmatpush1.msra.mxu0 0.0
      %2750 = vmatprep.subr.mxu0 0.0
      %2751 = vmatpush1.msra.mxu0 0.0
      %2752 = vmatprep.subr.mxu0 0.0
      %2753 = vmatpush1.msra.mxu0 0.0
      %2754 = vmatprep.subr.mxu0 0.0
      %2755 = vmatpush1.msra.mxu0 0.0
      %2756 = vmatprep.subr.mxu0 0.0
      %2757 = vmatpush1.msra.mxu0 0.0
      %2758 = vmatprep.subr.mxu0 0.0
      %2759 = vmatpush1.msra.mxu0 0.0
      %2760 = vmatprep.subr.mxu0 0.0
      %2761 = vmatpush1.msra.mxu0 0.0
      %2762 = vmatprep.subr.mxu0 0.0
      %2763 = vmatpush1.msra.mxu0 0.0
      %2764 = vmatprep.subr.mxu0 0.0
      %2765 = vmatpush1.msra.mxu0 0.0
      %2766 = vmatprep.subr.mxu0 0.0
      %2767 = vmatpush1.msra.mxu0 0.0
      %2768 = vmatprep.subr.mxu0 0.0
      %2769 = vmatpush1.msra.mxu0 0.0
      %2770 = vmatprep.subr.mxu0 0.0
      %2771 = vmatpush1.msra.mxu0 0.0
      %2772 = vmatprep.subr.mxu0 0.0
      %2773 = vmatpush1.msra.mxu0 0.0
      %2774 = vmatprep.subr.mxu0 0.0
      %2775 = vmatpush1.msra.mxu0 0.0
      %2776 = vmatprep.subr.mxu0 0.0
      %2777 = vmatpush1.msra.mxu0 0.0
      %2778 = vmatprep.subr.mxu0 0.0
      %2779 = vmatpush1.msra.mxu0 0.0
      %2780 = vmatprep.subr.mxu0 0.0
      %2781 = vmatpush1.msra.mxu0 0.0
      %2782 = vmatprep.subr.mxu0 0.0
      %2783 = vmatpush1.msra.mxu0 0.0
      %2784 = vmatprep.subr.mxu0 0.0
      %2785 = vmatpush1.msra.mxu0 0.0
      %2786 = vmatprep.subr.mxu0 0.0
      %2787 = vmatpush1.msra.mxu0 0.0
      %2788 = vmatprep.subr.mxu0 0.0
      %2789 = vmatpush1.msra.mxu0 0.0
      %2790 = vmatprep.subr.mxu0 0.0
      %2791 = vmatpush1.msra.mxu0 0.0
      %2792 = vmatprep.subr.mxu0 0.0
      %2793 = vmatpush1.msra.mxu0 0.0
      %2794 = vmatprep.subr.mxu0 0.0
      %2795 = vmatpush1.msra.mxu0 0.0
      %2796 = vmatprep.subr.mxu0 0.0
      %2797 = vmatpush1.msra.mxu0 0.0
      %2798 = vmatprep.subr.mxu0 0.0
      %2799 = vmatpush1.msra.mxu0 0.0
      %2800 = vmatprep.mubr.f32.mxu0 0.0
      %2801 = vmatmul.mubr.f32.gmra.mrb[0].mxu0 %v2731
      %v2802 = vpop.f32.mrb[0].mxu0
      %v2803 = vadd.f32 0.0, %v2802
      %v2804 = vpop.f32.mrb[0].mxu0
      %2805 = vdwg.mxu0
      %v2807 = vsel %vm892, %v2729, 0
      %2809 = vmatprep.subr.mxu0 0.0
      %2810 = vmatpush1.msra.mxu0 %v2734
      %2811 = vmatprep.subr.mxu0 0.0
      %2812 = vmatpush1.msra.mxu0 0.0
      %2813 = vmatprep.subr.mxu0 0.0
      %2814 = vmatpush1.msra.mxu0 0.0
      %2815 = vmatprep.subr.mxu0 0.0
      %2816 = vmatpush1.msra.mxu0 0.0
      %2817 = vmatprep.subr.mxu0 0.0
      %2818 = vmatpush1.msra.mxu0 0.0
      %2819 = vmatprep.subr.mxu0 0.0
      %2820 = vmatpush1.msra.mxu0 0.0
      %2821 = vmatprep.subr.mxu0 0.0
      %2822 = vmatpush1.msra.mxu0 0.0
      %2823 = vmatprep.subr.mxu0 0.0
      %2824 = vmatpush1.msra.mxu0 0.0
      %2825 = vmatprep.subr.mxu0 0.0
      %2826 = vmatpush1.msra.mxu0 0.0
      %2827 = vmatprep.subr.mxu0 0.0
      %2828 = vmatpush1.msra.mxu0 0.0
      %2829 = vmatprep.subr.mxu0 0.0
      %2830 = vmatpush1.msra.mxu0 0.0
      %2831 = vmatprep.subr.mxu0 0.0
      %2832 = vmatpush1.msra.mxu0 0.0
      %2833 = vmatprep.subr.mxu0 0.0
      %2834 = vmatpush1.msra.mxu0 0.0
      %2835 = vmatprep.subr.mxu0 0.0
      %2836 = vmatpush1.msra.mxu0 0.0
      %2837 = vmatprep.subr.mxu0 0.0
      %2838 = vmatpush1.msra.mxu0 0.0
      %2839 = vmatprep.subr.mxu0 0.0
      %2840 = vmatpush1.msra.mxu0 0.0
      %2841 = vmatprep.subr.mxu0 0.0
      %2842 = vmatpush1.msra.mxu0 0.0
      %2843 = vmatprep.subr.mxu0 0.0
      %2844 = vmatpush1.msra.mxu0 0.0
      %2845 = vmatprep.subr.mxu0 0.0
      %2846 = vmatpush1.msra.mxu0 0.0
      %2847 = vmatprep.subr.mxu0 0.0
      %2848 = vmatpush1.msra.mxu0 0.0
      %2849 = vmatprep.subr.mxu0 0.0
      %2850 = vmatpush1.msra.mxu0 0.0
      %2851 = vmatprep.subr.mxu0 0.0
      %2852 = vmatpush1.msra.mxu0 0.0
      %2853 = vmatprep.subr.mxu0 0.0
      %2854 = vmatpush1.msra.mxu0 0.0
      %2855 = vmatprep.subr.mxu0 0.0
      %2856 = vmatpush1.msra.mxu0 0.0
      %2857 = vmatprep.subr.mxu0 0.0
      %2858 = vmatpush1.msra.mxu0 0.0
      %2859 = vmatprep.subr.mxu0 0.0
      %2860 = vmatpush1.msra.mxu0 0.0
      %2861 = vmatprep.subr.mxu0 0.0
      %2862 = vmatpush1.msra.mxu0 0.0
      %2863 = vmatprep.subr.mxu0 0.0
      %2864 = vmatpush1.msra.mxu0 0.0
      %2865 = vmatprep.subr.mxu0 0.0
      %2866 = vmatpush1.msra.mxu0 0.0
      %2867 = vmatprep.subr.mxu0 0.0
      %2868 = vmatpush1.msra.mxu0 0.0
      %2869 = vmatprep.subr.mxu0 0.0
      %2870 = vmatpush1.msra.mxu0 0.0
      %2871 = vmatprep.subr.mxu0 0.0
      %2872 = vmatpush1.msra.mxu0 0.0
      %2873 = vmatprep.mubr.f32.mxu0 0.0
      %2874 = vmatmul.mubr.f32.gmra.mrb[0].mxu0 %v2807
      %v2875 = vpop.f32.mrb[0].mxu0
      %v2876 = vadd.f32 0.0, %v2875
      %v2877 = vpop.f32.mrb[0].mxu0
      %2878 = vdwg.mxu0
      %v2879 = vlaneseq
      %v2880 = vshrl.u32 %v2879, 7
      %v2881 = vsub.s32 0, %v2880
      %v2882 = vrot.slane %v2803, %v2881
      %v2883 = vsub.f32 %v2515, %v2882
      %v2884 = vsub.f32 %v2516, %v2882
      %v2885 = vsub.f32 %v2517, %v2882
      %v2886 = vsub.f32 %v2518, %v2882
      %v2887 = vsub.f32 %v2519, %v2882
      %v2888 = vsub.f32 %v2520, %v2882
      %v2889 = vsub.f32 %v2521, %v2882
      %v2890 = vsub.f32 %v2522, %v2882
      %v2891 = vmul.f32 %v2876, %v2523
      %v2892 = vlaneseq
      %v2893 = vshrl.u32 %v2892, 7
      %v2894 = vsub.s32 0, %v2893
      %v2895 = vrot.slane %v2891, %v2894
      %v2896 = vmul.f32 %v2883, %v2895
      %v2897 = vmul.f32 %v2884, %v2895
      %v2898 = vmul.f32 %v2885, %v2895
      %v2899 = vmul.f32 %v2886, %v2895
      %v2900 = vmul.f32 %v2887, %v2895
      %v2901 = vmul.f32 %v2888, %v2895
      %v2902 = vmul.f32 %v2889, %v2895
      %v2903 = vmul.f32 %v2890, %v2895
      %v2905 = vlaneseq
      %v2906 = vshrl.u32 %v2905, 7
      %v2907 = vsub.s32 0, %v2906
      %v2908 = vrot.slane %v2524, %v2907
      %v2910 = vadd.f32 %v2896, %v2908
      %v2911 = vadd.f32 %v2897, %v2908
      %v2912 = vadd.f32 %v2898, %v2908
      %v2913 = vadd.f32 %v2899, %v2908
      %v2914 = vadd.f32 %v2900, %v2908
      %v2915 = vadd.f32 %v2901, %v2908
      %v2916 = vadd.f32 %v2902, %v2908
      %v2917 = vadd.f32 %v2903, %v2908
      %v2918 = vxor.u32 %v2910, 2147483648
      %v2919 = vxor.u32 %v2911, 2147483648
      %v2920 = vxor.u32 %v2912, 2147483648
      %v2921 = vxor.u32 %v2913, 2147483648
      %v2922 = vxor.u32 %v2914, 2147483648
      %v2923 = vxor.u32 %v2915, 2147483648
      %v2924 = vxor.u32 %v2916, 2147483648
      %v2925 = vxor.u32 %v2917, 2147483648
      %v2926 = vmul.f32 %v2918, 1.442695
      %v2927 = vpow.pop %v2926
      %v2928 = vmul.f32 %v2919, 1.442695
      %v2929 = vpow.pop %v2928
      %v2930 = vmul.f32 %v2920, 1.442695
      %v2931 = vpow.pop %v2930
      %v2932 = vmul.f32 %v2921, 1.442695
      %v2933 = vpow.pop %v2932
      %v2934 = vmul.f32 %v2922, 1.442695
      %v2935 = vpow.pop %v2934
      %v2936 = vmul.f32 %v2923, 1.442695
      %v2937 = vpow.pop %v2936
      %v2938 = vmul.f32 %v2924, 1.442695
      %v2939 = vpow.pop %v2938
      %v2940 = vmul.f32 %v2925, 1.442695
      %v2941 = vpow.pop %v2940
      %v2942 = vadd.f32 %v2927, 1.0
      %v2943 = vadd.f32 %v2929, 1.0
      %v2944 = vadd.f32 %v2931, 1.0
      %v2945 = vadd.f32 %v2933, 1.0
      %v2946 = vadd.f32 %v2935, 1.0
      %v2947 = vadd.f32 %v2937, 1.0
      %v2948 = vadd.f32 %v2939, 1.0
      %v2949 = vadd.f32 %v2941, 1.0
      %v2950 = vrcp.pop %v2942
      %v2951 = vmul.f32 1.0, %v2950
      %v2952 = vrcp.pop %v2943
      %v2953 = vmul.f32 1.0, %v2952
      %v2954 = vrcp.pop %v2944
      %v2955 = vmul.f32 1.0, %v2954
      %v2956 = vrcp.pop %v2945
      %v2957 = vmul.f32 1.0, %v2956
      %v2958 = vrcp.pop %v2946
      %v2959 = vmul.f32 1.0, %v2958
      %v2960 = vrcp.pop %v2947
      %v2961 = vmul.f32 1.0, %v2960
      %v2962 = vrcp.pop %v2948
      %v2963 = vmul.f32 1.0, %v2962
      %v2964 = vrcp.pop %v2949
      %v2965 = vmul.f32 1.0, %v2964
      %v2966 = vmul.f32 %v2910, %v2951
      %v2967 = vmul.f32 %v2911, %v2953
      %v2968 = vmul.f32 %v2912, %v2955
      %v2969 = vmul.f32 %v2913, %v2957
      %v2970 = vmul.f32 %v2914, %v2959
      %v2971 = vmul.f32 %v2915, %v2961
      %v2972 = vmul.f32 %v2916, %v2963
      %v2973 = vmul.f32 %v2917, %v2965
      %v2974 = vld [vmem:[%s15] sm:$0x1]
      %v2975 = vrot.slane %v2966, 7
      %v2976 = vrot.slane %v2967, 7
      %v2977 = vrot.slane %v2968, 7
      %v2978 = vrot.slane %v2969, 7
      %v2979 = vrot.slane %v2970, 7
      %v2980 = vrot.slane %v2971, 7
      %v2981 = vrot.slane %v2972, 7
      %v2982 = vrot.slane %v2973, 7
      %v2983 = vsel %vm1149, %v2981, %v2982
      %v2984 = vsel %vm1149, %v2980, %v2981
      %v2985 = vsel %vm1149, %v2979, %v2980
      %v2986 = vsel %vm1149, %v2978, %v2979
      %v2987 = vsel %vm1149, %v2977, %v2978
      %v2988 = vsel %vm1149, %v2976, %v2977
      %v2989 = vsel %vm1149, %v2975, %v2976
      %v2990 = vsel %vm1149, %v2982, %v2975
      %v2991 = vmul.f32 %v2983, %v1169
      %v2992 = vmul.f32 %v2990, %v1174
      %v2993 = vmul.f32 %v2989, %v1179
      %v2994 = vmul.f32 %v2988, %v1184
      %v2995 = vmul.f32 %v2987, %v1189
      %v2996 = vmul.f32 %v2986, %v1194
      %v2997 = vmul.f32 %v2985, %v1199
      %v2998 = vmul.f32 %v2984, %v1204
      %v2999 = vpack.c.bf16 %v2992, %v2991
      %v3000 = vpack.c.bf16 %v2994, %v2993
      %v3001 = vpack.c.bf16 %v2996, %v2995
      %v3002 = vpack.c.bf16 %v2998, %v2997
      %v3003 = vld [vmem:[%s14] sm:$0xf]
      %v3004 = vmul.f32 %v2973, %v1222
      %v3005 = vmul.f32 %v2966, %v1226
      %v3006 = vmul.f32 %v2967, %v1230
      %v3007 = vmul.f32 %v2968, %v1234
      %v3008 = vmul.f32 %v2969, %v1238
      %v3009 = vmul.f32 %v2970, %v1242
      %v3010 = vmul.f32 %v2971, %v1246
      %v3011 = vmul.f32 %v2972, %v1250
      %v3012 = vpack.c.bf16 %v3005, %v3004
      %v3013 = vpack.c.bf16 %v3007, %v3006
      %v3014 = vpack.c.bf16 %v3009, %v3008
      %v3015 = vpack.c.bf16 %v3011, %v3010
      %s3016 = scalar_lea.vmem %s14, 4
      %v3017 = vld [vmem:[%s3016] sm:$0xf]
      %v3019 = vsel %vm2527, %v3012, 0
      %v3022 = vsel %vm2527, %v3013, 0
      %v3025 = vsel %vm2527, %v3014, 0
      %v3028 = vsel %vm2527, %v3015, 0
      %v3031 = vsel %vm710, %v3017, 0
      %3033 = vmatprep.subr.bf16.mxu0 0
      %3034 = vmatpush1.bf16.msra.mxu0 %v3031
      %3035 = vmatprep.subr.bf16.mxu0 0
      %3036 = vmatpush1.bf16.msra.mxu0 0
      %3037 = vmatprep.subr.bf16.mxu0 0
      %3038 = vmatpush1.bf16.msra.mxu0 0
      %3039 = vmatprep.subr.bf16.mxu0 0
      %3040 = vmatpush1.bf16.msra.mxu0 0
      %3041 = vmatprep.subr.bf16.mxu0 0
      %3042 = vmatpush1.bf16.msra.mxu0 0
      %3043 = vmatprep.subr.bf16.mxu0 0
      %3044 = vmatpush1.bf16.msra.mxu0 0
      %3045 = vmatprep.subr.bf16.mxu0 0
      %3046 = vmatpush1.bf16.msra.mxu0 0
      %3047 = vmatprep.subr.bf16.mxu0 0
      %3048 = vmatpush1.bf16.msra.mxu0 0
      %3049 = vmatprep.subr.bf16.mxu0 0
      %3050 = vmatpush1.bf16.msra.mxu0 0
      %3051 = vmatprep.subr.bf16.mxu0 0
      %3052 = vmatpush1.bf16.msra.mxu0 0
      %3053 = vmatprep.subr.bf16.mxu0 0
      %3054 = vmatpush1.bf16.msra.mxu0 0
      %3055 = vmatprep.subr.bf16.mxu0 0
      %3056 = vmatpush1.bf16.msra.mxu0 0
      %3057 = vmatprep.subr.bf16.mxu0 0
      %3058 = vmatpush1.bf16.msra.mxu0 0
      %3059 = vmatprep.subr.bf16.mxu0 0
      %3060 = vmatpush1.bf16.msra.mxu0 0
      %3061 = vmatprep.subr.bf16.mxu0 0
      %3062 = vmatpush1.bf16.msra.mxu0 0
      %3063 = vmatprep.subr.bf16.mxu0 0
      %3064 = vmatpush1.bf16.msra.mxu0 0
      %3065 = vmatprep.mubr.bf16.mxu0 0
      %3066 = vmatmul.mubr.bf16.gmra.mrb[0].mxu0 %v3019
      %v3067 = vpop.f32.mrb[0].mxu0
      %v3068 = vadd.f32 0.0, %v3067
      %v3069 = vpop.f32.mrb[0].mxu0
      %v3070 = vpop.f32.mrb[0].mxu0
      %v3071 = vadd.f32 0.0, %v3070
      %v3072 = vpop.f32.mrb[0].mxu0
      %3073 = vmatprep.mubr.bf16.mxu0 0
      %3074 = vmatmul.mubr.bf16.gmra.mrb[0].mxu0 %v3022
      %v3075 = vpop.f32.mrb[0].mxu0
      %v3076 = vadd.f32 0.0, %v3075
      %v3077 = vpop.f32.mrb[0].mxu0
      %v3078 = vpop.f32.mrb[0].mxu0
      %v3079 = vadd.f32 0.0, %v3078
      %v3080 = vpop.f32.mrb[0].mxu0
      %3081 = vmatprep.mubr.bf16.mxu0 0
      %3082 = vmatmul.mubr.bf16.gmra.mrb[0].mxu0 %v3025
      %v3083 = vpop.f32.mrb[0].mxu0
      %v3084 = vadd.f32 0.0, %v3083
      %v3085 = vpop.f32.mrb[0].mxu0
      %v3086 = vpop.f32.mrb[0].mxu0
      %v3087 = vadd.f32 0.0, %v3086
      %v3088 = vpop.f32.mrb[0].mxu0
      %3089 = vmatprep.mubr.bf16.mxu0 0
      %3090 = vmatmul.mubr.bf16.gmra.mrb[0].mxu0 %v3028
      %v3091 = vpop.f32.mrb[0].mxu0
      %v3092 = vadd.f32 0.0, %v3091
      %v3093 = vpop.f32.mrb[0].mxu0
      %v3094 = vpop.f32.mrb[0].mxu0
      %v3095 = vadd.f32 0.0, %v3094
      %v3096 = vpop.f32.mrb[0].mxu0
      %3097 = vdwg.mxu0
      %v3099 = vsel %vm2527, %v2999, 0
      %v3102 = vsel %vm2527, %v3000, 0
      %v3105 = vsel %vm2527, %v3001, 0
      %v3108 = vsel %vm2527, %v3002, 0
      %v3111 = vsel %vm710, %v3003, 0
      %3113 = vmatprep.subr.bf16.mxu0 0
      %3114 = vmatpush1.bf16.msra.mxu0 %v3111
      %3115 = vmatprep.subr.bf16.mxu0 0
      %3116 = vmatpush1.bf16.msra.mxu0 0
      %3117 = vmatprep.subr.bf16.mxu0 0
      %3118 = vmatpush1.bf16.msra.mxu0 0
      %3119 = vmatprep.subr.bf16.mxu0 0
      %3120 = vmatpush1.bf16.msra.mxu0 0
      %3121 = vmatprep.subr.bf16.mxu0 0
      %3122 = vmatpush1.bf16.msra.mxu0 0
      %3123 = vmatprep.subr.bf16.mxu0 0
      %3124 = vmatpush1.bf16.msra.mxu0 0
      %3125 = vmatprep.subr.bf16.mxu0 0
      %3126 = vmatpush1.bf16.msra.mxu0 0
      %3127 = vmatprep.subr.bf16.mxu0 0
      %3128 = vmatpush1.bf16.msra.mxu0 0
      %3129 = vmatprep.subr.bf16.mxu0 0
      %3130 = vmatpush1.bf16.msra.mxu0 0
      %3131 = vmatprep.subr.bf16.mxu0 0
      %3132 = vmatpush1.bf16.msra.mxu0 0
      %3133 = vmatprep.subr.bf16.mxu0 0
      %3134 = vmatpush1.bf16.msra.mxu0 0
      %3135 = vmatprep.subr.bf16.mxu0 0
      %3136 = vmatpush1.bf16.msra.mxu0 0
      %3137 = vmatprep.subr.bf16.mxu0 0
      %3138 = vmatpush1.bf16.msra.mxu0 0
      %3139 = vmatprep.subr.bf16.mxu0 0
      %3140 = vmatpush1.bf16.msra.mxu0 0
      %3141 = vmatprep.subr.bf16.mxu0 0
      %3142 = vmatpush1.bf16.msra.mxu0 0
      %3143 = vmatprep.subr.bf16.mxu0 0
      %3144 = vmatpush1.bf16.msra.mxu0 0
      %3145 = vmatprep.mubr.bf16.mxu0 0
      %3146 = vmatmul.mubr.bf16.gmra.mrb[0].mxu0 %v3099
      %v3147 = vpop.f32.mrb[0].mxu0
      %v3148 = vadd.f32 %v3068, %v3147
      %v3149 = vpop.f32.mrb[0].mxu0
      %v3150 = vpop.f32.mrb[0].mxu0
      %v3151 = vadd.f32 %v3071, %v3150
      %v3152 = vpop.f32.mrb[0].mxu0
      %3153 = vmatprep.mubr.bf16.mxu0 0
      %3154 = vmatmul.mubr.bf16.gmra.mrb[0].mxu0 %v3102
      %v3155 = vpop.f32.mrb[0].mxu0
      %v3156 = vadd.f32 %v3076, %v3155
      %v3157 = vpop.f32.mrb[0].mxu0
      %v3158 = vpop.f32.mrb[0].mxu0
      %v3159 = vadd.f32 %v3079, %v3158
      %v3160 = vpop.f32.mrb[0].mxu0
      %3161 = vmatprep.mubr.bf16.mxu0 0
      %3162 = vmatmul.mubr.bf16.gmra.mrb[0].mxu0 %v3105
      %v3163 = vpop.f32.mrb[0].mxu0
      %v3164 = vadd.f32 %v3084, %v3163
      %v3165 = vpop.f32.mrb[0].mxu0
      %v3166 = vpop.f32.mrb[0].mxu0
      %v3167 = vadd.f32 %v3087, %v3166
      %v3168 = vpop.f32.mrb[0].mxu0
      %3169 = vmatprep.mubr.bf16.mxu0 0
      %3170 = vmatmul.mubr.bf16.gmra.mrb[0].mxu0 %v3108
      %v3171 = vpop.f32.mrb[0].mxu0
      %v3172 = vadd.f32 %v3092, %v3171
      %v3173 = vpop.f32.mrb[0].mxu0
      %v3174 = vpop.f32.mrb[0].mxu0
      %v3175 = vadd.f32 %v3095, %v3174
      %v3176 = vpop.f32.mrb[0].mxu0
      %3177 = vdwg.mxu0
      %v3178 = vrot.slane %v2966, 1
      %v3179 = vrot.slane %v2967, 1
      %v3180 = vrot.slane %v2968, 1
      %v3181 = vrot.slane %v2969, 1
      %v3182 = vrot.slane %v2970, 1
      %v3183 = vrot.slane %v2971, 1
      %v3184 = vrot.slane %v2972, 1
      %v3185 = vrot.slane %v2973, 1
      %v3186 = vsel %vm1446, %v3184, %v3185
      %v3187 = vsel %vm1446, %v3183, %v3184
      %v3188 = vsel %vm1446, %v3182, %v3183
      %v3189 = vsel %vm1446, %v3181, %v3182
      %v3190 = vsel %vm1446, %v3180, %v3181
      %v3191 = vsel %vm1446, %v3179, %v3180
      %v3192 = vsel %vm1446, %v3178, %v3179
      %v3193 = vsel %vm1446, %v3185, %v3178
      %v3194 = vmul.f32 %v3193, %v1457
      %v3195 = vmul.f32 %v3192, %v1461
      %v3196 = vmul.f32 %v3191, %v1465
      %v3197 = vmul.f32 %v3190, %v1469
      %v3198 = vmul.f32 %v3189, %v1473
      %v3199 = vmul.f32 %v3188, %v1477
      %v3200 = vmul.f32 %v3187, %v1481
      %v3201 = vmul.f32 %v3186, %v1485
      %v3202 = vpack.c.bf16 %v3195, %v3194
      %v3203 = vpack.c.bf16 %v3197, %v3196
      %v3204 = vpack.c.bf16 %v3199, %v3198
      %v3205 = vpack.c.bf16 %v3201, %v3200
      %s3206 = scalar_lea.vmem %s14, 8
      %v3207 = vld [vmem:[%s3206] sm:$0xf]
      %v3209 = vsel %vm2527, %v3202, 0
      %v3212 = vsel %vm2527, %v3203, 0
      %v3215 = vsel %vm2527, %v3204, 0
      %v3218 = vsel %vm2527, %v3205, 0
      %v3221 = vsel %vm710, %v3207, 0
      %3223 = vmatprep.subr.bf16.mxu0 0
      %3224 = vmatpush1.bf16.msra.mxu0 %v3221
      %3225 = vmatprep.subr.bf16.mxu0 0
      %3226 = vmatpush1.bf16.msra.mxu0 0
      %3227 = vmatprep.subr.bf16.mxu0 0
      %3228 = vmatpush1.bf16.msra.mxu0 0
      %3229 = vmatprep.subr.bf16.mxu0 0
      %3230 = vmatpush1.bf16.msra.mxu0 0
      %3231 = vmatprep.subr.bf16.mxu0 0
      %3232 = vmatpush1.bf16.msra.mxu0 0
      %3233 = vmatprep.subr.bf16.mxu0 0
      %3234 = vmatpush1.bf16.msra.mxu0 0
      %3235 = vmatprep.subr.bf16.mxu0 0
      %3236 = vmatpush1.bf16.msra.mxu0 0
      %3237 = vmatprep.subr.bf16.mxu0 0
      %3238 = vmatpush1.bf16.msra.mxu0 0
      %3239 = vmatprep.subr.bf16.mxu0 0
      %3240 = vmatpush1.bf16.msra.mxu0 0
      %3241 = vmatprep.subr.bf16.mxu0 0
      %3242 = vmatpush1.bf16.msra.mxu0 0
      %3243 = vmatprep.subr.bf16.mxu0 0
      %3244 = vmatpush1.bf16.msra.mxu0 0
      %3245 = vmatprep.subr.bf16.mxu0 0
      %3246 = vmatpush1.bf16.msra.mxu0 0
      %3247 = vmatprep.subr.bf16.mxu0 0
      %3248 = vmatpush1.bf16.msra.mxu0 0
      %3249 = vmatprep.subr.bf16.mxu0 0
      %3250 = vmatpush1.bf16.msra.mxu0 0
      %3251 = vmatprep.subr.bf16.mxu0 0
      %3252 = vmatpush1.bf16.msra.mxu0 0
      %3253 = vmatprep.subr.bf16.mxu0 0
      %3254 = vmatpush1.bf16.msra.mxu0 0
      %3255 = vmatprep.mubr.bf16.mxu0 0
      %3256 = vmatmul.mubr.bf16.gmra.mrb[0].mxu0 %v3209
      %v3257 = vpop.f32.mrb[0].mxu0
      %v3258 = vadd.f32 0.0, %v3257
      %v3259 = vpop.f32.mrb[0].mxu0
      %v3260 = vpop.f32.mrb[0].mxu0
      %v3261 = vadd.f32 0.0, %v3260
      %v3262 = vpop.f32.mrb[0].mxu0
      %3263 = vmatprep.mubr.bf16.mxu0 0
      %3264 = vmatmul.mubr.bf16.gmra.mrb[0].mxu0 %v3212
      %v3265 = vpop.f32.mrb[0].mxu0
      %v3266 = vadd.f32 0.0, %v3265
      %v3267 = vpop.f32.mrb[0].mxu0
      %v3268 = vpop.f32.mrb[0].mxu0
      %v3269 = vadd.f32 0.0, %v3268
      %v3270 = vpop.f32.mrb[0].mxu0
      %3271 = vmatprep.mubr.bf16.mxu0 0
      %3272 = vmatmul.mubr.bf16.gmra.mrb[0].mxu0 %v3215
      %v3273 = vpop.f32.mrb[0].mxu0
      %v3274 = vadd.f32 0.0, %v3273
      %v3275 = vpop.f32.mrb[0].mxu0
      %v3276 = vpop.f32.mrb[0].mxu0
      %v3277 = vadd.f32 0.0, %v3276
      %v3278 = vpop.f32.mrb[0].mxu0
      %3279 = vmatprep.mubr.bf16.mxu0 0
      %3280 = vmatmul.mubr.bf16.gmra.mrb[0].mxu0 %v3218
      %v3281 = vpop.f32.mrb[0].mxu0
      %v3282 = vadd.f32 0.0, %v3281
      %v3283 = vpop.f32.mrb[0].mxu0
      %v3284 = vpop.f32.mrb[0].mxu0
      %v3285 = vadd.f32 0.0, %v3284
      %v3286 = vpop.f32.mrb[0].mxu0
      %3287 = vdwg.mxu0
      %v3288 = vadd.f32 %v3148, %v3258
      %v3289 = vadd.f32 %v3151, %v3261
      %v3290 = vadd.f32 %v3156, %v3266
      %v3291 = vadd.f32 %v3159, %v3269
      %v3292 = vadd.f32 %v3164, %v3274
      %v3293 = vadd.f32 %v3167, %v3277
      %v3294 = vadd.f32 %v3172, %v3282
      %v3295 = vadd.f32 %v3175, %v3285
      %v3296 = vmul.f32 %v2990, %v1597
      %v3297 = vmul.f32 %v2989, %v1601
      %v3298 = vmul.f32 %v2988, %v1605
      %v3299 = vmul.f32 %v2987, %v1609
      %v3300 = vmul.f32 %v2986, %v1613
      %v3301 = vmul.f32 %v2985, %v1617
      %v3302 = vmul.f32 %v2984, %v1621
      %v3303 = vmul.f32 %v2983, %v1625
      %v3304 = vpack.c.bf16 %v3297, %v3296
      %v3305 = vpack.c.bf16 %v3299, %v3298
      %v3306 = vpack.c.bf16 %v3301, %v3300
      %v3307 = vpack.c.bf16 %v3303, %v3302
      %s3308 = scalar_lea.vmem %s14, 12
      %v3309 = vld [vmem:[%s3308] sm:$0xf]
      %v3311 = vsel %vm2527, %v3304, 0
      %v3314 = vsel %vm2527, %v3305, 0
      %v3317 = vsel %vm2527, %v3306, 0
      %v3320 = vsel %vm2527, %v3307, 0
      %v3323 = vsel %vm710, %v3309, 0
      %3325 = vmatprep.subr.bf16.mxu0 0
      %3326 = vmatpush1.bf16.msra.mxu0 %v3323
      %3327 = vmatprep.subr.bf16.mxu0 0
      %3328 = vmatpush1.bf16.msra.mxu0 0
      %3329 = vmatprep.subr.bf16.mxu0 0
      %3330 = vmatpush1.bf16.msra.mxu0 0
      %3331 = vmatprep.subr.bf16.mxu0 0
      %3332 = vmatpush1.bf16.msra.mxu0 0
      %3333 = vmatprep.subr.bf16.mxu0 0
      %3334 = vmatpush1.bf16.msra.mxu0 0
      %3335 = vmatprep.subr.bf16.mxu0 0
      %3336 = vmatpush1.bf16.msra.mxu0 0
      %3337 = vmatprep.subr.bf16.mxu0 0
      %3338 = vmatpush1.bf16.msra.mxu0 0
      %3339 = vmatprep.subr.bf16.mxu0 0
      %3340 = vmatpush1.bf16.msra.mxu0 0
      %3341 = vmatprep.subr.bf16.mxu0 0
      %3342 = vmatpush1.bf16.msra.mxu0 0
      %3343 = vmatprep.subr.bf16.mxu0 0
      %3344 = vmatpush1.bf16.msra.mxu0 0
      %3345 = vmatprep.subr.bf16.mxu0 0
      %3346 = vmatpush1.bf16.msra.mxu0 0
      %3347 = vmatprep.subr.bf16.mxu0 0
      %3348 = vmatpush1.bf16.msra.mxu0 0
      %3349 = vmatprep.subr.bf16.mxu0 0
      %3350 = vmatpush1.bf16.msra.mxu0 0
      %3351 = vmatprep.subr.bf16.mxu0 0
      %3352 = vmatpush1.bf16.msra.mxu0 0
      %3353 = vmatprep.subr.bf16.mxu0 0
      %3354 = vmatpush1.bf16.msra.mxu0 0
      %3355 = vmatprep.subr.bf16.mxu0 0
      %3356 = vmatpush1.bf16.msra.mxu0 0
      %3357 = vmatprep.mubr.bf16.mxu0 0
      %3358 = vmatmul.mubr.bf16.gmra.mrb[0].mxu0 %v3311
      %v3359 = vpop.f32.mrb[0].mxu0
      %v3360 = vadd.f32 0.0, %v3359
      %v3361 = vpop.f32.mrb[0].mxu0
      %v3362 = vpop.f32.mrb[0].mxu0
      %v3363 = vadd.f32 0.0, %v3362
      %v3364 = vpop.f32.mrb[0].mxu0
      %3365 = vmatprep.mubr.bf16.mxu0 0
      %3366 = vmatmul.mubr.bf16.gmra.mrb[0].mxu0 %v3314
      %v3367 = vpop.f32.mrb[0].mxu0
      %v3368 = vadd.f32 0.0, %v3367
      %v3369 = vpop.f32.mrb[0].mxu0
      %v3370 = vpop.f32.mrb[0].mxu0
      %v3371 = vadd.f32 0.0, %v3370
      %v3372 = vpop.f32.mrb[0].mxu0
      %3373 = vmatprep.mubr.bf16.mxu0 0
      %3374 = vmatmul.mubr.bf16.gmra.mrb[0].mxu0 %v3317
      %v3375 = vpop.f32.mrb[0].mxu0
      %v3376 = vadd.f32 0.0, %v3375
      %v3377 = vpop.f32.mrb[0].mxu0
      %v3378 = vpop.f32.mrb[0].mxu0
      %v3379 = vadd.f32 0.0, %v3378
      %v3380 = vpop.f32.mrb[0].mxu0
      %3381 = vmatprep.mubr.bf16.mxu0 0
      %3382 = vmatmul.mubr.bf16.gmra.mrb[0].mxu0 %v3320
      %v3383 = vpop.f32.mrb[0].mxu0
      %v3384 = vadd.f32 0.0, %v3383
      %v3385 = vpop.f32.mrb[0].mxu0
      %v3386 = vpop.f32.mrb[0].mxu0
      %v3387 = vadd.f32 0.0, %v3386
      %v3388 = vpop.f32.mrb[0].mxu0
      %3389 = vdwg.mxu0
      %v3390 = vadd.f32 %v3288, %v3360
      %v3391 = vadd.f32 %v3289, %v3363
      %v3392 = vadd.f32 %v3290, %v3368
      %v3393 = vadd.f32 %v3291, %v3371
      %v3394 = vadd.f32 %v3292, %v3376
      %v3395 = vadd.f32 %v3293, %v3379
      %v3396 = vadd.f32 %v3294, %v3384
      %v3397 = vadd.f32 %v3295, %v3387
      %v3398 = vmul.f32 %v2966, %v1737
      %v3399 = vmul.f32 %v2967, %v1741
      %v3400 = vmul.f32 %v2968, %v1745
      %v3401 = vmul.f32 %v2969, %v1749
      %v3402 = vmul.f32 %v2970, %v1753
      %v3403 = vmul.f32 %v2971, %v1757
      %v3404 = vmul.f32 %v2972, %v1761
      %v3405 = vmul.f32 %v2973, %v1765
      %v3406 = vpack.c.bf16 %v3399, %v3398
      %v3407 = vpack.c.bf16 %v3401, %v3400
      %v3408 = vpack.c.bf16 %v3403, %v3402
      %v3409 = vpack.c.bf16 %v3405, %v3404
      %s3410 = scalar_lea.vmem %s14, 16
      %v3411 = vld [vmem:[%s3410] sm:$0xf]
      %v3413 = vsel %vm2527, %v3406, 0
      %v3416 = vsel %vm2527, %v3407, 0
      %v3419 = vsel %vm2527, %v3408, 0
      %v3422 = vsel %vm2527, %v3409, 0
      %v3425 = vsel %vm710, %v3411, 0
      %3427 = vmatprep.subr.bf16.mxu0 0
      %3428 = vmatpush1.bf16.msra.mxu0 %v3425
      %3429 = vmatprep.subr.bf16.mxu0 0
      %3430 = vmatpush1.bf16.msra.mxu0 0
      %3431 = vmatprep.subr.bf16.mxu0 0
      %3432 = vmatpush1.bf16.msra.mxu0 0
      %3433 = vmatprep.subr.bf16.mxu0 0
      %3434 = vmatpush1.bf16.msra.mxu0 0
      %3435 = vmatprep.subr.bf16.mxu0 0
      %3436 = vmatpush1.bf16.msra.mxu0 0
      %3437 = vmatprep.subr.bf16.mxu0 0
      %3438 = vmatpush1.bf16.msra.mxu0 0
      %3439 = vmatprep.subr.bf16.mxu0 0
      %3440 = vmatpush1.bf16.msra.mxu0 0
      %3441 = vmatprep.subr.bf16.mxu0 0
      %3442 = vmatpush1.bf16.msra.mxu0 0
      %3443 = vmatprep.subr.bf16.mxu0 0
      %3444 = vmatpush1.bf16.msra.mxu0 0
      %3445 = vmatprep.subr.bf16.mxu0 0
      %3446 = vmatpush1.bf16.msra.mxu0 0
      %3447 = vmatprep.subr.bf16.mxu0 0
      %3448 = vmatpush1.bf16.msra.mxu0 0
      %3449 = vmatprep.subr.bf16.mxu0 0
      %3450 = vmatpush1.bf16.msra.mxu0 0
      %3451 = vmatprep.subr.bf16.mxu0 0
      %3452 = vmatpush1.bf16.msra.mxu0 0
      %3453 = vmatprep.subr.bf16.mxu0 0
      %3454 = vmatpush1.bf16.msra.mxu0 0
      %3455 = vmatprep.subr.bf16.mxu0 0
      %3456 = vmatpush1.bf16.msra.mxu0 0
      %3457 = vmatprep.subr.bf16.mxu0 0
      %3458 = vmatpush1.bf16.msra.mxu0 0
      %3459 = vmatprep.mubr.bf16.mxu0 0
      %3460 = vmatmul.mubr.bf16.gmra.mrb[0].mxu0 %v3413
      %v3461 = vpop.f32.mrb[0].mxu0
      %v3462 = vadd.f32 0.0, %v3461
      %v3463 = vpop.f32.mrb[0].mxu0
      %v3464 = vpop.f32.mrb[0].mxu0
      %v3465 = vadd.f32 0.0, %v3464
      %v3466 = vpop.f32.mrb[0].mxu0
      %3467 = vmatprep.mubr.bf16.mxu0 0
      %3468 = vmatmul.mubr.bf16.gmra.mrb[0].mxu0 %v3416
      %v3469 = vpop.f32.mrb[0].mxu0
      %v3470 = vadd.f32 0.0, %v3469
      %v3471 = vpop.f32.mrb[0].mxu0
      %v3472 = vpop.f32.mrb[0].mxu0
      %v3473 = vadd.f32 0.0, %v3472
      %v3474 = vpop.f32.mrb[0].mxu0
      %3475 = vmatprep.mubr.bf16.mxu0 0
      %3476 = vmatmul.mubr.bf16.gmra.mrb[0].mxu0 %v3419
      %v3477 = vpop.f32.mrb[0].mxu0
      %v3478 = vadd.f32 0.0, %v3477
      %v3479 = vpop.f32.mrb[0].mxu0
      %v3480 = vpop.f32.mrb[0].mxu0
      %v3481 = vadd.f32 0.0, %v3480
      %v3482 = vpop.f32.mrb[0].mxu0
      %3483 = vmatprep.mubr.bf16.mxu0 0
      %3484 = vmatmul.mubr.bf16.gmra.mrb[0].mxu0 %v3422
      %v3485 = vpop.f32.mrb[0].mxu0
      %v3486 = vadd.f32 0.0, %v3485
      %v3487 = vpop.f32.mrb[0].mxu0
      %v3488 = vpop.f32.mrb[0].mxu0
      %v3489 = vadd.f32 0.0, %v3488
      %v3490 = vpop.f32.mrb[0].mxu0
      %3491 = vdwg.mxu0
      %v3492 = vadd.f32 %v3390, %v3462
      %v3493 = vadd.f32 %v3391, %v3465
      %v3494 = vadd.f32 %v3392, %v3470
      %v3495 = vadd.f32 %v3393, %v3473
      %v3496 = vadd.f32 %v3394, %v3478
      %v3497 = vadd.f32 %v3395, %v3481
      %v3498 = vadd.f32 %v3396, %v3486
      %v3499 = vadd.f32 %v3397, %v3489
      %v3500 = vmul.f32 %v3192, %v1877
      %v3501 = vmul.f32 %v3191, %v1881
      %v3502 = vmul.f32 %v3190, %v1885
      %v3503 = vmul.f32 %v3189, %v1889
      %v3504 = vmul.f32 %v3188, %v1893
      %v3505 = vmul.f32 %v3187, %v1897
      %v3506 = vmul.f32 %v3186, %v1901
      %v3507 = vmul.f32 %v3193, %v1905
      %v3508 = vpack.c.bf16 %v3501, %v3500
      %v3509 = vpack.c.bf16 %v3503, %v3502
      %v3510 = vpack.c.bf16 %v3505, %v3504
      %v3511 = vpack.c.bf16 %v3507, %v3506
      %s3512 = scalar_lea.vmem %s14, 20
      %v3513 = vld [vmem:[%s3512] sm:$0xf]
      %v3515 = vsel %vm2527, %v3508, 0
      %v3518 = vsel %vm2527, %v3509, 0
      %v3521 = vsel %vm2527, %v3510, 0
      %v3524 = vsel %vm2527, %v3511, 0
      %v3527 = vsel %vm710, %v3513, 0
      %3529 = vmatprep.subr.bf16.mxu0 0
      %3530 = vmatpush1.bf16.msra.mxu0 %v3527
      %3531 = vmatprep.subr.bf16.mxu0 0
      %3532 = vmatpush1.bf16.msra.mxu0 0
      %3533 = vmatprep.subr.bf16.mxu0 0
      %3534 = vmatpush1.bf16.msra.mxu0 0
      %3535 = vmatprep.subr.bf16.mxu0 0
      %3536 = vmatpush1.bf16.msra.mxu0 0
      %3537 = vmatprep.subr.bf16.mxu0 0
      %3538 = vmatpush1.bf16.msra.mxu0 0
      %3539 = vmatprep.subr.bf16.mxu0 0
      %3540 = vmatpush1.bf16.msra.mxu0 0
      %3541 = vmatprep.subr.bf16.mxu0 0
      %3542 = vmatpush1.bf16.msra.mxu0 0
      %3543 = vmatprep.subr.bf16.mxu0 0
      %3544 = vmatpush1.bf16.msra.mxu0 0
      %3545 = vmatprep.subr.bf16.mxu0 0
      %3546 = vmatpush1.bf16.msra.mxu0 0
      %3547 = vmatprep.subr.bf16.mxu0 0
      %3548 = vmatpush1.bf16.msra.mxu0 0
      %3549 = vmatprep.subr.bf16.mxu0 0
      %3550 = vmatpush1.bf16.msra.mxu0 0
      %3551 = vmatprep.subr.bf16.mxu0 0
      %3552 = vmatpush1.bf16.msra.mxu0 0
      %3553 = vmatprep.subr.bf16.mxu0 0
      %3554 = vmatpush1.bf16.msra.mxu0 0
      %3555 = vmatprep.subr.bf16.mxu0 0
      %3556 = vmatpush1.bf16.msra.mxu0 0
      %3557 = vmatprep.subr.bf16.mxu0 0
      %3558 = vmatpush1.bf16.msra.mxu0 0
      %3559 = vmatprep.subr.bf16.mxu0 0
      %3560 = vmatpush1.bf16.msra.mxu0 0
      %3561 = vmatprep.mubr.bf16.mxu0 0
      %3562 = vmatmul.mubr.bf16.gmra.mrb[0].mxu0 %v3515
      %v3563 = vpop.f32.mrb[0].mxu0
      %v3564 = vadd.f32 0.0, %v3563
      %v3565 = vpop.f32.mrb[0].mxu0
      %v3566 = vpop.f32.mrb[0].mxu0
      %v3567 = vadd.f32 0.0, %v3566
      %v3568 = vpop.f32.mrb[0].mxu0
      %3569 = vmatprep.mubr.bf16.mxu0 0
      %3570 = vmatmul.mubr.bf16.gmra.mrb[0].mxu0 %v3518
      %v3571 = vpop.f32.mrb[0].mxu0
      %v3572 = vadd.f32 0.0, %v3571
      %v3573 = vpop.f32.mrb[0].mxu0
      %v3574 = vpop.f32.mrb[0].mxu0
      %v3575 = vadd.f32 0.0, %v3574
      %v3576 = vpop.f32.mrb[0].mxu0
      %3577 = vmatprep.mubr.bf16.mxu0 0
      %3578 = vmatmul.mubr.bf16.gmra.mrb[0].mxu0 %v3521
      %v3579 = vpop.f32.mrb[0].mxu0
      %v3580 = vadd.f32 0.0, %v3579
      %v3581 = vpop.f32.mrb[0].mxu0
      %v3582 = vpop.f32.mrb[0].mxu0
      %v3583 = vadd.f32 0.0, %v3582
      %v3584 = vpop.f32.mrb[0].mxu0
      %3585 = vmatprep.mubr.bf16.mxu0 0
      %3586 = vmatmul.mubr.bf16.gmra.mrb[0].mxu0 %v3524
      %v3587 = vpop.f32.mrb[0].mxu0
      %v3588 = vadd.f32 0.0, %v3587
      %v3589 = vpop.f32.mrb[0].mxu0
      %v3590 = vpop.f32.mrb[0].mxu0
      %v3591 = vadd.f32 0.0, %v3590
      %v3592 = vpop.f32.mrb[0].mxu0
      %3593 = vdwg.mxu0
      %v3594 = vadd.f32 %v3492, %v3564
      %v3595 = vadd.f32 %v3493, %v3567
      %v3596 = vadd.f32 %v3494, %v3572
      %v3597 = vadd.f32 %v3495, %v3575
      %v3598 = vadd.f32 %v3496, %v3580
      %v3599 = vadd.f32 %v3497, %v3583
      %v3600 = vadd.f32 %v3498, %v3588
      %v3601 = vadd.f32 %v3499, %v3591
      %v3602 = vmul.f32 %v2989, %v2017
      %v3603 = vmul.f32 %v2988, %v2021
      %v3604 = vmul.f32 %v2987, %v2025
      %v3605 = vmul.f32 %v2986, %v2029
      %v3606 = vmul.f32 %v2985, %v2033
      %v3607 = vmul.f32 %v2984, %v2037
      %v3608 = vmul.f32 %v2983, %v2041
      %v3609 = vmul.f32 %v2990, %v2045
      %v3610 = vpack.c.bf16 %v3603, %v3602
      %v3611 = vpack.c.bf16 %v3605, %v3604
      %v3612 = vpack.c.bf16 %v3607, %v3606
      %v3613 = vpack.c.bf16 %v3609, %v3608
      %s3614 = scalar_lea.vmem %s14, 24
      %v3615 = vld [vmem:[%s3614] sm:$0xf]
      %v3617 = vsel %vm2527, %v3610, 0
      %v3620 = vsel %vm2527, %v3611, 0
      %v3623 = vsel %vm2527, %v3612, 0
      %v3626 = vsel %vm2527, %v3613, 0
      %v3629 = vsel %vm710, %v3615, 0
      %3631 = vmatprep.subr.bf16.mxu0 0
      %3632 = vmatpush1.bf16.msra.mxu0 %v3629
      %3633 = vmatprep.subr.bf16.mxu0 0
      %3634 = vmatpush1.bf16.msra.mxu0 0
      %3635 = vmatprep.subr.bf16.mxu0 0
      %3636 = vmatpush1.bf16.msra.mxu0 0
      %3637 = vmatprep.subr.bf16.mxu0 0
      %3638 = vmatpush1.bf16.msra.mxu0 0
      %3639 = vmatprep.subr.bf16.mxu0 0
      %3640 = vmatpush1.bf16.msra.mxu0 0
      %3641 = vmatprep.subr.bf16.mxu0 0
      %3642 = vmatpush1.bf16.msra.mxu0 0
      %3643 = vmatprep.subr.bf16.mxu0 0
      %3644 = vmatpush1.bf16.msra.mxu0 0
      %3645 = vmatprep.subr.bf16.mxu0 0
      %3646 = vmatpush1.bf16.msra.mxu0 0
      %3647 = vmatprep.subr.bf16.mxu0 0
      %3648 = vmatpush1.bf16.msra.mxu0 0
      %3649 = vmatprep.subr.bf16.mxu0 0
      %3650 = vmatpush1.bf16.msra.mxu0 0
      %3651 = vmatprep.subr.bf16.mxu0 0
      %3652 = vmatpush1.bf16.msra.mxu0 0
      %3653 = vmatprep.subr.bf16.mxu0 0
      %3654 = vmatpush1.bf16.msra.mxu0 0
      %3655 = vmatprep.subr.bf16.mxu0 0
      %3656 = vmatpush1.bf16.msra.mxu0 0
      %3657 = vmatprep.subr.bf16.mxu0 0
      %3658 = vmatpush1.bf16.msra.mxu0 0
      %3659 = vmatprep.subr.bf16.mxu0 0
      %3660 = vmatpush1.bf16.msra.mxu0 0
      %3661 = vmatprep.subr.bf16.mxu0 0
      %3662 = vmatpush1.bf16.msra.mxu0 0
      %3663 = vmatprep.mubr.bf16.mxu0 0
      %3664 = vmatmul.mubr.bf16.gmra.mrb[0].mxu0 %v3617
      %v3665 = vpop.f32.mrb[0].mxu0
      %v3666 = vadd.f32 0.0, %v3665
      %v3667 = vpop.f32.mrb[0].mxu0
      %v3668 = vpop.f32.mrb[0].mxu0
      %v3669 = vadd.f32 0.0, %v3668
      %v3670 = vpop.f32.mrb[0].mxu0
      %3671 = vmatprep.mubr.bf16.mxu0 0
      %3672 = vmatmul.mubr.bf16.gmra.mrb[0].mxu0 %v3620
      %v3673 = vpop.f32.mrb[0].mxu0
      %v3674 = vadd.f32 0.0, %v3673
      %v3675 = vpop.f32.mrb[0].mxu0
      %v3676 = vpop.f32.mrb[0].mxu0
      %v3677 = vadd.f32 0.0, %v3676
      %v3678 = vpop.f32.mrb[0].mxu0
      %3679 = vmatprep.mubr.bf16.mxu0 0
      %3680 = vmatmul.mubr.bf16.gmra.mrb[0].mxu0 %v3623
      %v3681 = vpop.f32.mrb[0].mxu0
      %v3682 = vadd.f32 0.0, %v3681
      %v3683 = vpop.f32.mrb[0].mxu0
      %v3684 = vpop.f32.mrb[0].mxu0
      %v3685 = vadd.f32 0.0, %v3684
      %v3686 = vpop.f32.mrb[0].mxu0
      %3687 = vmatprep.mubr.bf16.mxu0 0
      %3688 = vmatmul.mubr.bf16.gmra.mrb[0].mxu0 %v3626
      %v3689 = vpop.f32.mrb[0].mxu0
      %v3690 = vadd.f32 0.0, %v3689
      %v3691 = vpop.f32.mrb[0].mxu0
      %v3692 = vpop.f32.mrb[0].mxu0
      %v3693 = vadd.f32 0.0, %v3692
      %v3694 = vpop.f32.mrb[0].mxu0
      %3695 = vdwg.mxu0
      %v3696 = vadd.f32 %v3594, %v3666
      %v3697 = vadd.f32 %v3595, %v3669
      %v3698 = vadd.f32 %v3596, %v3674
      %v3699 = vadd.f32 %v3597, %v3677
      %v3700 = vadd.f32 %v3598, %v3682
      %v3701 = vadd.f32 %v3599, %v3685
      %v3702 = vadd.f32 %v3600, %v3690
      %v3703 = vadd.f32 %v3601, %v3693
      %v3704 = vmul.f32 %v2967, %v2157
      %v3705 = vmul.f32 %v2968, %v2161
      %v3706 = vmul.f32 %v2969, %v2165
      %v3707 = vmul.f32 %v2970, %v2169
      %v3708 = vmul.f32 %v2971, %v2173
      %v3709 = vmul.f32 %v2972, %v2177
      %v3710 = vmul.f32 %v2973, %v2181
      %v3711 = vmul.f32 %v2966, %v2185
      %v3712 = vpack.c.bf16 %v3705, %v3704
      %v3713 = vpack.c.bf16 %v3707, %v3706
      %v3714 = vpack.c.bf16 %v3709, %v3708
      %v3715 = vpack.c.bf16 %v3711, %v3710
      %s3716 = scalar_lea.vmem %s14, 28
      %v3717 = vld [vmem:[%s3716] sm:$0xf]
      %v3719 = vsel %vm2527, %v3712, 0
      %v3722 = vsel %vm2527, %v3713, 0
      %v3725 = vsel %vm2527, %v3714, 0
      %v3728 = vsel %vm2527, %v3715, 0
      %v3731 = vsel %vm710, %v3717, 0
      %3733 = vmatprep.subr.bf16.mxu0 0
      %3734 = vmatpush1.bf16.msra.mxu0 %v3731
      %3735 = vmatprep.subr.bf16.mxu0 0
      %3736 = vmatpush1.bf16.msra.mxu0 0
      %3737 = vmatprep.subr.bf16.mxu0 0
      %3738 = vmatpush1.bf16.msra.mxu0 0
      %3739 = vmatprep.subr.bf16.mxu0 0
      %3740 = vmatpush1.bf16.msra.mxu0 0
      %3741 = vmatprep.subr.bf16.mxu0 0
      %3742 = vmatpush1.bf16.msra.mxu0 0
      %3743 = vmatprep.subr.bf16.mxu0 0
      %3744 = vmatpush1.bf16.msra.mxu0 0
      %3745 = vmatprep.subr.bf16.mxu0 0
      %3746 = vmatpush1.bf16.msra.mxu0 0
      %3747 = vmatprep.subr.bf16.mxu0 0
      %3748 = vmatpush1.bf16.msra.mxu0 0
      %3749 = vmatprep.subr.bf16.mxu0 0
      %3750 = vmatpush1.bf16.msra.mxu0 0
      %3751 = vmatprep.subr.bf16.mxu0 0
      %3752 = vmatpush1.bf16.msra.mxu0 0
      %3753 = vmatprep.subr.bf16.mxu0 0
      %3754 = vmatpush1.bf16.msra.mxu0 0
      %3755 = vmatprep.subr.bf16.mxu0 0
      %3756 = vmatpush1.bf16.msra.mxu0 0
      %3757 = vmatprep.subr.bf16.mxu0 0
      %3758 = vmatpush1.bf16.msra.mxu0 0
      %3759 = vmatprep.subr.bf16.mxu0 0
      %3760 = vmatpush1.bf16.msra.mxu0 0
      %3761 = vmatprep.subr.bf16.mxu0 0
      %3762 = vmatpush1.bf16.msra.mxu0 0
      %3763 = vmatprep.subr.bf16.mxu0 0
      %3764 = vmatpush1.bf16.msra.mxu0 0
      %3765 = vmatprep.mubr.bf16.mxu0 0
      %3766 = vmatmul.mubr.bf16.gmra.mrb[0].mxu0 %v3719
      %v3767 = vpop.f32.mrb[0].mxu0
      %v3768 = vadd.f32 0.0, %v3767
      %v3769 = vpop.f32.mrb[0].mxu0
      %v3770 = vpop.f32.mrb[0].mxu0
      %v3771 = vadd.f32 0.0, %v3770
      %v3772 = vpop.f32.mrb[0].mxu0
      %3773 = vmatprep.mubr.bf16.mxu0 0
      %3774 = vmatmul.mubr.bf16.gmra.mrb[0].mxu0 %v3722
      %v3775 = vpop.f32.mrb[0].mxu0
      %v3776 = vadd.f32 0.0, %v3775
      %v3777 = vpop.f32.mrb[0].mxu0
      %v3778 = vpop.f32.mrb[0].mxu0
      %v3779 = vadd.f32 0.0, %v3778
      %v3780 = vpop.f32.mrb[0].mxu0
      %3781 = vmatprep.mubr.bf16.mxu0 0
      %3782 = vmatmul.mubr.bf16.gmra.mrb[0].mxu0 %v3725
      %v3783 = vpop.f32.mrb[0].mxu0
      %v3784 = vadd.f32 0.0, %v3783
      %v3785 = vpop.f32.mrb[0].mxu0
      %v3786 = vpop.f32.mrb[0].mxu0
      %v3787 = vadd.f32 0.0, %v3786
      %v3788 = vpop.f32.mrb[0].mxu0
      %3789 = vmatprep.mubr.bf16.mxu0 0
      %3790 = vmatmul.mubr.bf16.gmra.mrb[0].mxu0 %v3728
      %v3791 = vpop.f32.mrb[0].mxu0
      %v3792 = vadd.f32 0.0, %v3791
      %v3793 = vpop.f32.mrb[0].mxu0
      %v3794 = vpop.f32.mrb[0].mxu0
      %v3795 = vadd.f32 0.0, %v3794
      %v3796 = vpop.f32.mrb[0].mxu0
      %3797 = vdwg.mxu0
      %v3798 = vadd.f32 %v3696, %v3768
      %v3799 = vadd.f32 %v3697, %v3771
      %v3800 = vadd.f32 %v3698, %v3776
      %v3801 = vadd.f32 %v3699, %v3779
      %v3802 = vadd.f32 %v3700, %v3784
      %v3803 = vadd.f32 %v3701, %v3787
      %v3804 = vadd.f32 %v3702, %v3792
      %v3805 = vadd.f32 %v3703, %v3795
      %v3806 = vmul.f32 %v3191, %v2297
      %v3807 = vmul.f32 %v3190, %v2301
      %v3808 = vmul.f32 %v3189, %v2305
      %v3809 = vmul.f32 %v3188, %v2309
      %v3810 = vmul.f32 %v3187, %v2313
      %v3811 = vmul.f32 %v3186, %v2317
      %v3812 = vmul.f32 %v3193, %v2321
      %v3813 = vmul.f32 %v3192, %v2325
      %v3814 = vpack.c.bf16 %v3807, %v3806
      %v3815 = vpack.c.bf16 %v3809, %v3808
      %v3816 = vpack.c.bf16 %v3811, %v3810
      %v3817 = vpack.c.bf16 %v3813, %v3812
      %s3818 = scalar_lea.vmem %s14, 32
      %v3819 = vld [vmem:[%s3818] sm:$0xf]
      %v3821 = vsel %vm2527, %v3814, 0
      %v3824 = vsel %vm2527, %v3815, 0
      %v3827 = vsel %vm2527, %v3816, 0
      %v3830 = vsel %vm2527, %v3817, 0
      %v3833 = vsel %vm710, %v3819, 0
      %3835 = vmatprep.subr.bf16.mxu0 0
      %3836 = vmatpush1.bf16.msra.mxu0 %v3833
      %3837 = vmatprep.subr.bf16.mxu0 0
      %3838 = vmatpush1.bf16.msra.mxu0 0
      %3839 = vmatprep.subr.bf16.mxu0 0
      %3840 = vmatpush1.bf16.msra.mxu0 0
      %3841 = vmatprep.subr.bf16.mxu0 0
      %3842 = vmatpush1.bf16.msra.mxu0 0
      %3843 = vmatprep.subr.bf16.mxu0 0
      %3844 = vmatpush1.bf16.msra.mxu0 0
      %3845 = vmatprep.subr.bf16.mxu0 0
      %3846 = vmatpush1.bf16.msra.mxu0 0
      %3847 = vmatprep.subr.bf16.mxu0 0
      %3848 = vmatpush1.bf16.msra.mxu0 0
      %3849 = vmatprep.subr.bf16.mxu0 0
      %3850 = vmatpush1.bf16.msra.mxu0 0
      %3851 = vmatprep.subr.bf16.mxu0 0
      %3852 = vmatpush1.bf16.msra.mxu0 0
      %3853 = vmatprep.subr.bf16.mxu0 0
      %3854 = vmatpush1.bf16.msra.mxu0 0
      %3855 = vmatprep.subr.bf16.mxu0 0
      %3856 = vmatpush1.bf16.msra.mxu0 0
      %3857 = vmatprep.subr.bf16.mxu0 0
      %3858 = vmatpush1.bf16.msra.mxu0 0
      %3859 = vmatprep.subr.bf16.mxu0 0
      %3860 = vmatpush1.bf16.msra.mxu0 0
      %3861 = vmatprep.subr.bf16.mxu0 0
      %3862 = vmatpush1.bf16.msra.mxu0 0
      %3863 = vmatprep.subr.bf16.mxu0 0
      %3864 = vmatpush1.bf16.msra.mxu0 0
      %3865 = vmatprep.subr.bf16.mxu0 0
      %3866 = vmatpush1.bf16.msra.mxu0 0
      %3867 = vmatprep.mubr.bf16.mxu0 0
      %3868 = vmatmul.mubr.bf16.gmra.mrb[0].mxu0 %v3821
      %v3869 = vpop.f32.mrb[0].mxu0
      %v3870 = vadd.f32 0.0, %v3869
      %v3871 = vpop.f32.mrb[0].mxu0
      %v3872 = vpop.f32.mrb[0].mxu0
      %v3873 = vadd.f32 0.0, %v3872
      %v3874 = vpop.f32.mrb[0].mxu0
      %3875 = vmatprep.mubr.bf16.mxu0 0
      %3876 = vmatmul.mubr.bf16.gmra.mrb[0].mxu0 %v3824
      %v3877 = vpop.f32.mrb[0].mxu0
      %v3878 = vadd.f32 0.0, %v3877
      %v3879 = vpop.f32.mrb[0].mxu0
      %v3880 = vpop.f32.mrb[0].mxu0
      %v3881 = vadd.f32 0.0, %v3880
      %v3882 = vpop.f32.mrb[0].mxu0
      %3883 = vmatprep.mubr.bf16.mxu0 0
      %3884 = vmatmul.mubr.bf16.gmra.mrb[0].mxu0 %v3827
      %v3885 = vpop.f32.mrb[0].mxu0
      %v3886 = vadd.f32 0.0, %v3885
      %v3887 = vpop.f32.mrb[0].mxu0
      %v3888 = vpop.f32.mrb[0].mxu0
      %v3889 = vadd.f32 0.0, %v3888
      %v3890 = vpop.f32.mrb[0].mxu0
      %3891 = vmatprep.mubr.bf16.mxu0 0
      %3892 = vmatmul.mubr.bf16.gmra.mrb[0].mxu0 %v3830
      %v3893 = vpop.f32.mrb[0].mxu0
      %v3894 = vadd.f32 0.0, %v3893
      %v3895 = vpop.f32.mrb[0].mxu0
      %v3896 = vpop.f32.mrb[0].mxu0
      %v3897 = vadd.f32 0.0, %v3896
      %v3898 = vpop.f32.mrb[0].mxu0
      %3899 = vdwg.mxu0
      %v3900 = vadd.f32 %v3798, %v3870
      %v3901 = vadd.f32 %v3799, %v3873
      %v3902 = vadd.f32 %v3800, %v3878
      %v3903 = vadd.f32 %v3801, %v3881
      %v3904 = vadd.f32 %v3802, %v3886
      %v3905 = vadd.f32 %v3803, %v3889
      %v3906 = vadd.f32 %v3804, %v3894
      %v3907 = vadd.f32 %v3805, %v3897
      %v3909 = vlaneseq
      %v3910 = vshrl.u32 %v3909, 7
      %v3911 = vsub.s32 0, %v3910
      %v3912 = vrot.slane %v2974, %v3911
      %v3914 = vadd.f32 %v3900, %v3912
      %v3915 = vadd.f32 %v3901, %v3912
      %v3916 = vadd.f32 %v3902, %v3912
      %v3917 = vadd.f32 %v3903, %v3912
      %v3918 = vadd.f32 %v3904, %v3912
      %v3919 = vadd.f32 %v3905, %v3912
      %v3920 = vadd.f32 %v3906, %v3912
      %v3921 = vadd.f32 %v3907, %v3912
      %v3922 = vpack.c.bf16 %v673, %v672
      %v3923 = vpack.c.bf16 %v675, %v674
      %v3924 = vpack.c.bf16 %v677, %v676
      %v3925 = vpack.c.bf16 %v679, %v678
      %v3926 = vld [vmem:[%s16] sm:$0xf]
      %v3927 = vld [vmem:[%s16 + $0x4] sm:$0x3]
      %v3928 = vld [vmem:[%s17] sm:$0x1]
      %v3930 = vlaneseq
      %v3931 = vshrl.u32 %v3930, 7
      %v3932 = vsub.s32 0, %v3931
      %v3933 = vrot.slane %v3928, %v3932
      %v3937 = vunpack.c.l.b16 %v3926
      %v3938 = vunpack.c.l.b16 %v3927
      %v3939 = vpack.c.b16 %v3938, %v3937
      %v3941 = vsel %vm685, %v3922, 0
      %v3944 = vsel %vm685, %v3923, 0
      %v3947 = vsel %vm685, %v3924, 0
      %v3950 = vsel %vm685, %v3925, 0
      %v3953 = vsel %vm1284, %v3939, 0
      %3955 = vmatprep.subr.bf16.mxu0 0
      %3956 = vmatpush1.bf16.msra.mxu0 %v3953
      %3957 = vmatprep.subr.bf16.mxu0 0
      %3958 = vmatpush1.bf16.msra.mxu0 0
      %3959 = vmatprep.subr.bf16.mxu0 0
      %3960 = vmatpush1.bf16.msra.mxu0 0
      %3961 = vmatprep.subr.bf16.mxu0 0
      %3962 = vmatpush1.bf16.msra.mxu0 0
      %3963 = vmatprep.subr.bf16.mxu0 0
      %3964 = vmatpush1.bf16.msra.mxu0 0
      %3965 = vmatprep.subr.bf16.mxu0 0
      %3966 = vmatpush1.bf16.msra.mxu0 0
      %3967 = vmatprep.subr.bf16.mxu0 0
      %3968 = vmatpush1.bf16.msra.mxu0 0
      %3969 = vmatprep.subr.bf16.mxu0 0
      %3970 = vmatpush1.bf16.msra.mxu0 0
      %3971 = vmatprep.subr.bf16.mxu0 0
      %3972 = vmatpush1.bf16.msra.mxu0 0
      %3973 = vmatprep.subr.bf16.mxu0 0
      %3974 = vmatpush1.bf16.msra.mxu0 0
      %3975 = vmatprep.subr.bf16.mxu0 0
      %3976 = vmatpush1.bf16.msra.mxu0 0
      %3977 = vmatprep.subr.bf16.mxu0 0
      %3978 = vmatpush1.bf16.msra.mxu0 0
      %3979 = vmatprep.subr.bf16.mxu0 0
      %3980 = vmatpush1.bf16.msra.mxu0 0
      %3981 = vmatprep.subr.bf16.mxu0 0
      %3982 = vmatpush1.bf16.msra.mxu0 0
      %3983 = vmatprep.subr.bf16.mxu0 0
      %3984 = vmatpush1.bf16.msra.mxu0 0
      %3985 = vmatprep.subr.bf16.mxu0 0
      %3986 = vmatpush1.bf16.msra.mxu0 0
      %3987 = vmatprep.mubr.bf16.mxu0 0
      %3988 = vmatmul.mubr.bf16.gmra.mrb[0].mxu0 %v3941
      %v3989 = vpop.f32.mrb[0].mxu0
      %v3990 = vadd.f32 %v3933, %v3989
      %v3991 = vpop.f32.mrb[0].mxu0
      %v3992 = vpop.f32.mrb[0].mxu0
      %v3993 = vadd.f32 %v3933, %v3992
      %v3994 = vpop.f32.mrb[0].mxu0
      %3995 = vmatprep.mubr.bf16.mxu0 0
      %3996 = vmatmul.mubr.bf16.gmra.mrb[0].mxu0 %v3944
      %v3997 = vpop.f32.mrb[0].mxu0
      %v3998 = vadd.f32 %v3933, %v3997
      %v3999 = vpop.f32.mrb[0].mxu0
      %v4000 = vpop.f32.mrb[0].mxu0
      %v4001 = vadd.f32 %v3933, %v4000
      %v4002 = vpop.f32.mrb[0].mxu0
      %4003 = vmatprep.mubr.bf16.mxu0 0
      %4004 = vmatmul.mubr.bf16.gmra.mrb[0].mxu0 %v3947
      %v4005 = vpop.f32.mrb[0].mxu0
      %v4006 = vadd.f32 %v3933, %v4005
      %v4007 = vpop.f32.mrb[0].mxu0
      %v4008 = vpop.f32.mrb[0].mxu0
      %v4009 = vadd.f32 %v3933, %v4008
      %v4010 = vpop.f32.mrb[0].mxu0
      %4011 = vmatprep.mubr.bf16.mxu0 0
      %4012 = vmatmul.mubr.bf16.gmra.mrb[0].mxu0 %v3950
      %v4013 = vpop.f32.mrb[0].mxu0
      %v4014 = vadd.f32 %v3933, %v4013
      %v4015 = vpop.f32.mrb[0].mxu0
      %v4016 = vpop.f32.mrb[0].mxu0
      %v4017 = vadd.f32 %v3933, %v4016
      %v4018 = vpop.f32.mrb[0].mxu0
      %4019 = vdwg.mxu0
      %v4020 = vadd.f32 %v3914, %v3990
      %v4021 = vadd.f32 %v3915, %v3993
      %v4022 = vadd.f32 %v3916, %v3998
      %v4023 = vadd.f32 %v3917, %v4001
      %v4024 = vadd.f32 %v3918, %v4006
      %v4025 = vadd.f32 %v3919, %v4009
      %v4026 = vadd.f32 %v3920, %v4014
      %v4027 = vadd.f32 %v3921, %v4017
      %v4028 = vpack.c.bf16 %v4021, %v4020
      %v4029 = vpack.c.bf16 %v4023, %v4022
      %v4030 = vpack.c.bf16 %v4025, %v4024
      %v4031 = vpack.c.bf16 %v4027, %v4026
      %v4032 = vld [vmem:[%s18] sm:$0xf]
      %v4033 = vld [vmem:[%s19] sm:$0x1]
      %v4035 = vlaneseq
      %v4036 = vshrl.u32 %v4035, 7
      %v4037 = vsub.s32 0, %v4036
      %v4038 = vrot.slane %v4033, %v4037
      %v4041 = vsel %vm2527, %v4028, 0
      %v4044 = vsel %vm2527, %v4029, 0
      %v4047 = vsel %vm2527, %v4030, 0
      %v4050 = vsel %vm2527, %v4031, 0
      %v4053 = vsel %vm710, %v4032, 0
      %4055 = vmatprep.subr.bf16.mxu0 0
      %4056 = vmatpush1.bf16.msra.mxu0 %v4053
      %4057 = vmatprep.subr.bf16.mxu0 0
      %4058 = vmatpush1.bf16.msra.mxu0 0
      %4059 = vmatprep.subr.bf16.mxu0 0
      %4060 = vmatpush1.bf16.msra.mxu0 0
      %4061 = vmatprep.subr.bf16.mxu0 0
      %4062 = vmatpush1.bf16.msra.mxu0 0
      %4063 = vmatprep.subr.bf16.mxu0 0
      %4064 = vmatpush1.bf16.msra.mxu0 0
      %4065 = vmatprep.subr.bf16.mxu0 0
      %4066 = vmatpush1.bf16.msra.mxu0 0
      %4067 = vmatprep.subr.bf16.mxu0 0
      %4068 = vmatpush1.bf16.msra.mxu0 0
      %4069 = vmatprep.subr.bf16.mxu0 0
      %4070 = vmatpush1.bf16.msra.mxu0 0
      %4071 = vmatprep.subr.bf16.mxu0 0
      %4072 = vmatpush1.bf16.msra.mxu0 0
      %4073 = vmatprep.subr.bf16.mxu0 0
      %4074 = vmatpush1.bf16.msra.mxu0 0
      %4075 = vmatprep.subr.bf16.mxu0 0
      %4076 = vmatpush1.bf16.msra.mxu0 0
      %4077 = vmatprep.subr.bf16.mxu0 0
      %4078 = vmatpush1.bf16.msra.mxu0 0
      %4079 = vmatprep.subr.bf16.mxu0 0
      %4080 = vmatpush1.bf16.msra.mxu0 0
      %4081 = vmatprep.subr.bf16.mxu0 0
      %4082 = vmatpush1.bf16.msra.mxu0 0
      %4083 = vmatprep.subr.bf16.mxu0 0
      %4084 = vmatpush1.bf16.msra.mxu0 0
      %4085 = vmatprep.subr.bf16.mxu0 0
      %4086 = vmatpush1.bf16.msra.mxu0 0
      %4087 = vmatprep.mubr.bf16.mxu0 0
      %4088 = vmatmul.mubr.bf16.gmra.mrb[0].mxu0 %v4041
      %v4089 = vpop.f32.mrb[0].mxu0
      %v4090 = vadd.f32 %v4038, %v4089
      %v4091 = vpop.f32.mrb[0].mxu0
      %v4092 = vpop.f32.mrb[0].mxu0
      %v4093 = vadd.f32 %v4038, %v4092
      %v4094 = vpop.f32.mrb[0].mxu0
      %4095 = vmatprep.mubr.bf16.mxu0 0
      %4096 = vmatmul.mubr.bf16.gmra.mrb[0].mxu0 %v4044
      %v4097 = vpop.f32.mrb[0].mxu0
      %v4098 = vadd.f32 %v4038, %v4097
      %v4099 = vpop.f32.mrb[0].mxu0
      %v4100 = vpop.f32.mrb[0].mxu0
      %v4101 = vadd.f32 %v4038, %v4100
      %v4102 = vpop.f32.mrb[0].mxu0
      %4103 = vmatprep.mubr.bf16.mxu0 0
      %4104 = vmatmul.mubr.bf16.gmra.mrb[0].mxu0 %v4047
      %v4105 = vpop.f32.mrb[0].mxu0
      %v4106 = vadd.f32 %v4038, %v4105
      %v4107 = vpop.f32.mrb[0].mxu0
      %v4108 = vpop.f32.mrb[0].mxu0
      %v4109 = vadd.f32 %v4038, %v4108
      %v4110 = vpop.f32.mrb[0].mxu0
      %4111 = vmatprep.mubr.bf16.mxu0 0
      %4112 = vmatmul.mubr.bf16.gmra.mrb[0].mxu0 %v4050
      %v4113 = vpop.f32.mrb[0].mxu0
      %v4114 = vadd.f32 %v4038, %v4113
      %v4115 = vpop.f32.mrb[0].mxu0
      %v4116 = vpop.f32.mrb[0].mxu0
      %v4117 = vadd.f32 %v4038, %v4116
      %v4118 = vpop.f32.mrb[0].mxu0
      %4119 = vdwg.mxu0
      %v4120 = vmul.f32 %v4090, 0.35355338
      %v4121 = vmul.f32 %v4093, 0.35355338
      %v4122 = vmul.f32 %v4098, 0.35355338
      %v4123 = vmul.f32 %v4101, 0.35355338
      %v4124 = vmul.f32 %v4106, 0.35355338
      %v4125 = vmul.f32 %v4109, 0.35355338
      %v4126 = vmul.f32 %v4114, 0.35355338
      %v4127 = vmul.f32 %v4117, 0.35355338
      %v4128 = vpack.c.bf16 %v4121, %v4120
      %v4129 = vpack.c.bf16 %v4123, %v4122
      %v4130 = vpack.c.bf16 %v4125, %v4124
      %v4131 = vpack.c.bf16 %v4127, %v4126
      %v4132 = vpack.c.bf16 %v4093, %v4090
      %v4133 = vpack.c.bf16 %v4101, %v4098
      %v4134 = vpack.c.bf16 %v4109, %v4106
      %v4135 = vpack.c.bf16 %v4117, %v4114
      %4140 = vrot.lane.b32.xlu0 %v4132, 124
      %v4141 = vpop.permute.xlu0 %4140
      %4142 = vrot.lane.b32.xlu0 %v4133, 124
      %v4143 = vpop.permute.xlu0 %4142
      %4144 = vrot.lane.b32.xlu0 %v4134, 124
      %v4145 = vpop.permute.xlu0 %4144
      %4146 = vrot.lane.b32.xlu0 %v4135, 124
      %v4147 = vpop.permute.xlu0 %4146
      %vm4148 = vcmask 31744
      %v4150 = vsel %vm4148, %v4128, 0
      %v4153 = vsel %vm4148, %v4129, 0
      %v4156 = vsel %vm4148, %v4130, 0
      %v4159 = vsel %vm4148, %v4131, 0
      %v4162 = vsel %vm4148, %v4141, 0
      %v4165 = vsel %vm4148, %v4143, 0
      %v4168 = vsel %vm4148, %v4145, 0
      %v4171 = vsel %vm4148, %v4147, 0
      %4173 = vmatprep.subr.bf16.mxu0 0
      %4174 = vmatpush1.bf16.xpose.msra.mxu0 %v4162
      %4175 = vmatprep.subr.bf16.mxu0 0
      %4176 = vmatpush1.bf16.xpose.msra.mxu0 %v4165
      %4177 = vmatprep.subr.bf16.mxu0 0
      %4178 = vmatpush1.bf16.xpose.msra.mxu0 %v4168
      %4179 = vmatprep.subr.bf16.mxu0 0
      %4180 = vmatpush1.bf16.xpose.msra.mxu0 %v4171
      %4181 = vmatprep.subr.bf16.mxu0 0
      %4182 = vmatpush1.bf16.xpose.msra.mxu0 0
      %4183 = vmatprep.subr.bf16.mxu0 0
      %4184 = vmatpush1.bf16.xpose.msra.mxu0 0
      %4185 = vmatprep.subr.bf16.mxu0 0
      %4186 = vmatpush1.bf16.xpose.msra.mxu0 0
      %4187 = vmatprep.subr.bf16.mxu0 0
      %4188 = vmatpush1.bf16.xpose.msra.mxu0 0
      %4189 = vmatprep.subr.bf16.mxu0 0
      %4190 = vmatpush1.bf16.xpose.msra.mxu0 0
      %4191 = vmatprep.subr.bf16.mxu0 0
      %4192 = vmatpush1.bf16.xpose.msra.mxu0 0
      %4193 = vmatprep.subr.bf16.mxu0 0
      %4194 = vmatpush1.bf16.xpose.msra.mxu0 0
      %4195 = vmatprep.subr.bf16.mxu0 0
      %4196 = vmatpush1.bf16.xpose.msra.mxu0 0
      %4197 = vmatprep.subr.bf16.mxu0 0
      %4198 = vmatpush1.bf16.xpose.msra.mxu0 0
      %4199 = vmatprep.subr.bf16.mxu0 0
      %4200 = vmatpush1.bf16.xpose.msra.mxu0 0
      %4201 = vmatprep.subr.bf16.mxu0 0
      %4202 = vmatpush1.bf16.xpose.msra.mxu0 0
      %4203 = vmatprep.subr.bf16.mxu0 0
      %4204 = vmatpush1.bf16.xpose.msra.mxu0 0
      %4205 = vmatprep.mubr.bf16.mxu0 0
      %4206 = vmatmul.mubr.bf16.gmra.mrb[0].mxu0 %v4150
      %v4207 = vpop.f32.mrb[0].mxu0
      %v4208 = vadd.f32 0.0, %v4207
      %v4209 = vpop.f32.mrb[0].mxu0
      %v4210 = vpop.f32.mrb[0].mxu0
      %v4211 = vadd.f32 0.0, %v4210
      %v4212 = vpop.f32.mrb[0].mxu0
      %4213 = vmatprep.mubr.bf16.mxu0 0
      %4214 = vmatmul.mubr.bf16.gmra.mrb[0].mxu0 %v4153
      %v4215 = vpop.f32.mrb[0].mxu0
      %v4216 = vadd.f32 0.0, %v4215
      %v4217 = vpop.f32.mrb[0].mxu0
      %v4218 = vpop.f32.mrb[0].mxu0
      %v4219 = vadd.f32 0.0, %v4218
      %v4220 = vpop.f32.mrb[0].mxu0
      %4221 = vmatprep.mubr.bf16.mxu0 0
      %4222 = vmatmul.mubr.bf16.gmra.mrb[0].mxu0 %v4156
      %v4223 = vpop.f32.mrb[0].mxu0
      %v4224 = vadd.f32 0.0, %v4223
      %v4225 = vpop.f32.mrb[0].mxu0
      %v4226 = vpop.f32.mrb[0].mxu0
      %v4227 = vadd.f32 0.0, %v4226
      %v4228 = vpop.f32.mrb[0].mxu0
      %4229 = vmatprep.mubr.bf16.mxu0 0
      %4230 = vmatmul.mubr.bf16.gmra.mrb[0].mxu0 %v4159
      %v4231 = vpop.f32.mrb[0].mxu0
      %v4232 = vadd.f32 0.0, %v4231
      %v4233 = vpop.f32.mrb[0].mxu0
      %v4234 = vpop.f32.mrb[0].mxu0
      %v4235 = vadd.f32 0.0, %v4234
      %v4236 = vpop.f32.mrb[0].mxu0
      %4237 = vdwg.mxu0
      %vm4238 = vcmask 523264
      %v4239 = vsel %vm4238, %v4208, -inf
      %4240 = vmax.xlane.f32.xlu0 %v4239
      %v4241 = vpop.xlane.xlu0 %4240
      %v4242 = vsel %vm4238, %v4211, -inf
      %4243 = vmax.xlane.f32.xlu0 %v4242
      %v4244 = vpop.xlane.xlu0 %4243
      %v4245 = vsel %vm4238, %v4216, -inf
      %4246 = vmax.xlane.f32.xlu0 %v4245
      %v4247 = vpop.xlane.xlu0 %4246
      %v4248 = vsel %vm4238, %v4219, -inf
      %4249 = vmax.xlane.f32.xlu0 %v4248
      %v4250 = vpop.xlane.xlu0 %4249
      %v4251 = vsel %vm4238, %v4224, -inf
      %4252 = vmax.xlane.f32.xlu0 %v4251
      %v4253 = vpop.xlane.xlu0 %4252
      %v4254 = vsel %vm4238, %v4227, -inf
      %4255 = vmax.xlane.f32.xlu0 %v4254
      %v4256 = vpop.xlane.xlu0 %4255
      %v4257 = vsel %vm4238, %v4232, -inf
      %4258 = vmax.xlane.f32.xlu0 %v4257
      %v4259 = vpop.xlane.xlu0 %4258
      %v4260 = vsel %vm4238, %v4235, -inf
      %4261 = vmax.xlane.f32.xlu0 %v4260
      %v4262 = vpop.xlane.xlu0 %4261
      %v4263 = vsub.f32 %v4208, %v4241
      %v4264 = vsub.f32 %v4211, %v4244
      %v4265 = vsub.f32 %v4216, %v4247
      %v4266 = vsub.f32 %v4219, %v4250
      %v4267 = vsub.f32 %v4224, %v4253
      %v4268 = vsub.f32 %v4227, %v4256
      %v4269 = vsub.f32 %v4232, %v4259
      %v4270 = vsub.f32 %v4235, %v4262
      %v4271 = vmul.f32 %v4263, 1.442695
      %v4272 = vpow.pop %v4271
      %v4273 = vmul.f32 %v4264, 1.442695
      %v4274 = vpow.pop %v4273
      %v4275 = vmul.f32 %v4265, 1.442695
      %v4276 = vpow.pop %v4275
      %v4277 = vmul.f32 %v4266, 1.442695
      %v4278 = vpow.pop %v4277
      %v4279 = vmul.f32 %v4267, 1.442695
      %v4280 = vpow.pop %v4279
      %v4281 = vmul.f32 %v4268, 1.442695
      %v4282 = vpow.pop %v4281
      %v4283 = vmul.f32 %v4269, 1.442695
      %v4284 = vpow.pop %v4283
      %v4285 = vmul.f32 %v4270, 1.442695
      %v4286 = vpow.pop %v4285
      %v4287 = vsel %vm4238, %v4272, 0.0
      %4288 = vadd.xlane.f32.xlu0 %v4287
      %v4289 = vpop.xlane.xlu0 %4288
      %v4290 = vsel %vm4238, %v4274, 0.0
      %4291 = vadd.xlane.f32.xlu0 %v4290
      %v4292 = vpop.xlane.xlu0 %4291
      %v4293 = vsel %vm4238, %v4276, 0.0
      %4294 = vadd.xlane.f32.xlu0 %v4293
      %v4295 = vpop.xlane.xlu0 %4294
      %v4296 = vsel %vm4238, %v4278, 0.0
      %4297 = vadd.xlane.f32.xlu0 %v4296
      %v4298 = vpop.xlane.xlu0 %4297
      %v4299 = vsel %vm4238, %v4280, 0.0
      %4300 = vadd.xlane.f32.xlu0 %v4299
      %v4301 = vpop.xlane.xlu0 %4300
      %v4302 = vsel %vm4238, %v4282, 0.0
      %4303 = vadd.xlane.f32.xlu0 %v4302
      %v4304 = vpop.xlane.xlu0 %4303
      %v4305 = vsel %vm4238, %v4284, 0.0
      %4306 = vadd.xlane.f32.xlu0 %v4305
      %v4307 = vpop.xlane.xlu0 %4306
      %v4308 = vsel %vm4238, %v4286, 0.0
      %4309 = vadd.xlane.f32.xlu0 %v4308
      %v4310 = vpop.xlane.xlu0 %4309
      %v4311 = vrcp.pop %v4289
      %v4312 = vrcp.pop %v4292
      %v4313 = vrcp.pop %v4295
      %v4314 = vrcp.pop %v4298
      %v4315 = vrcp.pop %v4301
      %v4316 = vrcp.pop %v4304
      %v4317 = vrcp.pop %v4307
      %v4318 = vrcp.pop %v4310
      %v4319 = vmul.f32 %v4272, %v4311
      %v4320 = vmul.f32 %v4274, %v4312
      %v4321 = vmul.f32 %v4276, %v4313
      %v4322 = vmul.f32 %v4278, %v4314
      %v4323 = vmul.f32 %v4280, %v4315
      %v4324 = vmul.f32 %v4282, %v4316
      %v4325 = vmul.f32 %v4284, %v4317
      %v4326 = vmul.f32 %v4286, %v4318
      %v4327 = vpack.c.bf16 %v4320, %v4319
      %v4328 = vpack.c.bf16 %v4322, %v4321
      %v4329 = vpack.c.bf16 %v4324, %v4323
      %v4330 = vpack.c.bf16 %v4326, %v4325
      %4331 = vrot.lane.b32.xlu0 %v4132, 120
      %v4332 = vpop.permute.xlu0 %4331
      %4333 = vrot.lane.b32.xlu0 %v4133, 120
      %v4334 = vpop.permute.xlu0 %4333
      %4335 = vrot.lane.b32.xlu0 %v4134, 120
      %v4336 = vpop.permute.xlu0 %4335
      %4337 = vrot.lane.b32.xlu0 %v4135, 120
      %v4338 = vpop.permute.xlu0 %4337
      %v4344 = vsel %vm4238, %v4327, 0
      %v4347 = vsel %vm4238, %v4328, 0
      %v4350 = vsel %vm4238, %v4329, 0
      %v4353 = vsel %vm4238, %v4330, 0
      %4355 = vmatprep.subr.bf16.mxu0 0
      %4356 = vmatpush1.bf16.msra.mxu0 %v4332
      %4357 = vmatprep.subr.bf16.mxu0 0
      %4358 = vmatpush1.bf16.msra.mxu0 %v4334
      %4359 = vmatprep.subr.bf16.mxu0 0
      %4360 = vmatpush1.bf16.msra.mxu0 %v4336
      %4361 = vmatprep.subr.bf16.mxu0 0
      %4362 = vmatpush1.bf16.msra.mxu0 %v4338
      %4363 = vmatprep.subr.bf16.mxu0 0
      %4364 = vmatpush1.bf16.msra.mxu0 0
      %4365 = vmatprep.subr.bf16.mxu0 0
      %4366 = vmatpush1.bf16.msra.mxu0 0
      %4367 = vmatprep.subr.bf16.mxu0 0
      %4368 = vmatpush1.bf16.msra.mxu0 0
      %4369 = vmatprep.subr.bf16.mxu0 0
      %4370 = vmatpush1.bf16.msra.mxu0 0
      %4371 = vmatprep.subr.bf16.mxu0 0
      %4372 = vmatpush1.bf16.msra.mxu0 0
      %4373 = vmatprep.subr.bf16.mxu0 0
      %4374 = vmatpush1.bf16.msra.mxu0 0
      %4375 = vmatprep.subr.bf16.mxu0 0
      %4376 = vmatpush1.bf16.msra.mxu0 0
      %4377 = vmatprep.subr.bf16.mxu0 0
      %4378 = vmatpush1.bf16.msra.mxu0 0
      %4379 = vmatprep.subr.bf16.mxu0 0
      %4380 = vmatpush1.bf16.msra.mxu0 0
      %4381 = vmatprep.subr.bf16.mxu0 0
      %4382 = vmatpush1.bf16.msra.mxu0 0
      %4383 = vmatprep.subr.bf16.mxu0 0
      %4384 = vmatpush1.bf16.msra.mxu0 0
      %4385 = vmatprep.subr.bf16.mxu0 0
      %4386 = vmatpush1.bf16.msra.mxu0 0
      %4387 = vmatprep.mubr.bf16.mxu0 0
      %4388 = vmatmul.mubr.bf16.gmra.mrb[0].mxu0 %v4344
      %v4389 = vpop.f32.mrb[0].mxu0
      %v4390 = vadd.f32 %v4020, %v4389
      %v4391 = vpop.f32.mrb[0].mxu0
      %v4392 = vpop.f32.mrb[0].mxu0
      %v4393 = vadd.f32 %v4021, %v4392
      %v4394 = vpop.f32.mrb[0].mxu0
      %4395 = vmatprep.mubr.bf16.mxu0 0
      %4396 = vmatmul.mubr.bf16.gmra.mrb[0].mxu0 %v4347
      %v4397 = vpop.f32.mrb[0].mxu0
      %v4398 = vadd.f32 %v4022, %v4397
      %v4399 = vpop.f32.mrb[0].mxu0
      %v4400 = vpop.f32.mrb[0].mxu0
      %v4401 = vadd.f32 %v4023, %v4400
      %v4402 = vpop.f32.mrb[0].mxu0
      %4403 = vmatprep.mubr.bf16.mxu0 0
      %4404 = vmatmul.mubr.bf16.gmra.mrb[0].mxu0 %v4350
      %v4405 = vpop.f32.mrb[0].mxu0
      %v4406 = vadd.f32 %v4024, %v4405
      %v4407 = vpop.f32.mrb[0].mxu0
      %v4408 = vpop.f32.mrb[0].mxu0
      %v4409 = vadd.f32 %v4025, %v4408
      %v4410 = vpop.f32.mrb[0].mxu0
      %4411 = vmatprep.mubr.bf16.mxu0 0
      %4412 = vmatmul.mubr.bf16.gmra.mrb[0].mxu0 %v4353
      %v4413 = vpop.f32.mrb[0].mxu0
      %v4414 = vadd.f32 %v4026, %v4413
      %v4415 = vpop.f32.mrb[0].mxu0
      %v4416 = vpop.f32.mrb[0].mxu0
      %v4417 = vadd.f32 %v4027, %v4416
      %v4418 = vpop.f32.mrb[0].mxu0
      %4419 = vdwg.mxu0
      %4420 = vst.msk [vmem:[%s670] sm:$0xff] %vm4148, %v4390
      %4421 = vst.msk [vmem:[%s670 + $0x8] sm:$0xff] %vm4148, %v4393
      %4422 = vst.msk [vmem:[%s670 + $0x10] sm:$0xff] %vm4148, %v4398
      %4423 = vst.msk [vmem:[%s670 + $0x18] sm:$0xff] %vm4148, %v4401
      %4424 = vst.msk [vmem:[%s670 + $0x20] sm:$0xff] %vm4148, %v4406
      %4425 = vst.msk [vmem:[%s670 + $0x28] sm:$0xff] %vm4148, %v4409
      %4426 = vst.msk [vmem:[%s670 + $0x30] sm:$0xff] %vm4148, %v4414
      %4427 = vst.msk [vmem:[%s670 + $0x38] sm:$0xff] %vm4148, %v4417
      %4432 = vrot.lane.b32.xlu0 %v4128, 116
      %v4433 = vpop.permute.xlu0 %4432
      %4434 = vrot.lane.b32.xlu0 %v4129, 116
      %v4435 = vpop.permute.xlu0 %4434
      %4436 = vrot.lane.b32.xlu0 %v4130, 116
      %v4437 = vpop.permute.xlu0 %4436
      %4438 = vrot.lane.b32.xlu0 %v4131, 116
      %v4439 = vpop.permute.xlu0 %4438
      %4440 = vrot.lane.b32.xlu0 %v4132, 112
      %v4441 = vpop.permute.xlu0 %4440
      %4442 = vrot.lane.b32.xlu0 %v4133, 112
      %v4443 = vpop.permute.xlu0 %4442
      %4444 = vrot.lane.b32.xlu0 %v4134, 112
      %v4445 = vpop.permute.xlu0 %4444
      %4446 = vrot.lane.b32.xlu0 %v4135, 112
      %v4447 = vpop.permute.xlu0 %4446
      %v4449 = vsel %vm4148, %v4433, 0
      %v4452 = vsel %vm4148, %v4435, 0
      %v4455 = vsel %vm4148, %v4437, 0
      %v4458 = vsel %vm4148, %v4439, 0
      %v4461 = vsel %vm4148, %v4441, 0
      %v4464 = vsel %vm4148, %v4443, 0
      %v4467 = vsel %vm4148, %v4445, 0
      %v4470 = vsel %vm4148, %v4447, 0
      %4472 = vmatprep.subr.bf16.mxu0 0
      %4473 = vmatpush1.bf16.xpose.msra.mxu0 %v4461
      %4474 = vmatprep.subr.bf16.mxu0 0
      %4475 = vmatpush1.bf16.xpose.msra.mxu0 %v4464
      %4476 = vmatprep.subr.bf16.mxu0 0
      %4477 = vmatpush1.bf16.xpose.msra.mxu0 %v4467
      %4478 = vmatprep.subr.bf16.mxu0 0
      %4479 = vmatpush1.bf16.xpose.msra.mxu0 %v4470
      %4480 = vmatprep.subr.bf16.mxu0 0
      %4481 = vmatpush1.bf16.xpose.msra.mxu0 0
      %4482 = vmatprep.subr.bf16.mxu0 0
      %4483 = vmatpush1.bf16.xpose.msra.mxu0 0
      %4484 = vmatprep.subr.bf16.mxu0 0
      %4485 = vmatpush1.bf16.xpose.msra.mxu0 0
      %4486 = vmatprep.subr.bf16.mxu0 0
      %4487 = vmatpush1.bf16.xpose.msra.mxu0 0
      %4488 = vmatprep.subr.bf16.mxu0 0
      %4489 = vmatpush1.bf16.xpose.msra.mxu0 0
      %4490 = vmatprep.subr.bf16.mxu0 0
      %4491 = vmatpush1.bf16.xpose.msra.mxu0 0
      %4492 = vmatprep.subr.bf16.mxu0 0
      %4493 = vmatpush1.bf16.xpose.msra.mxu0 0
      %4494 = vmatprep.subr.bf16.mxu0 0
      %4495 = vmatpush1.bf16.xpose.msra.mxu0 0
      %4496 = vmatprep.subr.bf16.mxu0 0
      %4497 = vmatpush1.bf16.xpose.msra.mxu0 0
      %4498 = vmatprep.subr.bf16.mxu0 0
      %4499 = vmatpush1.bf16.xpose.msra.mxu0 0
      %4500 = vmatprep.subr.bf16.mxu0 0
      %4501 = vmatpush1.bf16.xpose.msra.mxu0 0
      %4502 = vmatprep.subr.bf16.mxu0 0
      %4503 = vmatpush1.bf16.xpose.msra.mxu0 0
      %4504 = vmatprep.mubr.bf16.mxu0 0
      %4505 = vmatmul.mubr.bf16.gmra.mrb[0].mxu0 %v4449
      %v4506 = vpop.f32.mrb[0].mxu0
      %v4507 = vadd.f32 0.0, %v4506
      %v4508 = vpop.f32.mrb[0].mxu0
      %v4509 = vpop.f32.mrb[0].mxu0
      %v4510 = vadd.f32 0.0, %v4509
      %v4511 = vpop.f32.mrb[0].mxu0
      %4512 = vmatprep.mubr.bf16.mxu0 0
      %4513 = vmatmul.mubr.bf16.gmra.mrb[0].mxu0 %v4452
      %v4514 = vpop.f32.mrb[0].mxu0
      %v4515 = vadd.f32 0.0, %v4514
      %v4516 = vpop.f32.mrb[0].mxu0
      %v4517 = vpop.f32.mrb[0].mxu0
      %v4518 = vadd.f32 0.0, %v4517
      %v4519 = vpop.f32.mrb[0].mxu0
      %4520 = vmatprep.mubr.bf16.mxu0 0
      %4521 = vmatmul.mubr.bf16.gmra.mrb[0].mxu0 %v4455
      %v4522 = vpop.f32.mrb[0].mxu0
      %v4523 = vadd.f32 0.0, %v4522
      %v4524 = vpop.f32.mrb[0].mxu0
      %v4525 = vpop.f32.mrb[0].mxu0
      %v4526 = vadd.f32 0.0, %v4525
      %v4527 = vpop.f32.mrb[0].mxu0
      %4528 = vmatprep.mubr.bf16.mxu0 0
      %4529 = vmatmul.mubr.bf16.gmra.mrb[0].mxu0 %v4458
      %v4530 = vpop.f32.mrb[0].mxu0
      %v4531 = vadd.f32 0.0, %v4530
      %v4532 = vpop.f32.mrb[0].mxu0
      %v4533 = vpop.f32.mrb[0].mxu0
      %v4534 = vadd.f32 0.0, %v4533
      %v4535 = vpop.f32.mrb[0].mxu0
      %4536 = vdwg.mxu0
      %v4537 = vsel %vm4238, %v4507, -inf
      %4538 = vmax.xlane.f32.xlu0 %v4537
      %v4539 = vpop.xlane.xlu0 %4538
      %v4540 = vsel %vm4238, %v4510, -inf
      %4541 = vmax.xlane.f32.xlu0 %v4540
      %v4542 = vpop.xlane.xlu0 %4541
      %v4543 = vsel %vm4238, %v4515, -inf
      %4544 = vmax.xlane.f32.xlu0 %v4543
      %v4545 = vpop.xlane.xlu0 %4544
      %v4546 = vsel %vm4238, %v4518, -inf
      %4547 = vmax.xlane.f32.xlu0 %v4546
      %v4548 = vpop.xlane.xlu0 %4547
      %v4549 = vsel %vm4238, %v4523, -inf
      %4550 = vmax.xlane.f32.xlu0 %v4549
      %v4551 = vpop.xlane.xlu0 %4550
      %v4552 = vsel %vm4238, %v4526, -inf
      %4553 = vmax.xlane.f32.xlu0 %v4552
      %v4554 = vpop.xlane.xlu0 %4553
      %v4555 = vsel %vm4238, %v4531, -inf
      %4556 = vmax.xlane.f32.xlu0 %v4555
      %v4557 = vpop.xlane.xlu0 %4556
      %v4558 = vsel %vm4238, %v4534, -inf
      %4559 = vmax.xlane.f32.xlu0 %v4558
      %v4560 = vpop.xlane.xlu0 %4559
      %v4561 = vsub.f32 %v4507, %v4539
      %v4562 = vsub.f32 %v4510, %v4542
      %v4563 = vsub.f32 %v4515, %v4545
      %v4564 = vsub.f32 %v4518, %v4548
      %v4565 = vsub.f32 %v4523, %v4551
      %v4566 = vsub.f32 %v4526, %v4554
      %v4567 = vsub.f32 %v4531, %v4557
      %v4568 = vsub.f32 %v4534, %v4560
      %v4569 = vmul.f32 %v4561, 1.442695
      %v4570 = vpow.pop %v4569
      %v4571 = vmul.f32 %v4562, 1.442695
      %v4572 = vpow.pop %v4571
      %v4573 = vmul.f32 %v4563, 1.442695
      %v4574 = vpow.pop %v4573
      %v4575 = vmul.f32 %v4564, 1.442695
      %v4576 = vpow.pop %v4575
      %v4577 = vmul.f32 %v4565, 1.442695
      %v4578 = vpow.pop %v4577
      %v4579 = vmul.f32 %v4566, 1.442695
      %v4580 = vpow.pop %v4579
      %v4581 = vmul.f32 %v4567, 1.442695
      %v4582 = vpow.pop %v4581
      %v4583 = vmul.f32 %v4568, 1.442695
      %v4584 = vpow.pop %v4583
      %v4585 = vsel %vm4238, %v4570, 0.0
      %4586 = vadd.xlane.f32.xlu0 %v4585
      %v4587 = vpop.xlane.xlu0 %4586
      %v4588 = vsel %vm4238, %v4572, 0.0
      %4589 = vadd.xlane.f32.xlu0 %v4588
      %v4590 = vpop.xlane.xlu0 %4589
      %v4591 = vsel %vm4238, %v4574, 0.0
      %4592 = vadd.xlane.f32.xlu0 %v4591
      %v4593 = vpop.xlane.xlu0 %4592
      %v4594 = vsel %vm4238, %v4576, 0.0
      %4595 = vadd.xlane.f32.xlu0 %v4594
      %v4596 = vpop.xlane.xlu0 %4595
      %v4597 = vsel %vm4238, %v4578, 0.0
      %4598 = vadd.xlane.f32.xlu0 %v4597
      %v4599 = vpop.xlane.xlu0 %4598
      %v4600 = vsel %vm4238, %v4580, 0.0
      %4601 = vadd.xlane.f32.xlu0 %v4600
      %v4602 = vpop.xlane.xlu0 %4601
      %v4603 = vsel %vm4238, %v4582, 0.0
      %4604 = vadd.xlane.f32.xlu0 %v4603
      %v4605 = vpop.xlane.xlu0 %4604
      %v4606 = vsel %vm4238, %v4584, 0.0
      %4607 = vadd.xlane.f32.xlu0 %v4606
      %v4608 = vpop.xlane.xlu0 %4607
      %v4609 = vrcp.pop %v4587
      %v4610 = vrcp.pop %v4590
      %v4611 = vrcp.pop %v4593
      %v4612 = vrcp.pop %v4596
      %v4613 = vrcp.pop %v4599
      %v4614 = vrcp.pop %v4602
      %v4615 = vrcp.pop %v4605
      %v4616 = vrcp.pop %v4608
      %v4617 = vmul.f32 %v4570, %v4609
      %v4618 = vmul.f32 %v4572, %v4610
      %v4619 = vmul.f32 %v4574, %v4611
      %v4620 = vmul.f32 %v4576, %v4612
      %v4621 = vmul.f32 %v4578, %v4613
      %v4622 = vmul.f32 %v4580, %v4614
      %v4623 = vmul.f32 %v4582, %v4615
      %v4624 = vmul.f32 %v4584, %v4616
      %v4625 = vpack.c.bf16 %v4618, %v4617
      %v4626 = vpack.c.bf16 %v4620, %v4619
      %v4627 = vpack.c.bf16 %v4622, %v4621
      %v4628 = vpack.c.bf16 %v4624, %v4623
      %4629 = vrot.lane.b32.xlu0 %v4132, 108
      %v4630 = vpop.permute.xlu0 %4629
      %4631 = vrot.lane.b32.xlu0 %v4133, 108
      %v4632 = vpop.permute.xlu0 %4631
      %4633 = vrot.lane.b32.xlu0 %v4134, 108
      %v4634 = vpop.permute.xlu0 %4633
      %4635 = vrot.lane.b32.xlu0 %v4135, 108
      %v4636 = vpop.permute.xlu0 %4635
      %4649 = vrot.lane.b32.xlu0 %v4020, 124
      %v4650 = vpop.permute.xlu0 %4649
      %4651 = vrot.lane.b32.xlu0 %v4021, 124
      %v4652 = vpop.permute.xlu0 %4651
      %4653 = vrot.lane.b32.xlu0 %v4022, 124
      %v4654 = vpop.permute.xlu0 %4653
      %4655 = vrot.lane.b32.xlu0 %v4023, 124
      %v4656 = vpop.permute.xlu0 %4655
      %4657 = vrot.lane.b32.xlu0 %v4024, 124
      %v4658 = vpop.permute.xlu0 %4657
      %4659 = vrot.lane.b32.xlu0 %v4025, 124
      %v4660 = vpop.permute.xlu0 %4659
      %4661 = vrot.lane.b32.xlu0 %v4026, 124
      %v4662 = vpop.permute.xlu0 %4661
      %4663 = vrot.lane.b32.xlu0 %v4027, 124
      %v4664 = vpop.permute.xlu0 %4663
      %v4674 = vsel %vm4238, %v4625, 0
      %v4677 = vsel %vm4238, %v4626, 0
      %v4680 = vsel %vm4238, %v4627, 0
      %v4683 = vsel %vm4238, %v4628, 0
      %4685 = vmatprep.subr.bf16.mxu0 0
      %4686 = vmatpush1.bf16.msra.mxu0 %v4630
      %4687 = vmatprep.subr.bf16.mxu0 0
      %4688 = vmatpush1.bf16.msra.mxu0 %v4632
      %4689 = vmatprep.subr.bf16.mxu0 0
      %4690 = vmatpush1.bf16.msra.mxu0 %v4634
      %4691 = vmatprep.subr.bf16.mxu0 0
      %4692 = vmatpush1.bf16.msra.mxu0 %v4636
      %4693 = vmatprep.subr.bf16.mxu0 0
      %4694 = vmatpush1.bf16.msra.mxu0 0
      %4695 = vmatprep.subr.bf16.mxu0 0
      %4696 = vmatpush1.bf16.msra.mxu0 0
      %4697 = vmatprep.subr.bf16.mxu0 0
      %4698 = vmatpush1.bf16.msra.mxu0 0
      %4699 = vmatprep.subr.bf16.mxu0 0
      %4700 = vmatpush1.bf16.msra.mxu0 0
      %4701 = vmatprep.subr.bf16.mxu0 0
      %4702 = vmatpush1.bf16.msra.mxu0 0
      %4703 = vmatprep.subr.bf16.mxu0 0
      %4704 = vmatpush1.bf16.msra.mxu0 0
      %4705 = vmatprep.subr.bf16.mxu0 0
      %4706 = vmatpush1.bf16.msra.mxu0 0
      %4707 = vmatprep.subr.bf16.mxu0 0
      %4708 = vmatpush1.bf16.msra.mxu0 0
      %4709 = vmatprep.subr.bf16.mxu0 0
      %4710 = vmatpush1.bf16.msra.mxu0 0
      %4711 = vmatprep.subr.bf16.mxu0 0
      %4712 = vmatpush1.bf16.msra.mxu0 0
      %4713 = vmatprep.subr.bf16.mxu0 0
      %4714 = vmatpush1.bf16.msra.mxu0 0
      %4715 = vmatprep.subr.bf16.mxu0 0
      %4716 = vmatpush1.bf16.msra.mxu0 0
      %4717 = vmatprep.mubr.bf16.mxu0 0
      %4718 = vmatmul.mubr.bf16.gmra.mrb[0].mxu0 %v4674
      %v4719 = vpop.f32.mrb[0].mxu0
      %v4720 = vadd.f32 %v4650, %v4719
      %v4721 = vpop.f32.mrb[0].mxu0
      %v4722 = vpop.f32.mrb[0].mxu0
      %v4723 = vadd.f32 %v4652, %v4722
      %v4724 = vpop.f32.mrb[0].mxu0
      %4725 = vmatprep.mubr.bf16.mxu0 0
      %4726 = vmatmul.mubr.bf16.gmra.mrb[0].mxu0 %v4677
      %v4727 = vpop.f32.mrb[0].mxu0
      %v4728 = vadd.f32 %v4654, %v4727
      %v4729 = vpop.f32.mrb[0].mxu0
      %v4730 = vpop.f32.mrb[0].mxu0
      %v4731 = vadd.f32 %v4656, %v4730
      %v4732 = vpop.f32.mrb[0].mxu0
      %4733 = vmatprep.mubr.bf16.mxu0 0
      %4734 = vmatmul.mubr.bf16.gmra.mrb[0].mxu0 %v4680
      %v4735 = vpop.f32.mrb[0].mxu0
      %v4736 = vadd.f32 %v4658, %v4735
      %v4737 = vpop.f32.mrb[0].mxu0
      %v4738 = vpop.f32.mrb[0].mxu0
      %v4739 = vadd.f32 %v4660, %v4738
      %v4740 = vpop.f32.mrb[0].mxu0
      %4741 = vmatprep.mubr.bf16.mxu0 0
      %4742 = vmatmul.mubr.bf16.gmra.mrb[0].mxu0 %v4683
      %v4743 = vpop.f32.mrb[0].mxu0
      %v4744 = vadd.f32 %v4662, %v4743
      %v4745 = vpop.f32.mrb[0].mxu0
      %v4746 = vpop.f32.mrb[0].mxu0
      %v4747 = vadd.f32 %v4664, %v4746
      %v4748 = vpop.f32.mrb[0].mxu0
      %4749 = vdwg.mxu0
      %4758 = vrot.lane.b32.xlu0 %v4720, 4
      %v4759 = vpop.permute.xlu0 %4758
      %4760 = vrot.lane.b32.xlu0 %v4723, 4
      %v4761 = vpop.permute.xlu0 %4760
      %4762 = vrot.lane.b32.xlu0 %v4728, 4
      %v4763 = vpop.permute.xlu0 %4762
      %4764 = vrot.lane.b32.xlu0 %v4731, 4
      %v4765 = vpop.permute.xlu0 %4764
      %4766 = vrot.lane.b32.xlu0 %v4736, 4
      %v4767 = vpop.permute.xlu0 %4766
      %4768 = vrot.lane.b32.xlu0 %v4739, 4
      %v4769 = vpop.permute.xlu0 %4768
      %4770 = vrot.lane.b32.xlu0 %v4744, 4
      %v4771 = vpop.permute.xlu0 %4770
      %4772 = vrot.lane.b32.xlu0 %v4747, 4
      %v4773 = vpop.permute.xlu0 %4772
      %vm4782 = vcmask 64544
      %4783 = vst.msk [vmem:[%s670] sm:$0xff] %vm4782, %v4759
      %4784 = vst.msk [vmem:[%s670 + $0x8] sm:$0xff] %vm4782, %v4761
      %4785 = vst.msk [vmem:[%s670 + $0x10] sm:$0xff] %vm4782, %v4763
      %4786 = vst.msk [vmem:[%s670 + $0x18] sm:$0xff] %vm4782, %v4765
      %4787 = vst.msk [vmem:[%s670 + $0x20] sm:$0xff] %vm4782, %v4767
      %4788 = vst.msk [vmem:[%s670 + $0x28] sm:$0xff] %vm4782, %v4769
      %4789 = vst.msk [vmem:[%s670 + $0x30] sm:$0xff] %vm4782, %v4771
      %4790 = vst.msk [vmem:[%s670 + $0x38] sm:$0xff] %vm4782, %v4773
      %p4791 = scmp.lt.s32.totalorder %s32, 1
      %s4792 = scalar_select %p4791, %s32, 1
      %s4793 = smul.addr %s4792, 8
      %s4794 = smul.addr %s4793, 8
      %s4795 = scalar_lea.vmem %s21, %s4794
      // Predicated region
      $region105: #{tpu_custom_call.1} parent=103 // pred_check
        %p4796 = pneg %p501
      $region106: #{tpu_custom_call.1} parent=103 // pred_check_branch
        %4798 = sbr.rel (%p4796) target = $region108
      $region107: #{tpu_custom_call.1} parent=103 // pred_region
        _
      $region108: #{tpu_custom_call.1} parent=103 // pred_fallthru
        _
    $region104: #{tpu_custom_call.1} parent=5 // pred_fallthru
      _
    %p4799 = scmp.le.s32.totalorder 2, %s27
    // Predicated region
    $region109: #{tpu_custom_call.1} parent=5 // pred_check
      %p4800 = pneg %p4799
    $region110: #{tpu_custom_call.1} parent=5 // pred_check_branch
      %4802 = sbr.rel (%p4800) target = $region112
    $region111: #{tpu_custom_call.1} parent=5 // pred_region
      %s4803 = ssub.s32 %s27, 2
      // Predicated region
      $region113: #{tpu_custom_call.1} parent=111 // pred_check
        %p4804 = pneg %p507
      $region114: #{tpu_custom_call.1} parent=111 // pred_check_branch
        %4806 = sbr.rel (%p4804) target = $region116
      $region115: #{tpu_custom_call.1} parent=111 // pred_region
        %p4807 = scmp.lt.s32.totalorder %s33, 1
        %s4808 = scalar_select %p4807, %s33, 1
        %s4809 = smul.addr %s4808, 8
        %s4810 = smul.addr %s4809, 8
        %s4811 = scalar_lea.vmem %s21, %s4810
      $region116: #{tpu_custom_call.1} parent=111 // pred_fallthru
        _
    $region112: #{tpu_custom_call.1} parent=5 // pred_fallthru
      _
  $region6: #{tpu_custom_call.1} parent=0 // loop_footer
    %s31 = sadd.s32 1, %s27
  $region7: #{tpu_custom_call.1} parent=0 // loop_footer_branch
    %26 = sbr.rel target = $region3
  $region8: #{tpu_custom_call.1} parent=0 // loop_exit
    _

</llo_original>
